<compile_context>
chip_gen: v5e
topology: v5e:2x2
jax: 0.10.0
libtpu: 0.0.40
codegen_flags: <defaults>
</compile_context>

<pallas_src>
import functools
import math

import jax
import jax.numpy as jnp
from jax.experimental import pallas as pl
from jax.experimental.pallas import tpu as pltpu


# ----------------------------------------------------------------------------
# helpers traced into kernel bodies (all math in f32)
# ----------------------------------------------------------------------------
def _layernorm(x, gamma, beta, eps):
    mean = jnp.mean(x, axis=-1, keepdims=True)
    var = jnp.mean(jnp.square(x - mean), axis=-1, keepdims=True)
    return (x - mean) * jax.lax.rsqrt(var + eps) * gamma + beta


def _gelu_tanh(x):
    # PyTorch F.gelu(approximate="tanh")
    return 0.5 * x * (1.0 + jnp.tanh(0.7978845608028654 * (x + 0.044715 * x * x * x)))


def _per_head_layernorm(x, seg, seg_t, gamma_full, beta_full, inv_dh, eps):
    # Per-head LayerNorm over head_dim while keeping the (S, D) lane-dense
    # layout: per-head mean / mean-of-squares via MXU matmuls against the
    # (D, H) head-membership matrix, broadcast back with its transpose.
    m = jnp.dot(x, seg, preferred_element_type=jnp.float32) * inv_dh        # (S, H)
    m2 = jnp.dot(x * x, seg, preferred_element_type=jnp.float32) * inv_dh   # (S, H)
    mean = jnp.dot(m, seg_t, preferred_element_type=jnp.float32)            # (S, D)
    var = jnp.dot(m2, seg_t, preferred_element_type=jnp.float32) - mean * mean
    return (x - mean) * jax.lax.rsqrt(var + eps) * gamma_full + beta_full


# ----------------------------------------------------------------------------
# Kernel 1: fused temb modulation for BOTH norm1 and norm2
#           silu(temb) @ [W1 | W2] + [b1 | b2]  -> (B, 12*D)
# ----------------------------------------------------------------------------
def _temb_mod_kernel(t_ref, w_ref, b_ref, o_ref):
    t = t_ref[...]
    s = t * jax.nn.sigmoid(t)                        # SiLU
    o_ref[...] = (
        jnp.dot(s, w_ref[...], preferred_element_type=jnp.float32) + b_ref[...]
    )


def temb_modulation(temb, w, b):
    B = temb.shape[0]
    out_dim = w.shape[1]
    return pl.pallas_call(
        _temb_mod_kernel,
        out_shape=jax.ShapeDtypeStruct((B, out_dim), jnp.float32),
    )(temb, w, b)


# ----------------------------------------------------------------------------
# Kernel 2: fused  [LN+modulate]  ->  attention  ->  [gated residual add]
#           (text and video streams handled together; concat lives in VMEM)
# ----------------------------------------------------------------------------
def _attn_block_kernel(
    h_ref, e_ref,
    shh_ref, sch_ref, gh_ref,          # video shift / scale / gate
    she_ref, sce_ref, ge_ref,          # text  shift / scale / gate
    ng_ref, nb_ref,                    # norm1 LayerNorm affine
    wqkv_ref, wo_ref, bo_ref,          # fused QKV (bf16), out proj (bf16) + bias
    qg_ref, qb_ref, kg_ref, kb_ref,    # per-head LN params tiled to (1, D)
    seg_ref, segt_ref,                 # head membership (D,H) and (H,D)
    ho_ref, eo_ref,                    # outputs
    *, heads, head_dim, st, eps, qk_eps,
):
    h = h_ref[0]                                                  # (Sv, D)
    e = e_ref[0]                                                  # (St, D)
    ng, nb = ng_ref[...], nb_ref[...]

    # --- CogVideoXLayerNormZero prologue (fused, in VMEM) ---
    nh = _layernorm(h, ng, nb, eps) * (1.0 + sch_ref[0]) + shh_ref[0]
    ne = _layernorm(e, ng, nb, eps) * (1.0 + sce_ref[0]) + she_ref[0]
    x = jnp.concatenate([ne, nh], axis=0)                         # (S, D) text-first

    D = heads * head_dim

    # --- fused QKV projection (bf16 MXU, f32 accumulate) ---
    qkv = jnp.dot(x.astype(jnp.bfloat16), wqkv_ref[...],
                  preferred_element_type=jnp.float32)             # (S, 3D)
    q = qkv[:, :D]
    k = qkv[:, D:2 * D]
    v = qkv[:, 2 * D:]

    # --- per-head q/k LayerNorm (matmul-based stats) ---
    seg, segt = seg_ref[...], segt_ref[...]
    inv_dh = 1.0 / head_dim
    qn = _per_head_layernorm(q, seg, segt, qg_ref[...], qb_ref[...], inv_dh, qk_eps)
    kn = _per_head_layernorm(k, seg, segt, kg_ref[...], kb_ref[...], inv_dh, qk_eps)

    def heads_split(t):                                           # (S, D) -> (H, S, Dh)
        return jnp.stack(
            [t[:, i * head_dim:(i + 1) * head_dim] for i in range(heads)], axis=0)

    qh = heads_split(qn).astype(jnp.bfloat16)
    kh = heads_split(kn).astype(jnp.bfloat16)
    vh = heads_split(v).astype(jnp.bfloat16)

    # --- head-batched attention ---
    scale = 1.0 / math.sqrt(head_dim)
    s = jnp.einsum('hqd,hkd->hqk', qh, kh,
                   preferred_element_type=jnp.float32) * scale    # (H, S, S)
    s = s - jnp.max(s, axis=-1, keepdims=True)
    p = jnp.exp(s)
    p = p * pl.reciprocal(jnp.sum(p, axis=-1, keepdims=True), approx=True)
    ctx = jnp.einsum('hqk,hkd->hqd', p.astype(jnp.bfloat16), vh,
                     preferred_element_type=jnp.float32)          # (H, S, Dh)
    attn = jnp.concatenate([ctx[i] for i in range(heads)], axis=-1)  # (S, D)

    out = jnp.dot(attn.astype(jnp.bfloat16), wo_ref[...],
                  preferred_element_type=jnp.float32) + bo_ref[...]

    # --- gated residual epilogue (fused) ---
    eo_ref[0] = e + ge_ref[0] * out[:st, :]
    ho_ref[0] = h + gh_ref[0] * out[st:, :]


def attention_block(h, e, sh_h, sc_h, g_h, sh_e, sc_e, g_e, p, heads, head_dim):
    B, Sv, D = h.shape
    St = e.shape[1]
    kernel = functools.partial(
        _attn_block_kernel, heads=heads, head_dim=head_dim,
        st=St, eps=1e-5, qk_eps=1e-6)

    full2d = lambda shape: pl.BlockSpec(shape, lambda b: (0, 0))
    per_b = lambda s1, s2: pl.BlockSpec((1, s1, s2), lambda b: (b, 0, 0))

    return pl.pallas_call(
        kernel,
        grid=(B,),
        in_specs=[
            per_b(Sv, D), per_b(St, D),
            per_b(1, D), per_b(1, D), per_b(1, D),
            per_b(1, D), per_b(1, D), per_b(1, D),
            full2d((1, D)), full2d((1, D)),
            full2d((D, 3 * D)), full2d((D, D)), full2d((1, D)),
            full2d((1, D)), full2d((1, D)), full2d((1, D)), full2d((1, D)),
            full2d((D, heads)), full2d((heads, D)),
        ],
        out_specs=[per_b(Sv, D), per_b(St, D)],
        out_shape=[
            jax.ShapeDtypeStruct((B, Sv, D), jnp.float32),
            jax.ShapeDtypeStruct((B, St, D), jnp.float32),
        ],
        compiler_params=pltpu.CompilerParams(dimension_semantics=("parallel",)),
    )(h, e, sh_h, sc_h, g_h, sh_e, sc_e, g_e,
      p["norm1_g"], p["norm1_b"],
      p["wqkv_bf16"], p["wo_bf16"], p["bo"],
      p["q_g_full"], p["q_b_full"], p["k_g_full"], p["k_b_full"],
      p["seg"], p["seg_t"])


# ----------------------------------------------------------------------------
# Kernel 3: fused  [LN+modulate]  ->  FFN (Linear -> gelu-tanh -> Linear)
#                                 ->  [gated residual add]
#           grid = (batch, sequence-tile); weights stay VMEM-resident
# ----------------------------------------------------------------------------
def _ffn_block_kernel(x_ref, shift_ref, scale_ref, gate_ref, g_ref, b_ref,
                      w1_ref, b1_ref, w2_ref, b2_ref, o_ref, *, eps):
    x = x_ref[0]                                                  # (tS, D)
    xn = _layernorm(x, g_ref[...], b_ref[...], eps) * (1.0 + scale_ref[0]) + shift_ref[0]
    hmid = jnp.dot(xn.astype(jnp.bfloat16), w1_ref[...],
                   preferred_element_type=jnp.float32) + b1_ref[...]
    hmid = _gelu_tanh(hmid)
    y = jnp.dot(hmid.astype(jnp.bfloat16), w2_ref[...],
                preferred_element_type=jnp.float32) + b2_ref[...]
    o_ref[0] = x + gate_ref[0] * y


def _pick_seq_tile(s):
    for t in (512, 256, 128, 64, 32, 16, 8):
        if s % t == 0:
            return t
    return s


def ffn_block(x, shift, scale, gate, p, eps=1e-5):
    B, S, D = x.shape
    inner = p["ff_w1_bf16"].shape[1]
    ts = _pick_seq_tile(S)
    kernel = functools.partial(_ffn_block_kernel, eps=eps)
    return pl.pallas_call(
        kernel,
        grid=(B, S // ts),
        in_specs=[
            pl.BlockSpec((1, ts, D), lambda b, s: (b, s, 0)),
            pl.BlockSpec((1, 1, D), lambda b, s: (b, 0, 0)),
            pl.BlockSpec((1, 1, D), lambda b, s: (b, 0, 0)),
            pl.BlockSpec((1, 1, D), lambda b, s: (b, 0, 0)),
            pl.BlockSpec((1, D), lambda b, s: (0, 0)),
            pl.BlockSpec((1, D), lambda b, s: (0, 0)),
            pl.BlockSpec((D, inner), lambda b, s: (0, 0)),      # resident weights
            pl.BlockSpec((1, inner), lambda b, s: (0, 0)),
            pl.BlockSpec((inner, D), lambda b, s: (0, 0)),
            pl.BlockSpec((1, D), lambda b, s: (0, 0)),
        ],
        out_specs=pl.BlockSpec((1, ts, D), lambda b, s: (b, s, 0)),
        out_shape=jax.ShapeDtypeStruct((B, S, D), jnp.float32),
        compiler_params=pltpu.CompilerParams(
            dimension_semantics=("parallel", "parallel")),
    )(x, shift, scale, gate, p["norm2_g"], p["norm2_b"],
      p["ff_w1_bf16"], p["ff_b1"], p["ff_w2_bf16"], p["ff_b2"])


# ----------------------------------------------------------------------------
# Full CogVideoXBlock forward
# ----------------------------------------------------------------------------
def cogvideox_block(hidden_states, encoder_hidden_states, temb, p, heads, head_dim):
    D = hidden_states.shape[-1]

    # One SiLU + one (T, 12D) matmul produces both norm1 and norm2 modulations.
    mods = temb_modulation(temb, p["mod_w"], p["mod_b"])          # (B, 12D)
    parts = [m[:, None, :] for m in jnp.split(mods, 12, axis=-1)]  # 12 x (B, 1, D)
    (sh_h, sc_h, g_h, sh_e, sc_e, g_e,
     sh2_h, sc2_h, g2_h, sh2_e, sc2_e, g2_e) = parts

    # ---- norm1 + attention + gated residual (one fused kernel) ----
    hidden_states, encoder_hidden_states = attention_block(
        hidden_states, encoder_hidden_states,
        sh_h, sc_h, g_h, sh_e, sc_e, g_e, p, heads, head_dim)

    # ---- norm2 + feed-forward + gated residual (token-wise; no concat) ----
    hidden_states = ffn_block(hidden_states, sh2_h, sc2_h, g2_h, p)
    encoder_hidden_states = ffn_block(encoder_hidden_states, sh2_e, sc2_e, g2_e, p)

    return hidden_states, encoder_hidden_states


# ----------------------------------------------------------------------------
# Parameter init (PyTorch-equivalent layout) + kernel-friendly preparation
# ----------------------------------------------------------------------------
def init_params(key, dim, head_dim, time_embed_dim):
    ff_inner = 4 * dim
    ks = jax.random.split(key, 12)

    def w(k, shape, s=0.1):
        return (s * jax.random.normal(k, shape)).astype(jnp.float32)

    return {
        # norm1: Linear(time_embed_dim, 6*dim) + LayerNorm(dim, eps=1e-5)
        "norm1_lin_w": w(ks[0], (time_embed_dim, 6 * dim)),
        "norm1_lin_b": w(ks[1], (1, 6 * dim)),
        "norm1_g": jnp.ones((1, dim), jnp.float32),
        "norm1_b": jnp.zeros((1, dim), jnp.float32),
        # attention: to_q/k/v (no bias), to_out (bias), qk LayerNorm(head_dim, 1e-6)
        "wq": w(ks[2], (dim, dim)),
        "wk": w(ks[3], (dim, dim)),
        "wv": w(ks[4], (dim, dim)),
        "wo": w(ks[5], (dim, dim)),
        "bo": w(ks[6], (1, dim)),
        "q_ln_g": jnp.ones((1, head_dim), jnp.float32),
        "q_ln_b": jnp.zeros((1, head_dim), jnp.float32),
        "k_ln_g": jnp.ones((1, head_dim), jnp.float32),
        "k_ln_b": jnp.zeros((1, head_dim), jnp.float32),
        # norm2
        "norm2_lin_w": w(ks[7], (time_embed_dim, 6 * dim)),
        "norm2_lin_b": w(ks[8], (1, 6 * dim)),
        "norm2_g": jnp.ones((1, dim), jnp.float32),
        "norm2_b": jnp.zeros((1, dim), jnp.float32),
        # feed-forward: GELU(tanh) proj + out proj, both with bias
        "ff_w1": w(ks[9], (dim, ff_inner)),
        "ff_b1": w(ks[10], (1, ff_inner)),
        "ff_w2": w(ks[11], (ff_inner, dim)),
        "ff_b2": jnp.zeros((1, dim), jnp.float32),
    }


def prepare_params(p, heads, head_dim):
    """Fuse / cast parameters into the layout the kernels consume (done once)."""
    q = dict(p)
    q["mod_w"] = jnp.concatenate([p["norm1_lin_w"], p["norm2_lin_w"]], axis=1)
    q["mod_b"] = jnp.concatenate([p["norm1_lin_b"], p["norm2_lin_b"]], axis=1)
    q["wqkv_bf16"] = jnp.concatenate(
        [p["wq"], p["wk"], p["wv"]], axis=1).astype(jnp.bfloat16)
    q["wo_bf16"] = p["wo"].astype(jnp.bfloat16)
    q["ff_w1_bf16"] = p["ff_w1"].astype(jnp.bfloat16)
    q["ff_w2_bf16"] = p["ff_w2"].astype(jnp.bfloat16)
    # per-head LN affine params tiled across heads to the full feature dim
    q["q_g_full"] = jnp.tile(p["q_ln_g"], (1, heads))
    q["q_b_full"] = jnp.tile(p["q_ln_b"], (1, heads))
    q["k_g_full"] = jnp.tile(p["k_ln_g"], (1, heads))
    q["k_b_full"] = jnp.tile(p["k_ln_b"], (1, heads))
    # head-membership matrix (D, H) and its transpose for matmul-based LN stats
    seg = jnp.repeat(jnp.eye(heads, dtype=jnp.float32), head_dim, axis=0)
    q["seg"] = seg
    q["seg_t"] = seg.T
    return q


if __name__ == "__main__":
    B = 2
    dim = 32
    heads = 4
    head_dim = 8          # heads * head_dim == dim
    time_embed_dim = 16
    vid_len = 16
    txt_len = 8

    key = jax.random.PRNGKey(0)
    k_h, k_e, k_t, k_p = jax.random.split(key, 4)
    hidden_states = jax.random.normal(k_h, (B, vid_len, dim), jnp.float32)
    encoder_hidden_states = jax.random.normal(k_e, (B, txt_len, dim), jnp.float32)
    temb = jax.random.normal(k_t, (B, time_embed_dim), jnp.float32)

    params = prepare_params(
        init_params(k_p, dim, head_dim, time_embed_dim), heads, head_dim)

    block = jax.jit(functools.partial(cogvideox_block, heads=heads, head_dim=head_dim))
    h_out, e_out = block(hidden_states, encoder_hidden_states, temb, params)
    jax.block_until_ready((h_out, e_out))
    assert h_out.shape == (B, vid_len, dim) and e_out.shape == (B, txt_len, dim)
    assert bool(jnp.all(jnp.isfinite(h_out))) and bool(jnp.all(jnp.isfinite(e_out)))
    print("KERNEL_OK")
</pallas_src>

<mosaic_0001>
module attributes {stable_mosaic.version = 11 : i64} {
  func.func @_temb_mod_kernel(%arg0: memref<2x16xf32, #tpu.memory_space<vmem>>, %arg1: memref<16x384xf32, #tpu.memory_space<vmem>>, %arg2: memref<1x384xf32, #tpu.memory_space<vmem>>, %arg3: memref<2x384xf32, #tpu.memory_space<vmem>>) attributes {dimension_semantics = [], scalar_prefetch = 0 : i64, scratch_operands = 0 : i64, tpu.core_type = #tpu.core_type<tc>} {
    %c0 = arith.constant 0 : index
    %c0_0 = arith.constant 0 : index
    %0 = vector.load %arg0[%c0, %c0_0] : memref<2x16xf32, #tpu.memory_space<vmem>>, vector<2x16xf32>
    %1 = arith.negf %0 : vector<2x16xf32>
    %2 = math.exp %1 : vector<2x16xf32>
    %cst = arith.constant 1.000000e+00 : f32
    %3 = vector.broadcast %cst : f32 to vector<2x16xf32>
    %4 = arith.addf %3, %2 : vector<2x16xf32>
    %5 = arith.divf %3, %4 : vector<2x16xf32>
    %6 = arith.mulf %0, %5 : vector<2x16xf32>
    %c0_1 = arith.constant 0 : index
    %c0_2 = arith.constant 0 : index
    %7 = vector.load %arg1[%c0_1, %c0_2] : memref<16x384xf32, #tpu.memory_space<vmem>>, vector<16x384xf32>
    %cst_3 = arith.constant dense<0.000000e+00> : vector<2x384xf32>
    %8 = tpu.matmul %6, %7, %cst_3 {dimension_numbers = #tpu.dot_dimension_numbers<[1], [0], [0], [1], [0, 0, 1, 1], [], []>} : vector<2x16xf32>, vector<16x384xf32>, vector<2x384xf32> -> vector<2x384xf32>
    %c0_4 = arith.constant 0 : index
    %c0_5 = arith.constant 0 : index
    %9 = vector.load %arg2[%c0_4, %c0_5] : memref<1x384xf32, #tpu.memory_space<vmem>>, vector<1x384xf32>
    %10 = vector.broadcast %9 : vector<1x384xf32> to vector<2x384xf32>
    %11 = arith.addf %8, %10 : vector<2x384xf32>
    %c0_6 = arith.constant 0 : index
    %c0_7 = arith.constant 0 : index
    %12 = vector.load %arg3[%c0_6, %c0_7] : memref<2x384xf32, #tpu.memory_space<vmem>>, vector<2x384xf32>
    tpu.vector_store %arg3[%c0_6, %c0_7], %11 {strides = array<i32>} : memref<2x384xf32, #tpu.memory_space<vmem>>, vector<2x384xf32>,
    return
  }
}

module attributes {stable_mosaic.version = 11 : i64} {
  func.func @_attn_block_kernel(%arg0: i32, %arg1: memref<1x16x32xf32, #tpu.memory_space<vmem>>, %arg2: memref<1x8x32xf32, #tpu.memory_space<vmem>>, %arg3: memref<1x1x32xf32, #tpu.memory_space<vmem>>, %arg4: memref<1x1x32xf32, #tpu.memory_space<vmem>>, %arg5: memref<1x1x32xf32, #tpu.memory_space<vmem>>, %arg6: memref<1x1x32xf32, #tpu.memory_space<vmem>>, %arg7: memref<1x1x32xf32, #tpu.memory_space<vmem>>, %arg8: memref<1x1x32xf32, #tpu.memory_space<vmem>>, %arg9: memref<1x32xf32, #tpu.memory_space<vmem>>, %arg10: memref<1x32xf32, #tpu.memory_space<vmem>>, %arg11: memref<32x96xbf16, #tpu.memory_space<vmem>>, %arg12: memref<32x32xbf16, #tpu.memory_space<vmem>>, %arg13: memref<1x32xf32, #tpu.memory_space<vmem>>, %arg14: memref<1x32xf32, #tpu.memory_space<vmem>>, %arg15: memref<1x32xf32, #tpu.memory_space<vmem>>, %arg16: memref<1x32xf32, #tpu.memory_space<vmem>>, %arg17: memref<1x32xf32, #tpu.memory_space<vmem>>, %arg18: memref<32x4xf32, #tpu.memory_space<vmem>>, %arg19: memref<4x32xf32, #tpu.memory_space<vmem>>, %arg20: memref<1x16x32xf32, #tpu.memory_space<vmem>>, %arg21: memref<1x8x32xf32, #tpu.memory_space<vmem>>) attributes {dimension_semantics = [#tpu.dimension_semantics<parallel>], iteration_bounds = array<i64: 2>, scalar_prefetch = 0 : i64, scratch_operands = 0 : i64, tpu.core_type = #tpu.core_type<tc>, window_params = [{transform_indices = @transform_0, window_bounds = array<i64: 1, 16, 32>}, {transform_indices = @transform_1, window_bounds = array<i64: 1, 8, 32>}, {transform_indices = @transform_2, window_bounds = array<i64: 1, 1, 32>}, {transform_indices = @transform_3, window_bounds = array<i64: 1, 1, 32>}, {transform_indices = @transform_4, window_bounds = array<i64: 1, 1, 32>}, {transform_indices = @transform_5, window_bounds = array<i64: 1, 1, 32>}, {transform_indices = @transform_6, window_bounds = array<i64: 1, 1, 32>}, {transform_indices = @transform_7, window_bounds = array<i64: 1, 1, 32>}, {pipeline_mode = #tpu.pipeline_mode<synchronous>, transform_indices = @transform_8, window_bounds = array<i64: 1, 32>}, {pipeline_mode = #tpu.pipeline_mode<synchronous>, transform_indices = @transform_9, window_bounds = array<i64: 1, 32>}, {pipeline_mode = #tpu.pipeline_mode<synchronous>, transform_indices = @transform_10, window_bounds = array<i64: 32, 96>}, {pipeline_mode = #tpu.pipeline_mode<synchronous>, transform_indices = @transform_11, window_bounds = array<i64: 32, 32>}, {pipeline_mode = #tpu.pipeline_mode<synchronous>, transform_indices = @transform_12, window_bounds = array<i64: 1, 32>}, {pipeline_mode = #tpu.pipeline_mode<synchronous>, transform_indices = @transform_13, window_bounds = array<i64: 1, 32>}, {pipeline_mode = #tpu.pipeline_mode<synchronous>, transform_indices = @transform_14, window_bounds = array<i64: 1, 32>}, {pipeline_mode = #tpu.pipeline_mode<synchronous>, transform_indices = @transform_15, window_bounds = array<i64: 1, 32>}, {pipeline_mode = #tpu.pipeline_mode<synchronous>, transform_indices = @transform_16, window_bounds = array<i64: 1, 32>}, {pipeline_mode = #tpu.pipeline_mode<synchronous>, transform_indices = @transform_17, window_bounds = array<i64: 32, 4>}, {pipeline_mode = #tpu.pipeline_mode<synchronous>, transform_indices = @transform_18, window_bounds = array<i64: 4, 32>}, {transform_indices = @transform_19, window_bounds = array<i64: 1, 16, 32>}, {transform_indices = @transform_20, window_bounds = array<i64: 1, 8, 32>}]} {
    %c0 = arith.constant 0 : index
    %c0_0 = arith.constant 0 : index
    %c0_1 = arith.constant 0 : index
    %0 = vector.load %arg1[%c0, %c0_0, %c0_1] : memref<1x16x32xf32, #tpu.memory_space<vmem>>, vector<1x16x32xf32>
    %1 = vector.shape_cast %0 : vector<1x16x32xf32> to vector<16x32xf32>
    %c0_2 = arith.constant 0 : index
    %c0_3 = arith.constant 0 : index
    %c0_4 = arith.constant 0 : index
    %2 = vector.load %arg2[%c0_2, %c0_3, %c0_4] : memref<1x8x32xf32, #tpu.memory_space<vmem>>, vector<1x8x32xf32>
    %3 = vector.shape_cast %2 : vector<1x8x32xf32> to vector<8x32xf32>
    %c0_5 = arith.constant 0 : index
    %c0_6 = arith.constant 0 : index
    %4 = vector.load %arg9[%c0_5, %c0_6] : memref<1x32xf32, #tpu.memory_space<vmem>>, vector<1x32xf32>
    %c0_7 = arith.constant 0 : index
    %c0_8 = arith.constant 0 : index
    %5 = vector.load %arg10[%c0_7, %c0_8] : memref<1x32xf32, #tpu.memory_space<vmem>>, vector<1x32xf32>
    %cst = arith.constant dense<0.000000e+00> : vector<16xf32>
    %6 = vector.multi_reduction <add>, %1, %cst [1] : vector<16x32xf32> to vector<16xf32>
    %7 = vector.shape_cast %6 : vector<16xf32> to vector<16x1xf32>
    %cst_9 = arith.constant 3.200000e+01 : f32
    %8 = vector.broadcast %cst_9 : f32 to vector<16x1xf32>
    %9 = arith.divf %7, %8 : vector<16x1xf32>
    %10 = vector.broadcast %9 : vector<16x1xf32> to vector<16x32xf32>
    %11 = arith.subf %1, %10 : vector<16x32xf32>
    %12 = arith.mulf %11, %11 : vector<16x32xf32>
    %cst_10 = arith.constant dense<0.000000e+00> : vector<16xf32>
    %13 = vector.multi_reduction <add>, %12, %cst_10 [1] : vector<16x32xf32> to vector<16xf32>
    %14 = vector.shape_cast %13 : vector<16xf32> to vector<16x1xf32>
    %cst_11 = arith.constant 3.200000e+01 : f32
    %15 = vector.broadcast %cst_11 : f32 to vector<16x1xf32>
    %16 = arith.divf %14, %15 : vector<16x1xf32>
    %17 = vector.broadcast %9 : vector<16x1xf32> to vector<16x32xf32>
    %18 = arith.subf %1, %17 : vector<16x32xf32>
    %cst_12 = arith.constant 9.99999974E-6 : f32
    %19 = vector.broadcast %cst_12 : f32 to vector<16x1xf32>
    %20 = arith.addf %16, %19 : vector<16x1xf32>
    %21 = math.rsqrt %20 : vector<16x1xf32>
    %22 = vector.broadcast %21 : vector<16x1xf32> to vector<16x32xf32>
    %23 = arith.mulf %18, %22 : vector<16x32xf32>
    %24 = vector.broadcast %4 : vector<1x32xf32> to vector<16x32xf32>
    %25 = arith.mulf %23, %24 : vector<16x32xf32>
    %26 = vector.broadcast %5 : vector<1x32xf32> to vector<16x32xf32>
    %27 = arith.addf %25, %26 : vector<16x32xf32>
    %c0_13 = arith.constant 0 : index
    %c0_14 = arith.constant 0 : index
    %c0_15 = arith.constant 0 : index
    %28 = vector.load %arg4[%c0_13, %c0_14, %c0_15] : memref<1x1x32xf32, #tpu.memory_space<vmem>>, vector<1x1x32xf32>
    %29 = vector.shape_cast %28 : vector<1x1x32xf32> to vector<1x32xf32>
    %cst_16 = arith.constant 1.000000e+00 : f32
    %30 = vector.broadcast %cst_16 : f32 to vector<1x32xf32>
    %31 = arith.addf %30, %29 : vector<1x32xf32>
    %32 = vector.broadcast %31 : vector<1x32xf32> to vector<16x32xf32>
    %33 = arith.mulf %27, %32 : vector<16x32xf32>
    %c0_17 = arith.constant 0 : index
    %c0_18 = arith.constant 0 : index
    %c0_19 = arith.constant 0 : index
    %34 = vector.load %arg3[%c0_17, %c0_18, %c0_19] : memref<1x1x32xf32, #tpu.memory_space<vmem>>, vector<1x1x32xf32>
    %35 = vector.shape_cast %34 : vector<1x1x32xf32> to vector<1x32xf32>
    %36 = vector.broadcast %35 : vector<1x32xf32> to vector<16x32xf32>
    %37 = arith.addf %33, %36 : vector<16x32xf32>
    %cst_20 = arith.constant dense<0.000000e+00> : vector<8xf32>
    %38 = vector.multi_reduction <add>, %3, %cst_20 [1] : vector<8x32xf32> to vector<8xf32>
    %39 = vector.shape_cast %38 : vector<8xf32> to vector<8x1xf32>
    %cst_21 = arith.constant 3.200000e+01 : f32
    %40 = vector.broadcast %cst_21 : f32 to vector<8x1xf32>
    %41 = arith.divf %39, %40 : vector<8x1xf32>
    %42 = vector.broadcast %41 : vector<8x1xf32> to vector<8x32xf32>
    %43 = arith.subf %3, %42 : vector<8x32xf32>
    %44 = arith.mulf %43, %43 : vector<8x32xf32>
    %cst_22 = arith.constant dense<0.000000e+00> : vector<8xf32>
    %45 = vector.multi_reduction <add>, %44, %cst_22 [1] : vector<8x32xf32> to vector<8xf32>
    %46 = vector.shape_cast %45 : vector<8xf32> to vector<8x1xf32>
    %cst_23 = arith.constant 3.200000e+01 : f32
    %47 = vector.broadcast %cst_23 : f32 to vector<8x1xf32>
    %48 = arith.divf %46, %47 : vector<8x1xf32>
    %49 = vector.broadcast %41 : vector<8x1xf32> to vector<8x32xf32>
    %50 = arith.subf %3, %49 : vector<8x32xf32>
    %cst_24 = arith.constant 9.99999974E-6 : f32
    %51 = vector.broadcast %cst_24 : f32 to vector<8x1xf32>
    %52 = arith.addf %48, %51 : vector<8x1xf32>
    %53 = math.rsqrt %52 : vector<8x1xf32>
    %54 = vector.broadcast %53 : vector<8x1xf32> to vector<8x32xf32>
    %55 = arith.mulf %50, %54 : vector<8x32xf32>
    %56 = vector.broadcast %4 : vector<1x32xf32> to vector<8x32xf32>
    %57 = arith.mulf %55, %56 : vector<8x32xf32>
    %58 = vector.broadcast %5 : vector<1x32xf32> to vector<8x32xf32>
    %59 = arith.addf %57, %58 : vector<8x32xf32>
    %c0_25 = arith.constant 0 : index
    %c0_26 = arith.constant 0 : index
    %c0_27 = arith.constant 0 : index
    %60 = vector.load %arg7[%c0_25, %c0_26, %c0_27] : memref<1x1x32xf32, #tpu.memory_space<vmem>>, vector<1x1x32xf32>
    %61 = vector.shape_cast %60 : vector<1x1x32xf32> to vector<1x32xf32>
    %cst_28 = arith.constant 1.000000e+00 : f32
    %62 = vector.broadcast %cst_28 : f32 to vector<1x32xf32>
    %63 = arith.addf %62, %61 : vector<1x32xf32>
    %64 = vector.broadcast %63 : vector<1x32xf32> to vector<8x32xf32>
    %65 = arith.mulf %59, %64 : vector<8x32xf32>
    %c0_29 = arith.constant 0 : index
    %c0_30 = arith.constant 0 : index
    %c0_31 = arith.constant 0 : index
    %66 = vector.load %arg6[%c0_29, %c0_30, %c0_31] : memref<1x1x32xf32, #tpu.memory_space<vmem>>, vector<1x1x32xf32>
    %67 = vector.shape_cast %66 : vector<1x1x32xf32> to vector<1x32xf32>
    %68 = vector.broadcast %67 : vector<1x32xf32> to vector<8x32xf32>
    %69 = arith.addf %65, %68 : vector<8x32xf32>
    %70 = tpu.concatenate %69, %37 in 0 : vector<8x32xf32>, vector<16x32xf32> -> vector<24x32xf32>
    %71 = arith.truncf %70 : vector<24x32xf32> to vector<24x32xbf16>
    %c0_32 = arith.constant 0 : index
    %c0_33 = arith.constant 0 : index
    %72 = vector.load %arg11[%c0_32, %c0_33] : memref<32x96xbf16, #tpu.memory_space<vmem>>, vector<32x96xbf16>
    %cst_34 = arith.constant dense<0.000000e+00> : vector<24x96xf32>
    %73 = tpu.matmul %71, %72, %cst_34 {dimension_numbers = #tpu.dot_dimension_numbers<[1], [0], [0], [1], [0, 0, 1, 1], [], []>} : vector<24x32xbf16>, vector<32x96xbf16>, vector<24x96xf32> -> vector<24x96xf32>
    %74 = vector.extract_strided_slice %73 {offsets = [0, 0], sizes = [24, 32], strides = [1, 1]} : vector<24x96xf32> to vector<24x32xf32>
    %75 = vector.extract_strided_slice %73 {offsets = [0, 32], sizes = [24, 32], strides = [1, 1]} : vector<24x96xf32> to vector<24x32xf32>
    %76 = vector.extract_strided_slice %73 {offsets = [0, 64], sizes = [24, 32], strides = [1, 1]} : vector<24x96xf32> to vector<24x32xf32>
    %c0_35 = arith.constant 0 : index
    %c0_36 = arith.constant 0 : index
    %77 = vector.load %arg18[%c0_35, %c0_36] : memref<32x4xf32, #tpu.memory_space<vmem>>, vector<32x4xf32>
    %c0_37 = arith.constant 0 : index
    %c0_38 = arith.constant 0 : index
    %78 = vector.load %arg19[%c0_37, %c0_38] : memref<4x32xf32, #tpu.memory_space<vmem>>, vector<4x32xf32>
    %c0_39 = arith.constant 0 : index
    %c0_40 = arith.constant 0 : index
    %79 = vector.load %arg14[%c0_39, %c0_40] : memref<1x32xf32, #tpu.memory_space<vmem>>, vector<1x32xf32>
    %c0_41 = arith.constant 0 : index
    %c0_42 = arith.constant 0 : index
    %80 = vector.load %arg15[%c0_41, %c0_42] : memref<1x32xf32, #tpu.memory_space<vmem>>, vector<1x32xf32>
    %cst_43 = arith.constant dense<0.000000e+00> : vector<24x4xf32>
    %81 = tpu.matmul %74, %77, %cst_43 {dimension_numbers = #tpu.dot_dimension_numbers<[1], [0], [0], [1], [0, 0, 1, 1], [], []>} : vector<24x32xf32>, vector<32x4xf32>, vector<24x4xf32> -> vector<24x4xf32>
    %cst_44 = arith.constant 1.250000e-01 : f32
    %82 = vector.broadcast %cst_44 : f32 to vector<24x4xf32>
    %83 = arith.mulf %81, %82 : vector<24x4xf32>
    %84 = arith.mulf %74, %74 : vector<24x32xf32>
    %cst_45 = arith.constant dense<0.000000e+00> : vector<24x4xf32>
    %85 = tpu.matmul %84, %77, %cst_45 {dimension_numbers = #tpu.dot_dimension_numbers<[1], [0], [0], [1], [0, 0, 1, 1], [], []>} : vector<24x32xf32>, vector<32x4xf32>, vector<24x4xf32> -> vector<24x4xf32>
    %cst_46 = arith.constant 1.250000e-01 : f32
    %86 = vector.broadcast %cst_46 : f32 to vector<24x4xf32>
    %87 = arith.mulf %85, %86 : vector<24x4xf32>
    %cst_47 = arith.constant dense<0.000000e+00> : vector<24x32xf32>
    %88 = tpu.matmul %83, %78, %cst_47 {dimension_numbers = #tpu.dot_dimension_numbers<[1], [0], [0], [1], [0, 0, 1, 1], [], []>} : vector<24x4xf32>, vector<4x32xf32>, vector<24x32xf32> -> vector<24x32xf32>
    %cst_48 = arith.constant dense<0.000000e+00> : vector<24x32xf32>
    %89 = tpu.matmul %87, %78, %cst_48 {dimension_numbers = #tpu.dot_dimension_numbers<[1], [0], [0], [1], [0, 0, 1, 1], [], []>} : vector<24x4xf32>, vector<4x32xf32>, vector<24x32xf32> -> vector<24x32xf32>
    %90 = arith.mulf %88, %88 : vector<24x32xf32>
    %91 = arith.subf %89, %90 : vector<24x32xf32>
    %92 = arith.subf %74, %88 : vector<24x32xf32>
    %cst_49 = arith.constant 9.99999997E-7 : f32
    %93 = vector.broadcast %cst_49 : f32 to vector<24x32xf32>
    %94 = arith.addf %91, %93 : vector<24x32xf32>
    %95 = math.rsqrt %94 : vector<24x32xf32>
    %96 = arith.mulf %92, %95 : vector<24x32xf32>
    %97 = vector.broadcast %79 : vector<1x32xf32> to vector<24x32xf32>
    %98 = arith.mulf %96, %97 : vector<24x32xf32>
    %99 = vector.broadcast %80 : vector<1x32xf32> to vector<24x32xf32>
    %100 = arith.addf %98, %99 : vector<24x32xf32>
    %c0_50 = arith.constant 0 : index
    %c0_51 = arith.constant 0 : index
    %101 = vector.load %arg16[%c0_50, %c0_51] : memref<1x32xf32, #tpu.memory_space<vmem>>, vector<1x32xf32>
    %c0_52 = arith.constant 0 : index
    %c0_53 = arith.constant 0 : index
    %102 = vector.load %arg17[%c0_52, %c0_53] : memref<1x32xf32, #tpu.memory_space<vmem>>, vector<1x32xf32>
    %cst_54 = arith.constant dense<0.000000e+00> : vector<24x4xf32>
    %103 = tpu.matmul %75, %77, %cst_54 {dimension_numbers = #tpu.dot_dimension_numbers<[1], [0], [0], [1], [0, 0, 1, 1], [], []>} : vector<24x32xf32>, vector<32x4xf32>, vector<24x4xf32> -> vector<24x4xf32>
    %cst_55 = arith.constant 1.250000e-01 : f32
    %104 = vector.broadcast %cst_55 : f32 to vector<24x4xf32>
    %105 = arith.mulf %103, %104 : vector<24x4xf32>
    %106 = arith.mulf %75, %75 : vector<24x32xf32>
    %cst_56 = arith.constant dense<0.000000e+00> : vector<24x4xf32>
    %107 = tpu.matmul %106, %77, %cst_56 {dimension_numbers = #tpu.dot_dimension_numbers<[1], [0], [0], [1], [0, 0, 1, 1], [], []>} : vector<24x32xf32>, vector<32x4xf32>, vector<24x4xf32> -> vector<24x4xf32>
    %cst_57 = arith.constant 1.250000e-01 : f32
    %108 = vector.broadcast %cst_57 : f32 to vector<24x4xf32>
    %109 = arith.mulf %107, %108 : vector<24x4xf32>
    %cst_58 = arith.constant dense<0.000000e+00> : vector<24x32xf32>
    %110 = tpu.matmul %105, %78, %cst_58 {dimension_numbers = #tpu.dot_dimension_numbers<[1], [0], [0], [1], [0, 0, 1, 1], [], []>} : vector<24x4xf32>, vector<4x32xf32>, vector<24x32xf32> -> vector<24x32xf32>
    %cst_59 = arith.constant dense<0.000000e+00> : vector<24x32xf32>
    %111 = tpu.matmul %109, %78, %cst_59 {dimension_numbers = #tpu.dot_dimension_numbers<[1], [0], [0], [1], [0, 0, 1, 1], [], []>} : vector<24x4xf32>, vector<4x32xf32>, vector<24x32xf32> -> vector<24x32xf32>
    %112 = arith.mulf %110, %110 : vector<24x32xf32>
    %113 = arith.subf %111, %112 : vector<24x32xf32>
    %114 = arith.subf %75, %110 : vector<24x32xf32>
    %cst_60 = arith.constant 9.99999997E-7 : f32
    %115 = vector.broadcast %cst_60 : f32 to vector<24x32xf32>
    %116 = arith.addf %113, %115 : vector<24x32xf32>
    %117 = math.rsqrt %116 : vector<24x32xf32>
    %118 = arith.mulf %114, %117 : vector<24x32xf32>
    %119 = vector.broadcast %101 : vector<1x32xf32> to vector<24x32xf32>
    %120 = arith.mulf %118, %119 : vector<24x32xf32>
    %121 = vector.broadcast %102 : vector<1x32xf32> to vector<24x32xf32>
    %122 = arith.addf %120, %121 : vector<24x32xf32>
    %123 = vector.extract_strided_slice %100 {offsets = [0, 0], sizes = [24, 8], strides = [1, 1]} : vector<24x32xf32> to vector<24x8xf32>
    %124 = vector.extract_strided_slice %100 {offsets = [0, 8], sizes = [24, 8], strides = [1, 1]} : vector<24x32xf32> to vector<24x8xf32>
    %125 = vector.extract_strided_slice %100 {offsets = [0, 16], sizes = [24, 8], strides = [1, 1]} : vector<24x32xf32> to vector<24x8xf32>
    %126 = vector.extract_strided_slice %100 {offsets = [0, 24], sizes = [24, 8], strides = [1, 1]} : vector<24x32xf32> to vector<24x8xf32>
    %127 = vector.shape_cast %123 : vector<24x8xf32> to vector<1x24x8xf32>
    %128 = vector.shape_cast %124 : vector<24x8xf32> to vector<1x24x8xf32>
    %129 = vector.shape_cast %125 : vector<24x8xf32> to vector<1x24x8xf32>
    %130 = vector.shape_cast %126 : vector<24x8xf32> to vector<1x24x8xf32>
    %131 = tpu.concatenate %127, %128, %129, %130 in 0 : vector<1x24x8xf32>, vector<1x24x8xf32>, vector<1x24x8xf32>, vector<1x24x8xf32> -> vector<4x24x8xf32>
    %132 = arith.truncf %131 : vector<4x24x8xf32> to vector<4x24x8xbf16>
    %133 = vector.extract_strided_slice %122 {offsets = [0, 0], sizes = [24, 8], strides = [1, 1]} : vector<24x32xf32> to vector<24x8xf32>
    %134 = vector.extract_strided_slice %122 {offsets = [0, 8], sizes = [24, 8], strides = [1, 1]} : vector<24x32xf32> to vector<24x8xf32>
    %135 = vector.extract_strided_slice %122 {offsets = [0, 16], sizes = [24, 8], strides = [1, 1]} : vector<24x32xf32> to vector<24x8xf32>
    %136 = vector.extract_strided_slice %122 {offsets = [0, 24], sizes = [24, 8], strides = [1, 1]} : vector<24x32xf32> to vector<24x8xf32>
    %137 = vector.shape_cast %133 : vector<24x8xf32> to vector<1x24x8xf32>
    %138 = vector.shape_cast %134 : vector<24x8xf32> to vector<1x24x8xf32>
    %139 = vector.shape_cast %135 : vector<24x8xf32> to vector<1x24x8xf32>
    %140 = vector.shape_cast %136 : vector<24x8xf32> to vector<1x24x8xf32>
    %141 = tpu.concatenate %137, %138, %139, %140 in 0 : vector<1x24x8xf32>, vector<1x24x8xf32>, vector<1x24x8xf32>, vector<1x24x8xf32> -> vector<4x24x8xf32>
    %142 = arith.truncf %141 : vector<4x24x8xf32> to vector<4x24x8xbf16>
    %143 = vector.extract_strided_slice %76 {offsets = [0, 0], sizes = [24, 8], strides = [1, 1]} : vector<24x32xf32> to vector<24x8xf32>
    %144 = vector.extract_strided_slice %76 {offsets = [0, 8], sizes = [24, 8], strides = [1, 1]} : vector<24x32xf32> to vector<24x8xf32>
    %145 = vector.extract_strided_slice %76 {offsets = [0, 16], sizes = [24, 8], strides = [1, 1]} : vector<24x32xf32> to vector<24x8xf32>
    %146 = vector.extract_strided_slice %76 {offsets = [0, 24], sizes = [24, 8], strides = [1, 1]} : vector<24x32xf32> to vector<24x8xf32>
    %147 = vector.shape_cast %143 : vector<24x8xf32> to vector<1x24x8xf32>
    %148 = vector.shape_cast %144 : vector<24x8xf32> to vector<1x24x8xf32>
    %149 = vector.shape_cast %145 : vector<24x8xf32> to vector<1x24x8xf32>
    %150 = vector.shape_cast %146 : vector<24x8xf32> to vector<1x24x8xf32>
    %151 = tpu.concatenate %147, %148, %149, %150 in 0 : vector<1x24x8xf32>, vector<1x24x8xf32>, vector<1x24x8xf32>, vector<1x24x8xf32> -> vector<4x24x8xf32>
    %152 = arith.truncf %151 : vector<4x24x8xf32> to vector<4x24x8xbf16>
    "tpu.trace_start"() <{level = 10 : i32, message = "hqd,hkd->hqk"}> : () -> ()
    %cst_61 = arith.constant dense<0.000000e+00> : vector<4x24x24xf32>
    %153 = tpu.matmul %132, %142, %cst_61 {dimension_numbers = #tpu.dot_dimension_numbers<[2], [2], [1], [1], [0, 0, 0, 1, 1, 1], [0], [0]>} : vector<4x24x8xbf16>, vector<4x24x8xbf16>, vector<4x24x24xf32> -> vector<4x24x24xf32>
    "tpu.trace_stop"() : () -> ()
    %cst_62 = arith.constant 0.353553385 : f32
    %154 = vector.broadcast %cst_62 : f32 to vector<4x24x24xf32>
    %155 = arith.mulf %153, %154 : vector<4x24x24xf32>
    %cst_63 = arith.constant dense<0xFF800000> : vector<4x24xf32>
    %156 = vector.multi_reduction <maximumf>, %155, %cst_63 [2] : vector<4x24x24xf32> to vector<4x24xf32>
    %157 = vector.shape_cast %156 : vector<4x24xf32> to vector<4x24x1xf32>
    %158 = vector.broadcast %157 : vector<4x24x1xf32> to vector<4x24x24xf32>
    %159 = arith.subf %155, %158 : vector<4x24x24xf32>
    %160 = math.exp %159 : vector<4x24x24xf32>
    %cst_64 = arith.constant dense<0.000000e+00> : vector<4x24xf32>
    %161 = vector.multi_reduction <add>, %160, %cst_64 [2] : vector<4x24x24xf32> to vector<4x24xf32>
    %162 = vector.shape_cast %161 : vector<4x24xf32> to vector<4x24x1xf32>
    %163 = tpu.reciprocal %162 {approx = true} : vector<4x24x1xf32> -> vector<4x24x1xf32>
    %164 = vector.broadcast %163 : vector<4x24x1xf32> to vector<4x24x24xf32>
    %165 = arith.mulf %160, %164 : vector<4x24x24xf32>
    %166 = arith.truncf %165 : vector<4x24x24xf32> to vector<4x24x24xbf16>
    "tpu.trace_start"() <{level = 10 : i32, message = "hqk,hkd->hqd"}> : () -> ()
    %cst_65 = arith.constant dense<0.000000e+00> : vector<4x24x8xf32>
    %167 = tpu.matmul %166, %152, %cst_65 {dimension_numbers = #tpu.dot_dimension_numbers<[2], [1], [1], [2], [0, 0, 0, 1, 1, 2], [0], [0]>} : vector<4x24x24xbf16>, vector<4x24x8xbf16>, vector<4x24x8xf32> -> vector<4x24x8xf32>
    "tpu.trace_stop"() : () -> ()
    %168 = vector.extract_strided_slice %167 {offsets = [0, 0, 0], sizes = [1, 24, 8], strides = [1, 1, 1]} : vector<4x24x8xf32> to vector<1x24x8xf32>
    %169 = vector.shape_cast %168 : vector<1x24x8xf32> to vector<24x8xf32>
    %170 = vector.extract_strided_slice %167 {offsets = [1, 0, 0], sizes = [1, 24, 8], strides = [1, 1, 1]} : vector<4x24x8xf32> to vector<1x24x8xf32>
    %171 = vector.shape_cast %170 : vector<1x24x8xf32> to vector<24x8xf32>
    %172 = vector.extract_strided_slice %167 {offsets = [2, 0, 0], sizes = [1, 24, 8], strides = [1, 1, 1]} : vector<4x24x8xf32> to vector<1x24x8xf32>
    %173 = vector.shape_cast %172 : vector<1x24x8xf32> to vector<24x8xf32>
    %174 = vector.extract_strided_slice %167 {offsets = [3, 0, 0], sizes = [1, 24, 8], strides = [1, 1, 1]} : vector<4x24x8xf32> to vector<1x24x8xf32>
    %175 = vector.shape_cast %174 : vector<1x24x8xf32> to vector<24x8xf32>
    %176 = tpu.concatenate %169, %171, %173, %175 in 1 : vector<24x8xf32>, vector<24x8xf32>, vector<24x8xf32>, vector<24x8xf32> -> vector<24x32xf32>
    %177 = arith.truncf %176 : vector<24x32xf32> to vector<24x32xbf16>
    %c0_66 = arith.constant 0 : index
    %c0_67 = arith.constant 0 : index
    %178 = vector.load %arg12[%c0_66, %c0_67] : memref<32x32xbf16, #tpu.memory_space<vmem>>, vector<32x32xbf16>
    %cst_68 = arith.constant dense<0.000000e+00> : vector<24x32xf32>
    %179 = tpu.matmul %177, %178, %cst_68 {dimension_numbers = #tpu.dot_dimension_numbers<[1], [0], [0], [1], [0, 0, 1, 1], [], []>} : vector<24x32xbf16>, vector<32x32xbf16>, vector<24x32xf32> -> vector<24x32xf32>
    %c0_69 = arith.constant 0 : index
    %c0_70 = arith.constant 0 : index
    %180 = vector.load %arg13[%c0_69, %c0_70] : memref<1x32xf32, #tpu.memory_space<vmem>>, vector<1x32xf32>
    %181 = vector.broadcast %180 : vector<1x32xf32> to vector<24x32xf32>
    %182 = arith.addf %179, %181 : vector<24x32xf32>
    %c0_71 = arith.constant 0 : index
    %c0_72 = arith.constant 0 : index
    %c0_73 = arith.constant 0 : index
    %183 = vector.load %arg8[%c0_71, %c0_72, %c0_73] : memref<1x1x32xf32, #tpu.memory_space<vmem>>, vector<1x1x32xf32>
    %184 = vector.shape_cast %183 : vector<1x1x32xf32> to vector<1x32xf32>
    %185 = vector.extract_strided_slice %182 {offsets = [0, 0], sizes = [8, 32], strides = [1, 1]} : vector<24x32xf32> to vector<8x32xf32>
    %186 = vector.broadcast %184 : vector<1x32xf32> to vector<8x32xf32>
    %187 = arith.mulf %186, %185 : vector<8x32xf32>
    %188 = arith.addf %3, %187 : vector<8x32xf32>
    %c0_74 = arith.constant 0 : index
    %c0_75 = arith.constant 0 : index
    %c0_76 = arith.constant 0 : index
    %189 = vector.load %arg21[%c0_74, %c0_75, %c0_76] : memref<1x8x32xf32, #tpu.memory_space<vmem>>, vector<1x8x32xf32>
    %190 = vector.shape_cast %189 : vector<1x8x32xf32> to vector<8x32xf32>
    %191 = vector.shape_cast %188 : vector<8x32xf32> to vector<1x8x32xf32>
    tpu.vector_store %arg21[%c0_74, %c0_75, %c0_76], %191 {strides = array<i32>} : memref<1x8x32xf32, #tpu.memory_space<vmem>>, vector<1x8x32xf32>,
    %c0_77 = arith.constant 0 : index
    %c0_78 = arith.constant 0 : index
    %c0_79 = arith.constant 0 : index
    %192 = vector.load %arg5[%c0_77, %c0_78, %c0_79] : memref<1x1x32xf32, #tpu.memory_space<vmem>>, vector<1x1x32xf32>
    %193 = vector.shape_cast %192 : vector<1x1x32xf32> to vector<1x32xf32>
    %194 = vector.extract_strided_slice %182 {offsets = [8, 0], sizes = [16, 32], strides = [1, 1]} : vector<24x32xf32> to vector<16x32xf32>
    %195 = vector.broadcast %193 : vector<1x32xf32> to vector<16x32xf32>
    %196 = arith.mulf %195, %194 : vector<16x32xf32>
    %197 = arith.addf %1, %196 : vector<16x32xf32>
    %c0_80 = arith.constant 0 : index
    %c0_81 = arith.constant 0 : index
    %c0_82 = arith.constant 0 : index
    %198 = vector.load %arg20[%c0_80, %c0_81, %c0_82] : memref<1x16x32xf32, #tpu.memory_space<vmem>>, vector<1x16x32xf32>
    %199 = vector.shape_cast %198 : vector<1x16x32xf32> to vector<16x32xf32>
    %200 = vector.shape_cast %197 : vector<16x32xf32> to vector<1x16x32xf32>
    tpu.vector_store %arg20[%c0_80, %c0_81, %c0_82], %200 {strides = array<i32>} : memref<1x16x32xf32, #tpu.memory_space<vmem>>, vector<1x16x32xf32>,
    return
  }
  func.func @transform_0(%arg0: i32) -> (i32, i32, i32) {
    %c0_i32 = arith.constant 0 : i32
    %c0_i32_0 = arith.constant 0 : i32
    %c0_i32_1 = arith.constant 0 : i32
    return %arg0, %c0_i32, %c0_i32_0 : i32, i32, i32
  }
  func.func @transform_1(%arg0: i32) -> (i32, i32, i32) {
    %c0_i32 = arith.constant 0 : i32
    %c0_i32_0 = arith.constant 0 : i32
    %c0_i32_1 = arith.constant 0 : i32
    return %arg0, %c0_i32, %c0_i32_0 : i32, i32, i32
  }
  func.func @transform_2(%arg0: i32) -> (i32, i32, i32) {
    %c0_i32 = arith.constant 0 : i32
    %c0_i32_0 = arith.constant 0 : i32
    %c0_i32_1 = arith.constant 0 : i32
    return %arg0, %c0_i32, %c0_i32_0 : i32, i32, i32
  }
  func.func @transform_3(%arg0: i32) -> (i32, i32, i32) {
    %c0_i32 = arith.constant 0 : i32
    %c0_i32_0 = arith.constant 0 : i32
    %c0_i32_1 = arith.constant 0 : i32
    return %arg0, %c0_i32, %c0_i32_0 : i32, i32, i32
  }
  func.func @transform_4(%arg0: i32) -> (i32, i32, i32) {
    %c0_i32 = arith.constant 0 : i32
    %c0_i32_0 = arith.constant 0 : i32
    %c0_i32_1 = arith.constant 0 : i32
    return %arg0, %c0_i32, %c0_i32_0 : i32, i32, i32
  }
  func.func @transform_5(%arg0: i32) -> (i32, i32, i32) {
    %c0_i32 = arith.constant 0 : i32
    %c0_i32_0 = arith.constant 0 : i32
    %c0_i32_1 = arith.constant 0 : i32
    return %arg0, %c0_i32, %c0_i32_0 : i32, i32, i32
  }
  func.func @transform_6(%arg0: i32) -> (i32, i32, i32) {
    %c0_i32 = arith.constant 0 : i32
    %c0_i32_0 = arith.constant 0 : i32
    %c0_i32_1 = arith.constant 0 : i32
    return %arg0, %c0_i32, %c0_i32_0 : i32, i32, i32
  }
  func.func @transform_7(%arg0: i32) -> (i32, i32, i32) {
    %c0_i32 = arith.constant 0 : i32
    %c0_i32_0 = arith.constant 0 : i32
    %c0_i32_1 = arith.constant 0 : i32
    return %arg0, %c0_i32, %c0_i32_0 : i32, i32, i32
  }
  func.func @transform_8(%arg0: i32) -> (i32, i32) {
    %c0_i32 = arith.constant 0 : i32
    %c0_i32_0 = arith.constant 0 : i32
    %c0_i32_1 = arith.constant 0 : i32
    return %c0_i32, %c0_i32_0 : i32, i32
  }
  func.func @transform_9(%arg0: i32) -> (i32, i32) {
    %c0_i32 = arith.constant 0 : i32
    %c0_i32_0 = arith.constant 0 : i32
    %c0_i32_1 = arith.constant 0 : i32
    return %c0_i32, %c0_i32_0 : i32, i32
  }
  func.func @transform_10(%arg0: i32) -> (i32, i32) {
    %c0_i32 = arith.constant 0 : i32
    %c0_i32_0 = arith.constant 0 : i32
    %c0_i32_1 = arith.constant 0 : i32
    return %c0_i32, %c0_i32_0 : i32, i32
  }
  func.func @transform_11(%arg0: i32) -> (i32, i32) {
    %c0_i32 = arith.constant 0 : i32
    %c0_i32_0 = arith.constant 0 : i32
    %c0_i32_1 = arith.constant 0 : i32
    return %c0_i32, %c0_i32_0 : i32, i32
  }
  func.func @transform_12(%arg0: i32) -> (i32, i32) {
    %c0_i32 = arith.constant 0 : i32
    %c0_i32_0 = arith.constant 0 : i32
    %c0_i32_1 = arith.constant 0 : i32
    return %c0_i32, %c0_i32_0 : i32, i32
  }
  func.func @transform_13(%arg0: i32) -> (i32, i32) {
    %c0_i32 = arith.constant 0 : i32
    %c0_i32_0 = arith.constant 0 : i32
    %c0_i32_1 = arith.constant 0 : i32
    return %c0_i32, %c0_i32_0 : i32, i32
  }
  func.func @transform_14(%arg0: i32) -> (i32, i32) {
    %c0_i32 = arith.constant 0 : i32
    %c0_i32_0 = arith.constant 0 : i32
    %c0_i32_1 = arith.constant 0 : i32
    return %c0_i32, %c0_i32_0 : i32, i32
  }
  func.func @transform_15(%arg0: i32) -> (i32, i32) {
    %c0_i32 = arith.constant 0 : i32
    %c0_i32_0 = arith.constant 0 : i32
    %c0_i32_1 = arith.constant 0 : i32
    return %c0_i32, %c0_i32_0 : i32, i32
  }
  func.func @transform_16(%arg0: i32) -> (i32, i32) {
    %c0_i32 = arith.constant 0 : i32
    %c0_i32_0 = arith.constant 0 : i32
    %c0_i32_1 = arith.constant 0 : i32
    return %c0_i32, %c0_i32_0 : i32, i32
  }
  func.func @transform_17(%arg0: i32) -> (i32, i32) {
    %c0_i32 = arith.constant 0 : i32
    %c0_i32_0 = arith.constant 0 : i32
    %c0_i32_1 = arith.constant 0 : i32
    return %c0_i32, %c0_i32_0 : i32, i32
  }
  func.func @transform_18(%arg0: i32) -> (i32, i32) {
    %c0_i32 = arith.constant 0 : i32
    %c0_i32_0 = arith.constant 0 : i32
    %c0_i32_1 = arith.constant 0 : i32
    return %c0_i32, %c0_i32_0 : i32, i32
  }
  func.func @transform_19(%arg0: i32) -> (i32, i32, i32) {
    %c0_i32 = arith.constant 0 : i32
    %c0_i32_0 = arith.constant 0 : i32
    %c0_i32_1 = arith.constant 0 : i32
    return %arg0, %c0_i32, %c0_i32_0 : i32, i32, i32
  }
  func.func @transform_20(%arg0: i32) -> (i32, i32, i32) {
    %c0_i32 = arith.constant 0 : i32
    %c0_i32_0 = arith.constant 0 : i32
    %c0_i32_1 = arith.constant 0 : i32
    return %arg0, %c0_i32, %c0_i32_0 : i32, i32, i32
  }
}

module attributes {stable_mosaic.version = 11 : i64} {
  func.func @_ffn_block_kernel(%arg0: i32, %arg1: i32, %arg2: memref<1x8x32xf32, #tpu.memory_space<vmem>>, %arg3: memref<1x1x32xf32, #tpu.memory_space<vmem>>, %arg4: memref<1x1x32xf32, #tpu.memory_space<vmem>>, %arg5: memref<1x1x32xf32, #tpu.memory_space<vmem>>, %arg6: memref<1x32xf32, #tpu.memory_space<vmem>>, %arg7: memref<1x32xf32, #tpu.memory_space<vmem>>, %arg8: memref<32x128xbf16, #tpu.memory_space<vmem>>, %arg9: memref<1x128xf32, #tpu.memory_space<vmem>>, %arg10: memref<128x32xbf16, #tpu.memory_space<vmem>>, %arg11: memref<1x32xf32, #tpu.memory_space<vmem>>, %arg12: memref<1x8x32xf32, #tpu.memory_space<vmem>>) attributes {dimension_semantics = [#tpu.dimension_semantics<parallel>, #tpu.dimension_semantics<parallel>], iteration_bounds = array<i64: 2, 1>, scalar_prefetch = 0 : i64, scratch_operands = 0 : i64, tpu.core_type = #tpu.core_type<tc>, window_params = [{transform_indices = @transform_0, window_bounds = array<i64: 1, 8, 32>}, {transform_indices = @transform_1, window_bounds = array<i64: 1, 1, 32>}, {transform_indices = @transform_2, window_bounds = array<i64: 1, 1, 32>}, {transform_indices = @transform_3, window_bounds = array<i64: 1, 1, 32>}, {pipeline_mode = #tpu.pipeline_mode<synchronous>, transform_indices = @transform_4, window_bounds = array<i64: 1, 32>}, {pipeline_mode = #tpu.pipeline_mode<synchronous>, transform_indices = @transform_5, window_bounds = array<i64: 1, 32>}, {pipeline_mode = #tpu.pipeline_mode<synchronous>, transform_indices = @transform_6, window_bounds = array<i64: 32, 128>}, {pipeline_mode = #tpu.pipeline_mode<synchronous>, transform_indices = @transform_7, window_bounds = array<i64: 1, 128>}, {pipeline_mode = #tpu.pipeline_mode<synchronous>, transform_indices = @transform_8, window_bounds = array<i64: 128, 32>}, {pipeline_mode = #tpu.pipeline_mode<synchronous>, transform_indices = @transform_9, window_bounds = array<i64: 1, 32>}, {transform_indices = @transform_10, window_bounds = array<i64: 1, 8, 32>}]} {
    %c0 = arith.constant 0 : index
    %c0_0 = arith.constant 0 : index
    %c0_1 = arith.constant 0 : index
    %0 = vector.load %arg2[%c0, %c0_0, %c0_1] : memref<1x8x32xf32, #tpu.memory_space<vmem>>, vector<1x8x32xf32>
    %1 = vector.shape_cast %0 : vector<1x8x32xf32> to vector<8x32xf32>
    %c0_2 = arith.constant 0 : index
    %c0_3 = arith.constant 0 : index
    %2 = vector.load %arg6[%c0_2, %c0_3] : memref<1x32xf32, #tpu.memory_space<vmem>>, vector<1x32xf32>
    %c0_4 = arith.constant 0 : index
    %c0_5 = arith.constant 0 : index
    %3 = vector.load %arg7[%c0_4, %c0_5] : memref<1x32xf32, #tpu.memory_space<vmem>>, vector<1x32xf32>
    %cst = arith.constant dense<0.000000e+00> : vector<8xf32>
    %4 = vector.multi_reduction <add>, %1, %cst [1] : vector<8x32xf32> to vector<8xf32>
    %5 = vector.shape_cast %4 : vector<8xf32> to vector<8x1xf32>
    %cst_6 = arith.constant 3.200000e+01 : f32
    %6 = vector.broadcast %cst_6 : f32 to vector<8x1xf32>
    %7 = arith.divf %5, %6 : vector<8x1xf32>
    %8 = vector.broadcast %7 : vector<8x1xf32> to vector<8x32xf32>
    %9 = arith.subf %1, %8 : vector<8x32xf32>
    %10 = arith.mulf %9, %9 : vector<8x32xf32>
    %cst_7 = arith.constant dense<0.000000e+00> : vector<8xf32>
    %11 = vector.multi_reduction <add>, %10, %cst_7 [1] : vector<8x32xf32> to vector<8xf32>
    %12 = vector.shape_cast %11 : vector<8xf32> to vector<8x1xf32>
    %cst_8 = arith.constant 3.200000e+01 : f32
    %13 = vector.broadcast %cst_8 : f32 to vector<8x1xf32>
    %14 = arith.divf %12, %13 : vector<8x1xf32>
    %15 = vector.broadcast %7 : vector<8x1xf32> to vector<8x32xf32>
    %16 = arith.subf %1, %15 : vector<8x32xf32>
    %cst_9 = arith.constant 9.99999974E-6 : f32
    %17 = vector.broadcast %cst_9 : f32 to vector<8x1xf32>
    %18 = arith.addf %14, %17 : vector<8x1xf32>
    %19 = math.rsqrt %18 : vector<8x1xf32>
    %20 = vector.broadcast %19 : vector<8x1xf32> to vector<8x32xf32>
    %21 = arith.mulf %16, %20 : vector<8x32xf32>
    %22 = vector.broadcast %2 : vector<1x32xf32> to vector<8x32xf32>
    %23 = arith.mulf %21, %22 : vector<8x32xf32>
    %24 = vector.broadcast %3 : vector<1x32xf32> to vector<8x32xf32>
    %25 = arith.addf %23, %24 : vector<8x32xf32>
    %c0_10 = arith.constant 0 : index
    %c0_11 = arith.constant 0 : index
    %c0_12 = arith.constant 0 : index
    %26 = vector.load %arg4[%c0_10, %c0_11, %c0_12] : memref<1x1x32xf32, #tpu.memory_space<vmem>>, vector<1x1x32xf32>
    %27 = vector.shape_cast %26 : vector<1x1x32xf32> to vector<1x32xf32>
    %cst_13 = arith.constant 1.000000e+00 : f32
    %28 = vector.broadcast %cst_13 : f32 to vector<1x32xf32>
    %29 = arith.addf %28, %27 : vector<1x32xf32>
    %30 = vector.broadcast %29 : vector<1x32xf32> to vector<8x32xf32>
    %31 = arith.mulf %25, %30 : vector<8x32xf32>
    %c0_14 = arith.constant 0 : index
    %c0_15 = arith.constant 0 : index
    %c0_16 = arith.constant 0 : index
    %32 = vector.load %arg3[%c0_14, %c0_15, %c0_16] : memref<1x1x32xf32, #tpu.memory_space<vmem>>, vector<1x1x32xf32>
    %33 = vector.shape_cast %32 : vector<1x1x32xf32> to vector<1x32xf32>
    %34 = vector.broadcast %33 : vector<1x32xf32> to vector<8x32xf32>
    %35 = arith.addf %31, %34 : vector<8x32xf32>
    %36 = arith.truncf %35 : vector<8x32xf32> to vector<8x32xbf16>
    %c0_17 = arith.constant 0 : index
    %c0_18 = arith.constant 0 : index
    %37 = vector.load %arg8[%c0_17, %c0_18] : memref<32x128xbf16, #tpu.memory_space<vmem>>, vector<32x128xbf16>
    %cst_19 = arith.constant dense<0.000000e+00> : vector<8x128xf32>
    %38 = tpu.matmul %36, %37, %cst_19 {dimension_numbers = #tpu.dot_dimension_numbers<[1], [0], [0], [1], [0, 0, 1, 1], [], []>} : vector<8x32xbf16>, vector<32x128xbf16>, vector<8x128xf32> -> vector<8x128xf32>
    %c0_20 = arith.constant 0 : index
    %c0_21 = arith.constant 0 : index
    %39 = vector.load %arg9[%c0_20, %c0_21] : memref<1x128xf32, #tpu.memory_space<vmem>>, vector<1x128xf32>
    %40 = vector.broadcast %39 : vector<1x128xf32> to vector<8x128xf32>
    %41 = arith.addf %38, %40 : vector<8x128xf32>
    %cst_22 = arith.constant 5.000000e-01 : f32
    %42 = vector.broadcast %cst_22 : f32 to vector<8x128xf32>
    %43 = arith.mulf %42, %41 : vector<8x128xf32>
    %cst_23 = arith.constant 4.471500e-02 : f32
    %44 = vector.broadcast %cst_23 : f32 to vector<8x128xf32>
    %45 = arith.mulf %44, %41 : vector<8x128xf32>
    %46 = arith.mulf %45, %41 : vector<8x128xf32>
    %47 = arith.mulf %46, %41 : vector<8x128xf32>
    %48 = arith.addf %41, %47 : vector<8x128xf32>
    %cst_24 = arith.constant 0.797884583 : f32
    %49 = vector.broadcast %cst_24 : f32 to vector<8x128xf32>
    %50 = arith.mulf %49, %48 : vector<8x128xf32>
    %51 = math.tanh %50 : vector<8x128xf32>
    %cst_25 = arith.constant 1.000000e+00 : f32
    %52 = vector.broadcast %cst_25 : f32 to vector<8x128xf32>
    %53 = arith.addf %52, %51 : vector<8x128xf32>
    %54 = arith.mulf %43, %53 : vector<8x128xf32>
    %55 = arith.truncf %54 : vector<8x128xf32> to vector<8x128xbf16>
    %c0_26 = arith.constant 0 : index
    %c0_27 = arith.constant 0 : index
    %56 = vector.load %arg10[%c0_26, %c0_27] : memref<128x32xbf16, #tpu.memory_space<vmem>>, vector<128x32xbf16>
    %cst_28 = arith.constant dense<0.000000e+00> : vector<8x32xf32>
    %57 = tpu.matmul %55, %56, %cst_28 {dimension_numbers = #tpu.dot_dimension_numbers<[1], [0], [0], [1], [0, 0, 1, 1], [], []>} : vector<8x128xbf16>, vector<128x32xbf16>, vector<8x32xf32> -> vector<8x32xf32>
    %c0_29 = arith.constant 0 : index
    %c0_30 = arith.constant 0 : index
    %58 = vector.load %arg11[%c0_29, %c0_30] : memref<1x32xf32, #tpu.memory_space<vmem>>, vector<1x32xf32>
    %59 = vector.broadcast %58 : vector<1x32xf32> to vector<8x32xf32>
    %60 = arith.addf %57, %59 : vector<8x32xf32>
    %c0_31 = arith.constant 0 : index
    %c0_32 = arith.constant 0 : index
    %c0_33 = arith.constant 0 : index
    %61 = vector.load %arg5[%c0_31, %c0_32, %c0_33] : memref<1x1x32xf32, #tpu.memory_space<vmem>>, vector<1x1x32xf32>
    %62 = vector.shape_cast %61 : vector<1x1x32xf32> to vector<1x32xf32>
    %63 = vector.broadcast %62 : vector<1x32xf32> to vector<8x32xf32>
    %64 = arith.mulf %63, %60 : vector<8x32xf32>
    %65 = arith.addf %1, %64 : vector<8x32xf32>
    %c0_34 = arith.constant 0 : index
    %c0_35 = arith.constant 0 : index
    %c0_36 = arith.constant 0 : index
    %66 = vector.load %arg12[%c0_34, %c0_35, %c0_36] : memref<1x8x32xf32, #tpu.memory_space<vmem>>, vector<1x8x32xf32>
    %67 = vector.shape_cast %66 : vector<1x8x32xf32> to vector<8x32xf32>
    %68 = vector.shape_cast %65 : vector<8x32xf32> to vector<1x8x32xf32>
    tpu.vector_store %arg12[%c0_34, %c0_35, %c0_36], %68 {strides = array<i32>} : memref<1x8x32xf32, #tpu.memory_space<vmem>>, vector<1x8x32xf32>,
    return
  }
  func.func @transform_0(%arg0: i32, %arg1: i32) -> (i32, i32, i32) {
    %c0_i32 = arith.constant 0 : i32
    %c0_i32_0 = arith.constant 0 : i32
    return %arg0, %arg1, %c0_i32 : i32, i32, i32
  }
  func.func @transform_1(%arg0: i32, %arg1: i32) -> (i32, i32, i32) {
    %c0_i32 = arith.constant 0 : i32
    %c0_i32_0 = arith.constant 0 : i32
    %c0_i32_1 = arith.constant 0 : i32
    return %arg0, %c0_i32, %c0_i32_0 : i32, i32, i32
  }
  func.func @transform_2(%arg0: i32, %arg1: i32) -> (i32, i32, i32) {
    %c0_i32 = arith.constant 0 : i32
    %c0_i32_0 = arith.constant 0 : i32
    %c0_i32_1 = arith.constant 0 : i32
    return %arg0, %c0_i32, %c0_i32_0 : i32, i32, i32
  }
  func.func @transform_3(%arg0: i32, %arg1: i32) -> (i32, i32, i32) {
    %c0_i32 = arith.constant 0 : i32
    %c0_i32_0 = arith.constant 0 : i32
    %c0_i32_1 = arith.constant 0 : i32
    return %arg0, %c0_i32, %c0_i32_0 : i32, i32, i32
  }
  func.func @transform_4(%arg0: i32, %arg1: i32) -> (i32, i32) {
    %c0_i32 = arith.constant 0 : i32
    %c0_i32_0 = arith.constant 0 : i32
    %c0_i32_1 = arith.constant 0 : i32
    return %c0_i32, %c0_i32_0 : i32, i32
  }
  func.func @transform_5(%arg0: i32, %arg1: i32) -> (i32, i32) {
    %c0_i32 = arith.constant 0 : i32
    %c0_i32_0 = arith.constant 0 : i32
    %c0_i32_1 = arith.constant 0 : i32
    return %c0_i32, %c0_i32_0 : i32, i32
  }
  func.func @transform_6(%arg0: i32, %arg1: i32) -> (i32, i32) {
    %c0_i32 = arith.constant 0 : i32
    %c0_i32_0 = arith.constant 0 : i32
    %c0_i32_1 = arith.constant 0 : i32
    return %c0_i32, %c0_i32_0 : i32, i32
  }
  func.func @transform_7(%arg0: i32, %arg1: i32) -> (i32, i32) {
    %c0_i32 = arith.constant 0 : i32
    %c0_i32_0 = arith.constant 0 : i32
    %c0_i32_1 = arith.constant 0 : i32
    return %c0_i32, %c0_i32_0 : i32, i32
  }
  func.func @transform_8(%arg0: i32, %arg1: i32) -> (i32, i32) {
    %c0_i32 = arith.constant 0 : i32
    %c0_i32_0 = arith.constant 0 : i32
    %c0_i32_1 = arith.constant 0 : i32
    return %c0_i32, %c0_i32_0 : i32, i32
  }
  func.func @transform_9(%arg0: i32, %arg1: i32) -> (i32, i32) {
    %c0_i32 = arith.constant 0 : i32
    %c0_i32_0 = arith.constant 0 : i32
    %c0_i32_1 = arith.constant 0 : i32
    return %c0_i32, %c0_i32_0 : i32, i32
  }
  func.func @transform_10(%arg0: i32, %arg1: i32) -> (i32, i32, i32) {
    %c0_i32 = arith.constant 0 : i32
    %c0_i32_0 = arith.constant 0 : i32
    return %arg0, %arg1, %c0_i32 : i32, i32, i32
  }
}

module attributes {stable_mosaic.version = 11 : i64} {
  func.func @_ffn_block_kernel(%arg0: i32, %arg1: i32, %arg2: memref<1x16x32xf32, #tpu.memory_space<vmem>>, %arg3: memref<1x1x32xf32, #tpu.memory_space<vmem>>, %arg4: memref<1x1x32xf32, #tpu.memory_space<vmem>>, %arg5: memref<1x1x32xf32, #tpu.memory_space<vmem>>, %arg6: memref<1x32xf32, #tpu.memory_space<vmem>>, %arg7: memref<1x32xf32, #tpu.memory_space<vmem>>, %arg8: memref<32x128xbf16, #tpu.memory_space<vmem>>, %arg9: memref<1x128xf32, #tpu.memory_space<vmem>>, %arg10: memref<128x32xbf16, #tpu.memory_space<vmem>>, %arg11: memref<1x32xf32, #tpu.memory_space<vmem>>, %arg12: memref<1x16x32xf32, #tpu.memory_space<vmem>>) attributes {dimension_semantics = [#tpu.dimension_semantics<parallel>, #tpu.dimension_semantics<parallel>], iteration_bounds = array<i64: 2, 1>, scalar_prefetch = 0 : i64, scratch_operands = 0 : i64, tpu.core_type = #tpu.core_type<tc>, window_params = [{transform_indices = @transform_0, window_bounds = array<i64: 1, 16, 32>}, {transform_indices = @transform_1, window_bounds = array<i64: 1, 1, 32>}, {transform_indices = @transform_2, window_bounds = array<i64: 1, 1, 32>}, {transform_indices = @transform_3, window_bounds = array<i64: 1, 1, 32>}, {pipeline_mode = #tpu.pipeline_mode<synchronous>, transform_indices = @transform_4, window_bounds = array<i64: 1, 32>}, {pipeline_mode = #tpu.pipeline_mode<synchronous>, transform_indices = @transform_5, window_bounds = array<i64: 1, 32>}, {pipeline_mode = #tpu.pipeline_mode<synchronous>, transform_indices = @transform_6, window_bounds = array<i64: 32, 128>}, {pipeline_mode = #tpu.pipeline_mode<synchronous>, transform_indices = @transform_7, window_bounds = array<i64: 1, 128>}, {pipeline_mode = #tpu.pipeline_mode<synchronous>, transform_indices = @transform_8, window_bounds = array<i64: 128, 32>}, {pipeline_mode = #tpu.pipeline_mode<synchronous>, transform_indices = @transform_9, window_bounds = array<i64: 1, 32>}, {transform_indices = @transform_10, window_bounds = array<i64: 1, 16, 32>}]} {
    %c0 = arith.constant 0 : index
    %c0_0 = arith.constant 0 : index
    %c0_1 = arith.constant 0 : index
    %0 = vector.load %arg2[%c0, %c0_0, %c0_1] : memref<1x16x32xf32, #tpu.memory_space<vmem>>, vector<1x16x32xf32>
    %1 = vector.shape_cast %0 : vector<1x16x32xf32> to vector<16x32xf32>
    %c0_2 = arith.constant 0 : index
    %c0_3 = arith.constant 0 : index
    %2 = vector.load %arg6[%c0_2, %c0_3] : memref<1x32xf32, #tpu.memory_space<vmem>>, vector<1x32xf32>
    %c0_4 = arith.constant 0 : index
    %c0_5 = arith.constant 0 : index
    %3 = vector.load %arg7[%c0_4, %c0_5] : memref<1x32xf32, #tpu.memory_space<vmem>>, vector<1x32xf32>
    %cst = arith.constant dense<0.000000e+00> : vector<16xf32>
    %4 = vector.multi_reduction <add>, %1, %cst [1] : vector<16x32xf32> to vector<16xf32>
    %5 = vector.shape_cast %4 : vector<16xf32> to vector<16x1xf32>
    %cst_6 = arith.constant 3.200000e+01 : f32
    %6 = vector.broadcast %cst_6 : f32 to vector<16x1xf32>
    %7 = arith.divf %5, %6 : vector<16x1xf32>
    %8 = vector.broadcast %7 : vector<16x1xf32> to vector<16x32xf32>
    %9 = arith.subf %1, %8 : vector<16x32xf32>
    %10 = arith.mulf %9, %9 : vector<16x32xf32>
    %cst_7 = arith.constant dense<0.000000e+00> : vector<16xf32>
    %11 = vector.multi_reduction <add>, %10, %cst_7 [1] : vector<16x32xf32> to vector<16xf32>
    %12 = vector.shape_cast %11 : vector<16xf32> to vector<16x1xf32>
    %cst_8 = arith.constant 3.200000e+01 : f32
    %13 = vector.broadcast %cst_8 : f32 to vector<16x1xf32>
    %14 = arith.divf %12, %13 : vector<16x1xf32>
    %15 = vector.broadcast %7 : vector<16x1xf32> to vector<16x32xf32>
    %16 = arith.subf %1, %15 : vector<16x32xf32>
    %cst_9 = arith.constant 9.99999974E-6 : f32
    %17 = vector.broadcast %cst_9 : f32 to vector<16x1xf32>
    %18 = arith.addf %14, %17 : vector<16x1xf32>
    %19 = math.rsqrt %18 : vector<16x1xf32>
    %20 = vector.broadcast %19 : vector<16x1xf32> to vector<16x32xf32>
    %21 = arith.mulf %16, %20 : vector<16x32xf32>
    %22 = vector.broadcast %2 : vector<1x32xf32> to vector<16x32xf32>
    %23 = arith.mulf %21, %22 : vector<16x32xf32>
    %24 = vector.broadcast %3 : vector<1x32xf32> to vector<16x32xf32>
    %25 = arith.addf %23, %24 : vector<16x32xf32>
    %c0_10 = arith.constant 0 : index
    %c0_11 = arith.constant 0 : index
    %c0_12 = arith.constant 0 : index
    %26 = vector.load %arg4[%c0_10, %c0_11, %c0_12] : memref<1x1x32xf32, #tpu.memory_space<vmem>>, vector<1x1x32xf32>
    %27 = vector.shape_cast %26 : vector<1x1x32xf32> to vector<1x32xf32>
    %cst_13 = arith.constant 1.000000e+00 : f32
    %28 = vector.broadcast %cst_13 : f32 to vector<1x32xf32>
    %29 = arith.addf %28, %27 : vector<1x32xf32>
    %30 = vector.broadcast %29 : vector<1x32xf32> to vector<16x32xf32>
    %31 = arith.mulf %25, %30 : vector<16x32xf32>
    %c0_14 = arith.constant 0 : index
    %c0_15 = arith.constant 0 : index
    %c0_16 = arith.constant 0 : index
    %32 = vector.load %arg3[%c0_14, %c0_15, %c0_16] : memref<1x1x32xf32, #tpu.memory_space<vmem>>, vector<1x1x32xf32>
    %33 = vector.shape_cast %32 : vector<1x1x32xf32> to vector<1x32xf32>
    %34 = vector.broadcast %33 : vector<1x32xf32> to vector<16x32xf32>
    %35 = arith.addf %31, %34 : vector<16x32xf32>
    %36 = arith.truncf %35 : vector<16x32xf32> to vector<16x32xbf16>
    %c0_17 = arith.constant 0 : index
    %c0_18 = arith.constant 0 : index
    %37 = vector.load %arg8[%c0_17, %c0_18] : memref<32x128xbf16, #tpu.memory_space<vmem>>, vector<32x128xbf16>
    %cst_19 = arith.constant dense<0.000000e+00> : vector<16x128xf32>
    %38 = tpu.matmul %36, %37, %cst_19 {dimension_numbers = #tpu.dot_dimension_numbers<[1], [0], [0], [1], [0, 0, 1, 1], [], []>} : vector<16x32xbf16>, vector<32x128xbf16>, vector<16x128xf32> -> vector<16x128xf32>
    %c0_20 = arith.constant 0 : index
    %c0_21 = arith.constant 0 : index
    %39 = vector.load %arg9[%c0_20, %c0_21] : memref<1x128xf32, #tpu.memory_space<vmem>>, vector<1x128xf32>
    %40 = vector.broadcast %39 : vector<1x128xf32> to vector<16x128xf32>
    %41 = arith.addf %38, %40 : vector<16x128xf32>
    %cst_22 = arith.constant 5.000000e-01 : f32
    %42 = vector.broadcast %cst_22 : f32 to vector<16x128xf32>
    %43 = arith.mulf %42, %41 : vector<16x128xf32>
    %cst_23 = arith.constant 4.471500e-02 : f32
    %44 = vector.broadcast %cst_23 : f32 to vector<16x128xf32>
    %45 = arith.mulf %44, %41 : vector<16x128xf32>
    %46 = arith.mulf %45, %41 : vector<16x128xf32>
    %47 = arith.mulf %46, %41 : vector<16x128xf32>
    %48 = arith.addf %41, %47 : vector<16x128xf32>
    %cst_24 = arith.constant 0.797884583 : f32
    %49 = vector.broadcast %cst_24 : f32 to vector<16x128xf32>
    %50 = arith.mulf %49, %48 : vector<16x128xf32>
    %51 = math.tanh %50 : vector<16x128xf32>
    %cst_25 = arith.constant 1.000000e+00 : f32
    %52 = vector.broadcast %cst_25 : f32 to vector<16x128xf32>
    %53 = arith.addf %52, %51 : vector<16x128xf32>
    %54 = arith.mulf %43, %53 : vector<16x128xf32>
    %55 = arith.truncf %54 : vector<16x128xf32> to vector<16x128xbf16>
    %c0_26 = arith.constant 0 : index
    %c0_27 = arith.constant 0 : index
    %56 = vector.load %arg10[%c0_26, %c0_27] : memref<128x32xbf16, #tpu.memory_space<vmem>>, vector<128x32xbf16>
    %cst_28 = arith.constant dense<0.000000e+00> : vector<16x32xf32>
    %57 = tpu.matmul %55, %56, %cst_28 {dimension_numbers = #tpu.dot_dimension_numbers<[1], [0], [0], [1], [0, 0, 1, 1], [], []>} : vector<16x128xbf16>, vector<128x32xbf16>, vector<16x32xf32> -> vector<16x32xf32>
    %c0_29 = arith.constant 0 : index
    %c0_30 = arith.constant 0 : index
    %58 = vector.load %arg11[%c0_29, %c0_30] : memref<1x32xf32, #tpu.memory_space<vmem>>, vector<1x32xf32>
    %59 = vector.broadcast %58 : vector<1x32xf32> to vector<16x32xf32>
    %60 = arith.addf %57, %59 : vector<16x32xf32>
    %c0_31 = arith.constant 0 : index
    %c0_32 = arith.constant 0 : index
    %c0_33 = arith.constant 0 : index
    %61 = vector.load %arg5[%c0_31, %c0_32, %c0_33] : memref<1x1x32xf32, #tpu.memory_space<vmem>>, vector<1x1x32xf32>
    %62 = vector.shape_cast %61 : vector<1x1x32xf32> to vector<1x32xf32>
    %63 = vector.broadcast %62 : vector<1x32xf32> to vector<16x32xf32>
    %64 = arith.mulf %63, %60 : vector<16x32xf32>
    %65 = arith.addf %1, %64 : vector<16x32xf32>
    %c0_34 = arith.constant 0 : index
    %c0_35 = arith.constant 0 : index
    %c0_36 = arith.constant 0 : index
    %66 = vector.load %arg12[%c0_34, %c0_35, %c0_36] : memref<1x16x32xf32, #tpu.memory_space<vmem>>, vector<1x16x32xf32>
    %67 = vector.shape_cast %66 : vector<1x16x32xf32> to vector<16x32xf32>
    %68 = vector.shape_cast %65 : vector<16x32xf32> to vector<1x16x32xf32>
    tpu.vector_store %arg12[%c0_34, %c0_35, %c0_36], %68 {strides = array<i32>} : memref<1x16x32xf32, #tpu.memory_space<vmem>>, vector<1x16x32xf32>,
    return
  }
  func.func @transform_0(%arg0: i32, %arg1: i32) -> (i32, i32, i32) {
    %c0_i32 = arith.constant 0 : i32
    %c0_i32_0 = arith.constant 0 : i32
    return %arg0, %arg1, %c0_i32 : i32, i32, i32
  }
  func.func @transform_1(%arg0: i32, %arg1: i32) -> (i32, i32, i32) {
    %c0_i32 = arith.constant 0 : i32
    %c0_i32_0 = arith.constant 0 : i32
    %c0_i32_1 = arith.constant 0 : i32
    return %arg0, %c0_i32, %c0_i32_0 : i32, i32, i32
  }
  func.func @transform_2(%arg0: i32, %arg1: i32) -> (i32, i32, i32) {
    %c0_i32 = arith.constant 0 : i32
    %c0_i32_0 = arith.constant 0 : i32
    %c0_i32_1 = arith.constant 0 : i32
    return %arg0, %c0_i32, %c0_i32_0 : i32, i32, i32
  }
  func.func @transform_3(%arg0: i32, %arg1: i32) -> (i32, i32, i32) {
    %c0_i32 = arith.constant 0 : i32
    %c0_i32_0 = arith.constant 0 : i32
    %c0_i32_1 = arith.constant 0 : i32
    return %arg0, %c0_i32, %c0_i32_0 : i32, i32, i32
  }
  func.func @transform_4(%arg0: i32, %arg1: i32) -> (i32, i32) {
    %c0_i32 = arith.constant 0 : i32
    %c0_i32_0 = arith.constant 0 : i32
    %c0_i32_1 = arith.constant 0 : i32
    return %c0_i32, %c0_i32_0 : i32, i32
  }
  func.func @transform_5(%arg0: i32, %arg1: i32) -> (i32, i32) {
    %c0_i32 = arith.constant 0 : i32
    %c0_i32_0 = arith.constant 0 : i32
    %c0_i32_1 = arith.constant 0 : i32
    return %c0_i32, %c0_i32_0 : i32, i32
  }
  func.func @transform_6(%arg0: i32, %arg1: i32) -> (i32, i32) {
    %c0_i32 = arith.constant 0 : i32
    %c0_i32_0 = arith.constant 0 : i32
    %c0_i32_1 = arith.constant 0 : i32
    return %c0_i32, %c0_i32_0 : i32, i32
  }
  func.func @transform_7(%arg0: i32, %arg1: i32) -> (i32, i32) {
    %c0_i32 = arith.constant 0 : i32
    %c0_i32_0 = arith.constant 0 : i32
    %c0_i32_1 = arith.constant 0 : i32
    return %c0_i32, %c0_i32_0 : i32, i32
  }
  func.func @transform_8(%arg0: i32, %arg1: i32) -> (i32, i32) {
    %c0_i32 = arith.constant 0 : i32
    %c0_i32_0 = arith.constant 0 : i32
    %c0_i32_1 = arith.constant 0 : i32
    return %c0_i32, %c0_i32_0 : i32, i32
  }
  func.func @transform_9(%arg0: i32, %arg1: i32) -> (i32, i32) {
    %c0_i32 = arith.constant 0 : i32
    %c0_i32_0 = arith.constant 0 : i32
    %c0_i32_1 = arith.constant 0 : i32
    return %c0_i32, %c0_i32_0 : i32, i32
  }
  func.func @transform_10(%arg0: i32, %arg1: i32) -> (i32, i32, i32) {
    %c0_i32 = arith.constant 0 : i32
    %c0_i32_0 = arith.constant 0 : i32
    return %arg0, %arg1, %c0_i32 : i32, i32, i32
  }
}

</mosaic_0001>

<llo_original>
// kernel: cogvideox_block.4
$region0: #{cogvideox_block.4}
  #allocation0 [shape = 'u32[]', space=smem, size = 0x4, offset = 0x4, fixed_abs, tag = 'smem constant byte address 0x4 - core index']
  #allocation1 [shape = 'u32[72,128]{1,0:T(1,128)}', space=vmem, size = 0x9000, scoped, tag = 'internal scratch']
  %s0 = inlined_call_operand.hbm [shape: f32[2,16], index: 0, kind: input, shape index: {}]
  %s1 = inlined_call_operand.hbm [shape: f32[16,384], index: 1, kind: input, shape index: {}]
  %s2 = inlined_call_operand.vmem [shape: f32[1,384], index: 2, kind: input, shape index: {}]
  %s3 = inlined_call_operand.vmem [shape: f32[2,384], index: 3, kind: output, shape index: {}]
  %s4 = sld [smem:[#allocation0]]
  $region30: #{cogvideox_block.4} parent=0
    _
  %s6 = ssub.s32 1, %s4
  %s7 = scalar_select 0, %s6, %s4
  $region1: #{cogvideox_block.4} parent=0
    #allocation2 [shape = 'u8[1024]{0}', space=vmem, size = 0x400, scoped, tag = 'input window, operand 0, single buffered']
    #allocation3 [shape = 's32[1]{0}', space=sflag, size = 0x4, scoped, tag = 'scoped memory for cogvideox_block.4']
    #allocation4 [shape = 'u8[24576]{0}', space=vmem, size = 0x6000, scoped, tag = 'input window, operand 1, single buffered']
    #allocation5 [shape = 's32[1]{0}', space=sflag, size = 0x4, scoped, tag = 'scoped memory for cogvideox_block.4']
    %8 = vsyncpa [#allocation3], 0
    %9 = vsyncpa [#allocation5], 0
    // Predicated region
    $region2: #{cogvideox_block.4} parent=1 // pred_check
      _
    $region3: #{cogvideox_block.4} parent=1 // pred_check_branch
      %11 = sbr.rel (0) target = $region5
    $region4: #{cogvideox_block.4} parent=1 // pred_region
      %13 = vsyncadd [#allocation3], 0
      %s15 = sshll.u32 %s0, 4
      %s16 = int_to_ptr.hbm [resolvable:$true] %s15
      %s17 = sshll.u32 [#allocation2], 4
      %s18 = int_to_ptr.vmem [resolvable:$true] %s17
      %20 = dma.hbm_to_vmem [thread:$0]  %s16, 32, %s18, [#allocation3]
    $region5: #{cogvideox_block.4} parent=1 // pred_fallthru
      _
    // Predicated region
    $region6: #{cogvideox_block.4} parent=1 // pred_check
      _
    $region7: #{cogvideox_block.4} parent=1 // pred_check_branch
      %22 = sbr.rel (0) target = $region9
    $region8: #{cogvideox_block.4} parent=1 // pred_region
      %24 = vsyncadd [#allocation5], 0
      %s25 = sshll.u32 %s1, 4
      %s26 = int_to_ptr.hbm [resolvable:$true] %s25
      %s27 = sshll.u32 [#allocation4], 4
      %s28 = int_to_ptr.vmem [resolvable:$true] %s27
      %33 = dma.hbm_to_vmem [thread:$0]  %s26, 768, %s28, [#allocation5], 384, 384, 24
    $region9: #{cogvideox_block.4} parent=1 // pred_fallthru
      _
    // Predicated region
    $region10: #{cogvideox_block.4} parent=1 // pred_check
      _
    $region11: #{cogvideox_block.4} parent=1 // pred_check_branch
      %35 = sbr.rel (0) target = $region13
    $region12: #{cogvideox_block.4} parent=1 // pred_region
      _
    $region13: #{cogvideox_block.4} parent=1 // pred_fallthru
      _
    // Predicated region
    $region14: #{cogvideox_block.4} parent=1 // pred_check
      _
    $region15: #{cogvideox_block.4} parent=1 // pred_check_branch
      %37 = sbr.rel (0) target = $region17
    $region16: #{cogvideox_block.4} parent=1 // pred_region
      %39 = dma.done [#allocation3], 32
    $region17: #{cogvideox_block.4} parent=1 // pred_fallthru
      _
    // Predicated region
    $region18: #{cogvideox_block.4} parent=1 // pred_check
      _
    $region19: #{cogvideox_block.4} parent=1 // pred_check_branch
      %41 = sbr.rel (0) target = $region21
    $region20: #{cogvideox_block.4} parent=1 // pred_region
      %43 = dma.done [#allocation5], 768
    $region21: #{cogvideox_block.4} parent=1 // pred_fallthru
      _
    %v44 = vld [vmem:[#allocation2] sm:$0x3]
    %v45 = vxor.u32 %v44, 2147483648
    %v46 = vmul.f32 %v45, 1.442695
    %v47 = vpow.pop %v46
    %v48 = vadd.f32 %v47, 1.0
    %v49 = vrcp.pop %v48
    %v50 = vmul.f32 %v48, %v49
    %v51 = vsub.f32 1.0, %v50
    %v52 = vmul.f32 %v49, %v51
    %v53 = vadd.f32 %v49, %v52
    %vm54 = vweird.f32 %v48
    %vm55 = vweird.f32 %v49
    %vm56 = vmor %vm54, %vm55
    %v57 = vsel %vm56, %v49, %v53
    %v58 = vand.u32 2147483647, %v48
    %vm59 = vcmp.eq.f32.partialorder %v58, 8.507059e+37
    %v60 = vand.u32 %v48, 2147483648
    %v61 = vor.u32 1.1754944e-38, %v60
    %v62 = vsel %vm59, %v61, %v57
    %v63 = vmul.f32 1.0, %v62
    %v64 = vmul.f32 %v44, %v63
    %v65 = vld [vmem:[#allocation4] sm:$0xff]
    %v66 = vld [vmem:[#allocation4 + $0x8] sm:$0xff]
    %v67 = vld [vmem:[#allocation4 + $0x10] sm:$0xff]
    %v68 = vld [vmem:[#allocation4 + $0x18] sm:$0xff]
    %v69 = vld [vmem:[#allocation4 + $0x20] sm:$0xff]
    %v70 = vld [vmem:[#allocation4 + $0x28] sm:$0xff]
    %v71 = vld [vmem:[%s2] sm:$0x7]
    %v73 = vperm.slane %v71, 0
    %v74 = vperm.slane %v71, 1
    %v75 = vperm.slane %v71, 2
    %vm79 = vcmask 130048
    %v81 = vsel %vm79, %v64, 0
    %83 = vmatpush.msra.mxu0 0.0
    %84 = vmatpush.msra.mxu0 0.0
    %85 = vmatpush.msra.mxu0 0.0
    %86 = vmatpush.msra.mxu0 0.0
    %87 = vmatpush.msra.mxu0 0.0
    %88 = vmatpush.msra.mxu0 0.0
    %89 = vmatpush.msra.mxu0 0.0
    %90 = vmatpush.msra.mxu0 0.0
    %91 = vmatpush.msra.mxu0 0.0
    %92 = vmatpush.msra.mxu0 0.0
    %93 = vmatpush.msra.mxu0 0.0
    %94 = vmatpush.msra.mxu0 0.0
    %95 = vmatpush.msra.mxu0 0.0
    %96 = vmatpush.msra.mxu0 0.0
    %97 = vmatpush.msra.mxu0 %v68
    %98 = vmatpush.msra.mxu0 %v65
    %99 = vmatmul.f32.gmra.mxu0 %v81
    %v100 = vpop.f32.mrf.mxu0
    %v101 = vadd.f32 %v73, %v100
    %102 = vdwg.mxu0
    %103 = vmatpush.msra.mxu0 0.0
    %104 = vmatpush.msra.mxu0 0.0
    %105 = vmatpush.msra.mxu0 0.0
    %106 = vmatpush.msra.mxu0 0.0
    %107 = vmatpush.msra.mxu0 0.0
    %108 = vmatpush.msra.mxu0 0.0
    %109 = vmatpush.msra.mxu0 0.0
    %110 = vmatpush.msra.mxu0 0.0
    %111 = vmatpush.msra.mxu0 0.0
    %112 = vmatpush.msra.mxu0 0.0
    %113 = vmatpush.msra.mxu0 0.0
    %114 = vmatpush.msra.mxu0 0.0
    %115 = vmatpush.msra.mxu0 0.0
    %116 = vmatpush.msra.mxu0 0.0
    %117 = vmatpush.msra.mxu0 %v69
    %118 = vmatpush.msra.mxu0 %v66
    %119 = vmatmul.f32.gmra.mxu0 %v81
    %v120 = vpop.f32.mrf.mxu0
    %v121 = vadd.f32 %v74, %v120
    %122 = vdwg.mxu0
    %123 = vmatpush.msra.mxu0 0.0
    %124 = vmatpush.msra.mxu0 0.0
    %125 = vmatpush.msra.mxu0 0.0
    %126 = vmatpush.msra.mxu0 0.0
    %127 = vmatpush.msra.mxu0 0.0
    %128 = vmatpush.msra.mxu0 0.0
    %129 = vmatpush.msra.mxu0 0.0
    %130 = vmatpush.msra.mxu0 0.0
    %131 = vmatpush.msra.mxu0 0.0
    %132 = vmatpush.msra.mxu0 0.0
    %133 = vmatpush.msra.mxu0 0.0
    %134 = vmatpush.msra.mxu0 0.0
    %135 = vmatpush.msra.mxu0 0.0
    %136 = vmatpush.msra.mxu0 0.0
    %137 = vmatpush.msra.mxu0 %v70
    %138 = vmatpush.msra.mxu0 %v67
    %139 = vmatmul.f32.gmra.mxu0 %v81
    %v140 = vpop.f32.mrf.mxu0
    %v141 = vadd.f32 %v75, %v140
    %142 = vdwg.mxu0
    %v146 = vrot.slane %v121, 6
    %v147 = vrot.slane %v141, 4
    %vm148 = vcmask 1041408
    %v149 = vsel %vm148, %v101, %v146
    %vm150 = vcmask 1043456
    %v151 = vsel %vm150, %v149, %v147
    %153 = vst [vmem:[%s3] sm:$0x3f] %v151
    // Predicated region
    $region22: #{cogvideox_block.4} parent=1 // pred_check
      _
    $region23: #{cogvideox_block.4} parent=1 // pred_check_branch
      %155 = sbr.rel (0) target = $region25
    $region24: #{cogvideox_block.4} parent=1 // pred_region
      _
    $region25: #{cogvideox_block.4} parent=1 // pred_fallthru
      _
    // Predicated region
    $region26: #{cogvideox_block.4} parent=1 // pred_check
      _
    $region27: #{cogvideox_block.4} parent=1 // pred_check_branch
      %157 = sbr.rel (0) target = $region29
    $region28: #{cogvideox_block.4} parent=1 // pred_region
      _
    $region29: #{cogvideox_block.4} parent=1 // pred_fallthru
      _
    %158 = vsyncpa [#allocation3], 1
    %159 = vsyncpa [#allocation5], 1

// kernel: cogvideox_block.7
$region0: #{cogvideox_block.7}
  #allocation0 [shape = 'u32[]', space=smem, size = 0x4, offset = 0x4, fixed_abs, tag = 'smem constant byte address 0x4 - core index']
  #allocation1 [shape = 'u32[72,128]{1,0:T(1,128)}', space=vmem, size = 0x9000, scoped, tag = 'internal scratch']
  %s0 = inlined_call_operand.vmem [shape: f32[2,8,32], index: 0, kind: input, shape index: {}]
  %s1 = inlined_call_operand.vmem [shape: f32[2,1,32], index: 1, kind: input, shape index: {}]
  %s2 = inlined_call_operand.vmem [shape: f32[2,1,32], index: 2, kind: input, shape index: {}]
  %s3 = inlined_call_operand.vmem [shape: f32[2,1,32], index: 3, kind: input, shape index: {}]
  %s4 = inlined_call_operand.vmem [shape: f32[1,32], index: 4, kind: input, shape index: {}]
  %s5 = inlined_call_operand.vmem [shape: f32[1,32], index: 5, kind: input, shape index: {}]
  %s6 = inlined_call_operand.vmem [shape: bf16[32,128], index: 6, kind: input, shape index: {}]
  %s7 = inlined_call_operand.vmem [shape: f32[1,128], index: 7, kind: input, shape index: {}]
  %s8 = inlined_call_operand.vmem [shape: bf16[128,32], index: 8, kind: input, shape index: {}]
  %s9 = inlined_call_operand.vmem [shape: f32[1,32], index: 9, kind: input, shape index: {}]
  %s10 = inlined_call_operand.hbm [shape: f32[2,8,32], index: 10, kind: output, shape index: {}]
  %s11 = sld [smem:[#allocation0]]
  $region73: #{cogvideox_block.7} parent=0
    _
  %s13 = ssub.s32 1, %s11
  %s14 = scalar_select 0, %s13, %s11
  $region1: #{cogvideox_block.7} parent=0
    #allocation2 [shape = 'u8[8192]{0}', space=vmem, size = 0x2000, scoped, tag = 'output window, operand 0']
    #allocation3 [shape = 's32[2]{0}', space=sflag, size = 0x8, scoped, tag = 'scoped memory for cogvideox_block.7']
    %15 = vsyncpa [#allocation3], 0
    %s16 = scalar_lea.sflag [#allocation3], 1
    %17 = vsyncpa %s16, 0
    loop: start=0, step=1, limit=4
    $region2: #{cogvideox_block.7} parent=1 // loop_pre_header
      _
    $region3: #{cogvideox_block.7} parent=1 // loop_header
      %s19 = sphi 0, %s23
      %p20 = scmp.ge.s32.totalorder %s19, 4
      %s26 = sphi 0, %s38
      %s27 = sphi 0, %s34
      %s28 = sphi 0, %s26
      %s29 = sphi 0, %s27
      %s30 = sphi 0, %s28
      %s31 = sphi 0, %s29
      %s43 = sphi 0, %s45
      %s46 = sphi 0, %s43
      %s47 = sphi 0, %s46
      %s63 = sphi 0, %s47
      %s69 = sphi 0, %s71
      %s72 = sphi 0, %s69
      %s73 = sphi 0, %s72
      %s89 = sphi 0, %s73
      %s95 = sphi 0, %s97
      %s98 = sphi 0, %s95
      %s99 = sphi 0, %s98
      %s115 = sphi 0, %s99
      %s121 = sphi 0, %s123
      %s124 = sphi 0, %s121
      %s125 = sphi 0, %s124
      %s141 = sphi 0, %s125
      %s145 = sphi 0, %s145
      %s147 = sphi 0, %s145
      %s148 = sphi 0, %s147
      %s162 = sphi 0, %s148
      %s166 = sphi 0, %s166
      %s168 = sphi 0, %s166
      %s169 = sphi 0, %s168
      %s183 = sphi 0, %s169
      %s187 = sphi 0, %s187
      %s189 = sphi 0, %s187
      %s190 = sphi 0, %s189
      %s204 = sphi 0, %s190
      %s208 = sphi 0, %s208
      %s210 = sphi 0, %s208
      %s211 = sphi 0, %s210
      %s225 = sphi 0, %s211
      %s229 = sphi 0, %s229
      %s231 = sphi 0, %s229
      %s232 = sphi 0, %s231
      %s246 = sphi 0, %s232
      %s250 = sphi 0, %s250
      %s252 = sphi 0, %s250
      %s253 = sphi 0, %s252
      %s267 = sphi 0, %s253
      %s275 = sphi 0, %s277
      %s278 = sphi 0, %s275
      %s279 = sphi 0, %s278
      %s295 = sphi 0, %s279
    $region4: #{cogvideox_block.7} parent=1 // loop_header_branch
      %22 = sbr.rel (%p20) target = $region8
    $region5: #{cogvideox_block.7} parent=1 // loop_body
      %s24 = ssub.s32 %s19, 1
      %s25 = ssub.s32 %s19, 2
      %s32 = sadd.s32 1, %s27
      %p33 = scmp.ge.s32.totalorder %s32, 1
      %s34 = scalar_select %p33, 0, %s32
      %s35 = sadd.s32 1, %s26
      %s36 = scalar_select %p33, %s35, %s26
      %p37 = scmp.ge.s32.totalorder %s36, 2
      %s38 = scalar_select %p37, 0, %s36
      %s39 = ssub.s32 %s26, %s38
      %s40 = ssub.s32 %s27, %s34
      %s41 = sor.u32 %s39, %s40
      %p42 = scmp.eq.s32.totalorder %s41, 0
      %s44 = sadd.s32 %s43, 1
      %s45 = scalar_select %p42, %s43, %s44
      %p48 = pneg %p42
      %p49 = scmp.eq.s32.totalorder %s19, 1
      %p50 = por %p48, %p49
      %p51 = scmp.ne.s32.totalorder %s43, %s46
      %p52 = scmp.eq.s32.totalorder %s19, 0
      %p53 = por %p51, %p52
      %p54 = scmp.ne.s32.totalorder %s43, %s46
      %p55 = scmp.eq.s32.totalorder %s24, 1
      %p56 = por %p54, %p55
      %p57 = scmp.ne.s32.totalorder %s46, %s47
      %p58 = scmp.eq.s32.totalorder %s24, 0
      %p59 = por %p57, %p58
      %p60 = scmp.ne.s32.totalorder %s46, %s47
      %p61 = scmp.eq.s32.totalorder %s25, 1
      %p62 = por %p60, %p61
      %p64 = scmp.ne.s32.totalorder %s47, %s63
      %p65 = scmp.eq.s32.totalorder %s25, 0
      %p66 = por %p64, %p65
      %s67 = ssub.s32 %s26, %s38
      %p68 = scmp.eq.s32.totalorder %s67, 0
      %s70 = sadd.s32 %s69, 1
      %s71 = scalar_select %p68, %s69, %s70
      %p74 = pneg %p68
      %p75 = scmp.eq.s32.totalorder %s19, 1
      %p76 = por %p74, %p75
      %p77 = scmp.ne.s32.totalorder %s69, %s72
      %p78 = scmp.eq.s32.totalorder %s19, 0
      %p79 = por %p77, %p78
      %p80 = scmp.ne.s32.totalorder %s69, %s72
      %p81 = scmp.eq.s32.totalorder %s24, 1
      %p82 = por %p80, %p81
      %p83 = scmp.ne.s32.totalorder %s72, %s73
      %p84 = scmp.eq.s32.totalorder %s24, 0
      %p85 = por %p83, %p84
      %p86 = scmp.ne.s32.totalorder %s72, %s73
      %p87 = scmp.eq.s32.totalorder %s25, 1
      %p88 = por %p86, %p87
      %p90 = scmp.ne.s32.totalorder %s73, %s89
      %p91 = scmp.eq.s32.totalorder %s25, 0
      %p92 = por %p90, %p91
      %s93 = ssub.s32 %s26, %s38
      %p94 = scmp.eq.s32.totalorder %s93, 0
      %s96 = sadd.s32 %s95, 1
      %s97 = scalar_select %p94, %s95, %s96
      %p100 = pneg %p94
      %p101 = scmp.eq.s32.totalorder %s19, 1
      %p102 = por %p100, %p101
      %p103 = scmp.ne.s32.totalorder %s95, %s98
      %p104 = scmp.eq.s32.totalorder %s19, 0
      %p105 = por %p103, %p104
      %p106 = scmp.ne.s32.totalorder %s95, %s98
      %p107 = scmp.eq.s32.totalorder %s24, 1
      %p108 = por %p106, %p107
      %p109 = scmp.ne.s32.totalorder %s98, %s99
      %p110 = scmp.eq.s32.totalorder %s24, 0
      %p111 = por %p109, %p110
      %p112 = scmp.ne.s32.totalorder %s98, %s99
      %p113 = scmp.eq.s32.totalorder %s25, 1
      %p114 = por %p112, %p113
      %p116 = scmp.ne.s32.totalorder %s99, %s115
      %p117 = scmp.eq.s32.totalorder %s25, 0
      %p118 = por %p116, %p117
      %s119 = ssub.s32 %s26, %s38
      %p120 = scmp.eq.s32.totalorder %s119, 0
      %s122 = sadd.s32 %s121, 1
      %s123 = scalar_select %p120, %s121, %s122
      %p126 = pneg %p120
      %p127 = scmp.eq.s32.totalorder %s19, 1
      %p128 = por %p126, %p127
      %p129 = scmp.ne.s32.totalorder %s121, %s124
      %p130 = scmp.eq.s32.totalorder %s19, 0
      %p131 = por %p129, %p130
      %p132 = scmp.ne.s32.totalorder %s121, %s124
      %p133 = scmp.eq.s32.totalorder %s24, 1
      %p134 = por %p132, %p133
      %p135 = scmp.ne.s32.totalorder %s124, %s125
      %p136 = scmp.eq.s32.totalorder %s24, 0
      %p137 = por %p135, %p136
      %p138 = scmp.ne.s32.totalorder %s124, %s125
      %p139 = scmp.eq.s32.totalorder %s25, 1
      %p140 = por %p138, %p139
      %p142 = scmp.ne.s32.totalorder %s125, %s141
      %p143 = scmp.eq.s32.totalorder %s25, 0
      %p144 = por %p142, %p143
      %s146 = sadd.s32 %s145, 1
      %p149 = scmp.eq.s32.totalorder %s19, 1
      %p150 = scmp.ne.s32.totalorder %s145, %s147
      %p151 = scmp.eq.s32.totalorder %s19, 0
      %p152 = por %p150, %p151
      %p153 = scmp.ne.s32.totalorder %s145, %s147
      %p154 = scmp.eq.s32.totalorder %s24, 1
      %p155 = por %p153, %p154
      %p156 = scmp.ne.s32.totalorder %s147, %s148
      %p157 = scmp.eq.s32.totalorder %s24, 0
      %p158 = por %p156, %p157
      %p159 = scmp.ne.s32.totalorder %s147, %s148
      %p160 = scmp.eq.s32.totalorder %s25, 1
      %p161 = por %p159, %p160
      %p163 = scmp.ne.s32.totalorder %s148, %s162
      %p164 = scmp.eq.s32.totalorder %s25, 0
      %p165 = por %p163, %p164
      %s167 = sadd.s32 %s166, 1
      %p170 = scmp.eq.s32.totalorder %s19, 1
      %p171 = scmp.ne.s32.totalorder %s166, %s168
      %p172 = scmp.eq.s32.totalorder %s19, 0
      %p173 = por %p171, %p172
      %p174 = scmp.ne.s32.totalorder %s166, %s168
      %p175 = scmp.eq.s32.totalorder %s24, 1
      %p176 = por %p174, %p175
      %p177 = scmp.ne.s32.totalorder %s168, %s169
      %p178 = scmp.eq.s32.totalorder %s24, 0
      %p179 = por %p177, %p178
      %p180 = scmp.ne.s32.totalorder %s168, %s169
      %p181 = scmp.eq.s32.totalorder %s25, 1
      %p182 = por %p180, %p181
      %p184 = scmp.ne.s32.totalorder %s169, %s183
      %p185 = scmp.eq.s32.totalorder %s25, 0
      %p186 = por %p184, %p185
      %s188 = sadd.s32 %s187, 1
      %p191 = scmp.eq.s32.totalorder %s19, 1
      %p192 = scmp.ne.s32.totalorder %s187, %s189
      %p193 = scmp.eq.s32.totalorder %s19, 0
      %p194 = por %p192, %p193
      %p195 = scmp.ne.s32.totalorder %s187, %s189
      %p196 = scmp.eq.s32.totalorder %s24, 1
      %p197 = por %p195, %p196
      %p198 = scmp.ne.s32.totalorder %s189, %s190
      %p199 = scmp.eq.s32.totalorder %s24, 0
      %p200 = por %p198, %p199
      %p201 = scmp.ne.s32.totalorder %s189, %s190
      %p202 = scmp.eq.s32.totalorder %s25, 1
      %p203 = por %p201, %p202
      %p205 = scmp.ne.s32.totalorder %s190, %s204
      %p206 = scmp.eq.s32.totalorder %s25, 0
      %p207 = por %p205, %p206
      %s209 = sadd.s32 %s208, 1
      %p212 = scmp.eq.s32.totalorder %s19, 1
      %p213 = scmp.ne.s32.totalorder %s208, %s210
      %p214 = scmp.eq.s32.totalorder %s19, 0
      %p215 = por %p213, %p214
      %p216 = scmp.ne.s32.totalorder %s208, %s210
      %p217 = scmp.eq.s32.totalorder %s24, 1
      %p218 = por %p216, %p217
      %p219 = scmp.ne.s32.totalorder %s210, %s211
      %p220 = scmp.eq.s32.totalorder %s24, 0
      %p221 = por %p219, %p220
      %p222 = scmp.ne.s32.totalorder %s210, %s211
      %p223 = scmp.eq.s32.totalorder %s25, 1
      %p224 = por %p222, %p223
      %p226 = scmp.ne.s32.totalorder %s211, %s225
      %p227 = scmp.eq.s32.totalorder %s25, 0
      %p228 = por %p226, %p227
      %s230 = sadd.s32 %s229, 1
      %p233 = scmp.eq.s32.totalorder %s19, 1
      %p234 = scmp.ne.s32.totalorder %s229, %s231
      %p235 = scmp.eq.s32.totalorder %s19, 0
      %p236 = por %p234, %p235
      %p237 = scmp.ne.s32.totalorder %s229, %s231
      %p238 = scmp.eq.s32.totalorder %s24, 1
      %p239 = por %p237, %p238
      %p240 = scmp.ne.s32.totalorder %s231, %s232
      %p241 = scmp.eq.s32.totalorder %s24, 0
      %p242 = por %p240, %p241
      %p243 = scmp.ne.s32.totalorder %s231, %s232
      %p244 = scmp.eq.s32.totalorder %s25, 1
      %p245 = por %p243, %p244
      %p247 = scmp.ne.s32.totalorder %s232, %s246
      %p248 = scmp.eq.s32.totalorder %s25, 0
      %p249 = por %p247, %p248
      %s251 = sadd.s32 %s250, 1
      %p254 = scmp.eq.s32.totalorder %s19, 1
      %p255 = scmp.ne.s32.totalorder %s250, %s252
      %p256 = scmp.eq.s32.totalorder %s19, 0
      %p257 = por %p255, %p256
      %p258 = scmp.ne.s32.totalorder %s250, %s252
      %p259 = scmp.eq.s32.totalorder %s24, 1
      %p260 = por %p258, %p259
      %p261 = scmp.ne.s32.totalorder %s252, %s253
      %p262 = scmp.eq.s32.totalorder %s24, 0
      %p263 = por %p261, %p262
      %p264 = scmp.ne.s32.totalorder %s252, %s253
      %p265 = scmp.eq.s32.totalorder %s25, 1
      %p266 = por %p264, %p265
      %p268 = scmp.ne.s32.totalorder %s253, %s267
      %p269 = scmp.eq.s32.totalorder %s25, 0
      %p270 = por %p268, %p269
      %s271 = ssub.s32 %s26, %s38
      %s272 = ssub.s32 %s27, %s34
      %s273 = sor.u32 %s271, %s272
      %p274 = scmp.eq.s32.totalorder %s273, 0
      %s276 = sadd.s32 %s275, 1
      %s277 = scalar_select %p274, %s275, %s276
      %p280 = pneg %p274
      %p281 = scmp.eq.s32.totalorder %s19, 1
      %p282 = por %p280, %p281
      %p283 = scmp.ne.s32.totalorder %s275, %s278
      %p284 = scmp.eq.s32.totalorder %s19, 0
      %p285 = por %p283, %p284
      %p286 = scmp.ne.s32.totalorder %s275, %s278
      %p287 = scmp.eq.s32.totalorder %s24, 1
      %p288 = por %p286, %p287
      %p289 = scmp.ne.s32.totalorder %s278, %s279
      %p290 = scmp.eq.s32.totalorder %s24, 0
      %p291 = por %p289, %p290
      %p292 = scmp.ne.s32.totalorder %s278, %s279
      %p293 = scmp.eq.s32.totalorder %s25, 1
      %p294 = por %p292, %p293
      %p296 = scmp.ne.s32.totalorder %s279, %s295
      %p297 = scmp.eq.s32.totalorder %s25, 0
      %p298 = por %p296, %p297
      %p299 = scmp.le.s32.totalorder 1, %s19
      %p300 = scmp.lt.s32.totalorder %s19, 3
      %p301 = pnand %p299, %p300
      %p302 = pneg %p301
      // Predicated region
      $region9: #{cogvideox_block.7} parent=5 // pred_check
        _
      $region10: #{cogvideox_block.7} parent=5 // pred_check_branch
        %304 = sbr.rel (%p301) target = $region12
      $region11: #{cogvideox_block.7} parent=5 // pred_region
        %s305 = ssub.s32 %s19, 1
        // Predicated region
        $region13: #{cogvideox_block.7} parent=11 // pred_check
          %p306 = pneg %p158
        $region14: #{cogvideox_block.7} parent=11 // pred_check_branch
          %308 = sbr.rel (%p306) target = $region16
        $region15: #{cogvideox_block.7} parent=11 // pred_region
          _
        $region16: #{cogvideox_block.7} parent=11 // pred_fallthru
          _
        // Predicated region
        $region17: #{cogvideox_block.7} parent=11 // pred_check
          %p309 = pneg %p179
        $region18: #{cogvideox_block.7} parent=11 // pred_check_branch
          %311 = sbr.rel (%p309) target = $region20
        $region19: #{cogvideox_block.7} parent=11 // pred_region
          _
        $region20: #{cogvideox_block.7} parent=11 // pred_fallthru
          _
        // Predicated region
        $region21: #{cogvideox_block.7} parent=11 // pred_check
          %p312 = pneg %p200
        $region22: #{cogvideox_block.7} parent=11 // pred_check_branch
          %314 = sbr.rel (%p312) target = $region24
        $region23: #{cogvideox_block.7} parent=11 // pred_region
          _
        $region24: #{cogvideox_block.7} parent=11 // pred_fallthru
          _
        // Predicated region
        $region25: #{cogvideox_block.7} parent=11 // pred_check
          %p315 = pneg %p221
        $region26: #{cogvideox_block.7} parent=11 // pred_check_branch
          %317 = sbr.rel (%p315) target = $region28
        $region27: #{cogvideox_block.7} parent=11 // pred_region
          _
        $region28: #{cogvideox_block.7} parent=11 // pred_fallthru
          _
        // Predicated region
        $region29: #{cogvideox_block.7} parent=11 // pred_check
          %p318 = pneg %p242
        $region30: #{cogvideox_block.7} parent=11 // pred_check_branch
          %320 = sbr.rel (%p318) target = $region32
        $region31: #{cogvideox_block.7} parent=11 // pred_region
          _
        $region32: #{cogvideox_block.7} parent=11 // pred_fallthru
          _
        // Predicated region
        $region33: #{cogvideox_block.7} parent=11 // pred_check
          %p321 = pneg %p263
        $region34: #{cogvideox_block.7} parent=11 // pred_check_branch
          %323 = sbr.rel (%p321) target = $region36
        $region35: #{cogvideox_block.7} parent=11 // pred_region
          _
        $region36: #{cogvideox_block.7} parent=11 // pred_fallthru
          _
      $region12: #{cogvideox_block.7} parent=5 // pred_fallthru
        _
      %p324 = scmp.lt.s32.totalorder %s19, 2
      // Predicated region
      $region37: #{cogvideox_block.7} parent=5 // pred_check
        %p325 = pneg %p324
      $region38: #{cogvideox_block.7} parent=5 // pred_check_branch
        %327 = sbr.rel (%p325) target = $region40
      $region39: #{cogvideox_block.7} parent=5 // pred_region
        // Predicated region
        $region41: #{cogvideox_block.7} parent=39 // pred_check
          %p328 = pneg %p53
        $region42: #{cogvideox_block.7} parent=39 // pred_check_branch
          %330 = sbr.rel (%p328) target = $region44
        $region43: #{cogvideox_block.7} parent=39 // pred_region
          %p331 = scmp.lt.s32.totalorder %s26, 1
          %s332 = scalar_select %p331, %s26, 1
          %p333 = scmp.lt.s32.totalorder %s27, 0
          %s334 = scalar_select %p333, %s27, 0
          %s335 = sadd.s32 %s334, %s332
          %s336 = smul.addr %s335, 8
          %s337 = scalar_lea.vmem %s0, %s336
        $region44: #{cogvideox_block.7} parent=39 // pred_fallthru
          _
        // Predicated region
        $region45: #{cogvideox_block.7} parent=39 // pred_check
          %p338 = pneg %p79
        $region46: #{cogvideox_block.7} parent=39 // pred_check_branch
          %340 = sbr.rel (%p338) target = $region48
        $region47: #{cogvideox_block.7} parent=39 // pred_region
          %p341 = scmp.lt.s32.totalorder %s26, 1
          %s342 = scalar_select %p341, %s26, 1
          %s343 = scalar_lea.vmem %s1, %s342
        $region48: #{cogvideox_block.7} parent=39 // pred_fallthru
          _
        // Predicated region
        $region49: #{cogvideox_block.7} parent=39 // pred_check
          %p344 = pneg %p105
        $region50: #{cogvideox_block.7} parent=39 // pred_check_branch
          %346 = sbr.rel (%p344) target = $region52
        $region51: #{cogvideox_block.7} parent=39 // pred_region
          %p347 = scmp.lt.s32.totalorder %s26, 1
          %s348 = scalar_select %p347, %s26, 1
          %s349 = scalar_lea.vmem %s2, %s348
        $region52: #{cogvideox_block.7} parent=39 // pred_fallthru
          _
        // Predicated region
        $region53: #{cogvideox_block.7} parent=39 // pred_check
          %p350 = pneg %p131
        $region54: #{cogvideox_block.7} parent=39 // pred_check_branch
          %352 = sbr.rel (%p350) target = $region56
        $region55: #{cogvideox_block.7} parent=39 // pred_region
          %p353 = scmp.lt.s32.totalorder %s26, 1
          %s354 = scalar_select %p353, %s26, 1
          %s355 = scalar_lea.vmem %s3, %s354
        $region56: #{cogvideox_block.7} parent=39 // pred_fallthru
          _
      $region40: #{cogvideox_block.7} parent=5 // pred_fallthru
        _
      %p356 = scmp.le.s32.totalorder 1, %s19
      %p357 = scmp.lt.s32.totalorder %s19, 3
      %p358 = pnand %p356, %p357
      %p359 = pneg %p358
      // Predicated region
      $region57: #{cogvideox_block.7} parent=5 // pred_check
        _
      $region58: #{cogvideox_block.7} parent=5 // pred_check_branch
        %361 = sbr.rel (%p358) target = $region60
      $region59: #{cogvideox_block.7} parent=5 // pred_region
        %s362 = ssub.s32 %s19, 1
        %p363 = scmp.lt.s32.totalorder %s28, 1
        %s364 = scalar_select %p363, %s28, 1
        %p365 = scmp.lt.s32.totalorder %s29, 0
        %s366 = scalar_select %p365, %s29, 0
        %s367 = sadd.s32 %s366, %s364
        %s368 = smul.addr %s367, 8
        %s369 = scalar_lea.vmem %s0, %s368
        %p370 = pneg %p59
        %p371 = pneg %p56
        %p372 = scmp.lt.s32.totalorder %s28, 1
        %s373 = scalar_select %p372, %s28, 1
        %s374 = scalar_lea.vmem %s1, %s373
        %p375 = pneg %p85
        %p376 = pneg %p82
        %p377 = scmp.lt.s32.totalorder %s28, 1
        %s378 = scalar_select %p377, %s28, 1
        %s379 = scalar_lea.vmem %s2, %s378
        %p380 = pneg %p111
        %p381 = pneg %p108
        %p382 = scmp.lt.s32.totalorder %s28, 1
        %s383 = scalar_select %p382, %s28, 1
        %s384 = scalar_lea.vmem %s3, %s383
        %p385 = pneg %p137
        %p386 = pneg %p134
        %p387 = pneg %p158
        %p388 = pneg %p155
        %p389 = pneg %p179
        %p390 = pneg %p176
        %p391 = pneg %p200
        %p392 = pneg %p197
        %p393 = pneg %p221
        %p394 = pneg %p218
        %p395 = pneg %p242
        %p396 = pneg %p239
        %p397 = pneg %p263
        %p398 = pneg %p260
        %p399 = pneg %p291
        %p400 = pneg %p288
        %s401 = sand.u32 %s278, 1
        %s402 = scalar_lea.sflag [#allocation3], %s401
        %s403 = sand.u32 %s278, 1
        %s404 = smul.addr %s403, 8
        %s405 = scalar_lea.vmem [#allocation2], %s404
        %p406 = scmp.lt.s32.totalorder %s28, 1
        %s407 = scalar_select %p406, %s28, 1
        %p408 = scmp.lt.s32.totalorder %s29, 0
        %s409 = scalar_select %p408, %s29, 0
        %s410 = sadd.s32 %s409, %s407
        %s411 = smul.addr %s410, 8
        %s412 = scalar_lea.vmem %s0, %s411
        %p413 = scmp.lt.s32.totalorder %s28, 1
        %s414 = scalar_select %p413, %s28, 1
        %s415 = scalar_lea.vmem %s1, %s414
        %p416 = scmp.lt.s32.totalorder %s28, 1
        %s417 = scalar_select %p416, %s28, 1
        %s418 = scalar_lea.vmem %s2, %s417
        %p419 = scmp.lt.s32.totalorder %s28, 1
        %s420 = scalar_select %p419, %s28, 1
        %s421 = scalar_lea.vmem %s3, %s420
        %v423 = vld [vmem:[%s412] sm:$0xff]
        %v424 = vld [vmem:[%s4] sm:$0x1]
        %v425 = vld [vmem:[%s5] sm:$0x1]
        %vm426 = vcmask 261120
        %v427 = vsel %vm426, %v423, 0.0
        %428 = vadd.xlane.f32.xlu0 %v427
        %v429 = vpop.xlane.xlu0 %428
        %v430 = vrcp.pop 32.0
        %v431 = vmul.f32 32.0, %v430
        %v432 = vsub.f32 1.0, %v431
        %v433 = vmul.f32 %v430, %v432
        %v434 = vadd.f32 %v430, %v433
        %vm435 = vweird.f32 %v430
        %v436 = vsel %vm435, %v430, %v434
        %v437 = vmul.f32 %v429, %v436
        %v438 = vsub.f32 %v423, %v437
        %v439 = vmul.f32 %v438, %v438
        %v440 = vsel %vm426, %v439, 0.0
        %441 = vadd.xlane.f32.xlu0 %v440
        %v442 = vpop.xlane.xlu0 %441
        %v443 = vmul.f32 %v442, %v436
        %v444 = vadd.f32 %v443, 1e-05
        %v445 = vrsqrt.pop %v444
        %v446 = vmul.f32 %v445, %v444
        %v447 = vmul.f32 %v446, %v445
        %v448 = vmul.f32 0.5, %v447
        %v449 = vsub.f32 1.5, %v448
        %v450 = vmul.f32 %v445, %v449
        %vm451 = vweird.f32 %v444
        %vm452 = vweird.f32 %v445
        %vm453 = vmor %vm451, %vm452
        %v454 = vsel %vm453, %v445, %v450
        %v455 = vmul.f32 %v438, %v454
        %v457 = vperm.slane %v424, 0
        %v459 = vmul.f32 %v455, %v457
        %v461 = vperm.slane %v425, 0
        %v463 = vadd.f32 %v459, %v461
        %v464 = vld [vmem:[%s418] sm:$0x1]
        %v465 = vadd.f32 %v464, 1.0
        %v467 = vperm.slane %v465, 0
        %v469 = vmul.f32 %v463, %v467
        %v470 = vld [vmem:[%s415] sm:$0x1]
        %v472 = vperm.slane %v470, 0
        %v474 = vadd.f32 %v469, %v472
        %v475 = vpack.c.bf16 %v474, %v474
        %v476 = vld [vmem:[%s6] sm:$0xf]
        %v477 = vld [vmem:[%s6 + $0x4] sm:$0xf]
        %v478 = vld [vmem:[%s6 + $0x8] sm:$0xf]
        %v479 = vld [vmem:[%s6 + $0xc] sm:$0xf]
        %v480 = vld [vmem:[%s7] sm:$0x1]
        %v482 = vperm.slane %v480, 0
        %v488 = vunpack.c.l.b16 %v476
        %v489 = vunpack.c.l.b16 %v477
        %v490 = vunpack.c.l.b16 %v478
        %v491 = vunpack.c.l.b16 %v479
        %v492 = vpack.c.b16 %v489, %v488
        %v493 = vpack.c.b16 %v491, %v490
        %v497 = vsel %vm426, %v475, 0
        %499 = vmatpush.bf16.msra.mxu0 0
        %500 = vmatpush.bf16.msra.mxu0 0
        %501 = vmatpush.bf16.msra.mxu0 0
        %502 = vmatpush.bf16.msra.mxu0 0
        %503 = vmatpush.bf16.msra.mxu0 0
        %504 = vmatpush.bf16.msra.mxu0 0
        %505 = vmatpush.bf16.msra.mxu0 %v493
        %506 = vmatpush.bf16.msra.mxu0 %v492
        %507 = vmatmul.bf16.gmra.mxu0 %v497
        %v508 = vpop.f32.mrf.mxu0
        %v509 = vadd.f32 %v482, %v508
        %v510 = vpop.f32.mrf.mxu0
        %511 = vdwg.mxu0
        %v512 = vmul.f32 %v509, 0.5
        %v513 = vmul.f32 %v509, 0.044715
        %v514 = vmul.f32 %v513, %v509
        %v515 = vmul.f32 %v514, %v509
        %v516 = vadd.f32 %v509, %v515
        %v517 = vmul.f32 %v516, 0.7978846
        %v518 = vtanh.pop %v517
        %v519 = vadd.f32 %v518, 1.0
        %v520 = vmul.f32 %v512, %v519
        %v521 = vpack.c.bf16 %v520, %v520
        %v522 = vld [vmem:[%s8] sm:$0xf]
        %v523 = vld [vmem:[%s8 + $0x4] sm:$0xf]
        %v524 = vld [vmem:[%s8 + $0x8] sm:$0xf]
        %v525 = vld [vmem:[%s8 + $0xc] sm:$0xf]
        %v526 = vld [vmem:[%s8 + $0x10] sm:$0xf]
        %v527 = vld [vmem:[%s8 + $0x14] sm:$0xf]
        %v528 = vld [vmem:[%s8 + $0x18] sm:$0xf]
        %v529 = vld [vmem:[%s8 + $0x1c] sm:$0xf]
        %v530 = vld [vmem:[%s8 + $0x20] sm:$0xf]
        %v531 = vld [vmem:[%s8 + $0x24] sm:$0xf]
        %v532 = vld [vmem:[%s8 + $0x28] sm:$0xf]
        %v533 = vld [vmem:[%s8 + $0x2c] sm:$0xf]
        %v534 = vld [vmem:[%s8 + $0x30] sm:$0xf]
        %v535 = vld [vmem:[%s8 + $0x34] sm:$0xf]
        %v536 = vld [vmem:[%s8 + $0x38] sm:$0xf]
        %v537 = vld [vmem:[%s8 + $0x3c] sm:$0xf]
        %v538 = vld [vmem:[%s9] sm:$0x1]
        %v540 = vperm.slane %v538, 0
        %v558 = vunpack.c.l.b16 %v522
        %v559 = vunpack.c.l.b16 %v523
        %v560 = vunpack.c.l.b16 %v524
        %v561 = vunpack.c.l.b16 %v525
        %v562 = vunpack.c.l.b16 %v526
        %v563 = vunpack.c.l.b16 %v527
        %v564 = vunpack.c.l.b16 %v528
        %v565 = vunpack.c.l.b16 %v529
        %v566 = vunpack.c.l.b16 %v530
        %v567 = vunpack.c.l.b16 %v531
        %v568 = vunpack.c.l.b16 %v532
        %v569 = vunpack.c.l.b16 %v533
        %v570 = vunpack.c.l.b16 %v534
        %v571 = vunpack.c.l.b16 %v535
        %v572 = vunpack.c.l.b16 %v536
        %v573 = vunpack.c.l.b16 %v537
        %v574 = vpack.c.b16 %v559, %v558
        %v575 = vpack.c.b16 %v561, %v560
        %v576 = vpack.c.b16 %v563, %v562
        %v577 = vpack.c.b16 %v565, %v564
        %v578 = vpack.c.b16 %v567, %v566
        %v579 = vpack.c.b16 %v569, %v568
        %v580 = vpack.c.b16 %v571, %v570
        %v581 = vpack.c.b16 %v573, %v572
        %590 = vmatpush.bf16.msra.mxu0 %v581
        %591 = vmatpush.bf16.msra.mxu0 %v580
        %592 = vmatpush.bf16.msra.mxu0 %v579
        %593 = vmatpush.bf16.msra.mxu0 %v578
        %594 = vmatpush.bf16.msra.mxu0 %v577
        %595 = vmatpush.bf16.msra.mxu0 %v576
        %596 = vmatpush.bf16.msra.mxu0 %v575
        %597 = vmatpush.bf16.msra.mxu0 %v574
        %598 = vmatmul.bf16.gmra.mxu0 %v521
        %v599 = vpop.f32.mrf.mxu0
        %v600 = vadd.f32 %v540, %v599
        %v601 = vpop.f32.mrf.mxu0
        %602 = vdwg.mxu0
        %v603 = vld [vmem:[%s421] sm:$0x1]
        %v605 = vperm.slane %v603, 0
        %v607 = vmul.f32 %v605, %v600
        %v608 = vadd.f32 %v423, %v607
        %609 = vst.msk [vmem:[%s405] sm:$0xff] %vm426, %v608
        %s610 = sand.u32 %s278, 1
        %s611 = scalar_lea.sflag [#allocation3], %s610
        %s612 = sand.u32 %s278, 1
        %s613 = smul.addr %s612, 8
        %s614 = scalar_lea.vmem [#allocation2], %s613
        // Predicated region
        $region61: #{cogvideox_block.7} parent=59 // pred_check
          %p615 = pneg %p288
        $region62: #{cogvideox_block.7} parent=59 // pred_check_branch
          %617 = sbr.rel (%p615) target = $region64
        $region63: #{cogvideox_block.7} parent=59 // pred_region
          %619 = vsyncadd %s611, 0
          %s620 = sadd.s32 %s29, %s28
          %s621 = smul.addr %s620, 8
          %s622 = scalar_lea.hbm %s10, %s621
          %s624 = sshll.u32 %s614, 4
          %s625 = int_to_ptr.vmem [resolvable:$true] %s624
          %s626 = sshll.u32 %s622, 4
          %s627 = int_to_ptr.hbm [resolvable:$true] %s626
          %629 = dma.vmem_to_hbm [thread:$0]  %s625, 128, %s627, %s611
        $region64: #{cogvideox_block.7} parent=59 // pred_fallthru
          _
      $region60: #{cogvideox_block.7} parent=5 // pred_fallthru
        _
      %p630 = scmp.le.s32.totalorder 2, %s19
      // Predicated region
      $region65: #{cogvideox_block.7} parent=5 // pred_check
        %p631 = pneg %p630
      $region66: #{cogvideox_block.7} parent=5 // pred_check_branch
        %633 = sbr.rel (%p631) target = $region68
      $region67: #{cogvideox_block.7} parent=5 // pred_region
        %s634 = ssub.s32 %s19, 2
        // Predicated region
        $region69: #{cogvideox_block.7} parent=67 // pred_check
          %p635 = pneg %p294
        $region70: #{cogvideox_block.7} parent=67 // pred_check_branch
          %637 = sbr.rel (%p635) target = $region72
        $region71: #{cogvideox_block.7} parent=67 // pred_region
          %s638 = sand.u32 %s279, 1
          %s639 = scalar_lea.sflag [#allocation3], %s638
          %s640 = sand.u32 %s279, 1
          %s641 = smul.addr %s640, 8
          %s642 = scalar_lea.vmem [#allocation2], %s641
          %644 = dma.done %s639, 128
        $region72: #{cogvideox_block.7} parent=67 // pred_fallthru
          _
      $region68: #{cogvideox_block.7} parent=5 // pred_fallthru
        _
    $region6: #{cogvideox_block.7} parent=1 // loop_footer
      %s23 = sadd.s32 1, %s19
    $region7: #{cogvideox_block.7} parent=1 // loop_footer_branch
      %18 = sbr.rel target = $region3
    $region8: #{cogvideox_block.7} parent=1 // loop_exit
      _
    %645 = vsyncpa [#allocation3], 1
    %s646 = scalar_lea.sflag [#allocation3], 1
    %647 = vsyncpa %s646, 1

// kernel: cogvideox_block.6
$region0: #{cogvideox_block.6}
  #allocation0 [shape = 'u32[]', space=smem, size = 0x4, offset = 0x4, fixed_abs, tag = 'smem constant byte address 0x4 - core index']
  #allocation1 [shape = 'u32[72,128]{1,0:T(1,128)}', space=vmem, size = 0x9000, scoped, tag = 'internal scratch']
  %s0 = inlined_call_operand.vmem [shape: f32[2,16,32], index: 0, kind: input, shape index: {}]
  %s1 = inlined_call_operand.vmem [shape: f32[2,1,32], index: 1, kind: input, shape index: {}]
  %s2 = inlined_call_operand.vmem [shape: f32[2,1,32], index: 2, kind: input, shape index: {}]
  %s3 = inlined_call_operand.vmem [shape: f32[2,1,32], index: 3, kind: input, shape index: {}]
  %s4 = inlined_call_operand.vmem [shape: f32[1,32], index: 4, kind: input, shape index: {}]
  %s5 = inlined_call_operand.vmem [shape: f32[1,32], index: 5, kind: input, shape index: {}]
  %s6 = inlined_call_operand.vmem [shape: bf16[32,128], index: 6, kind: input, shape index: {}]
  %s7 = inlined_call_operand.vmem [shape: f32[1,128], index: 7, kind: input, shape index: {}]
  %s8 = inlined_call_operand.vmem [shape: bf16[128,32], index: 8, kind: input, shape index: {}]
  %s9 = inlined_call_operand.vmem [shape: f32[1,32], index: 9, kind: input, shape index: {}]
  %s10 = inlined_call_operand.hbm [shape: f32[2,16,32], index: 10, kind: output, shape index: {}]
  %s11 = sld [smem:[#allocation0]]
  $region73: #{cogvideox_block.6} parent=0
    _
  %s13 = ssub.s32 1, %s11
  %s14 = scalar_select 0, %s13, %s11
  $region1: #{cogvideox_block.6} parent=0
    #allocation2 [shape = 'u8[16384]{0}', space=vmem, size = 0x4000, scoped, tag = 'output window, operand 0']
    #allocation3 [shape = 's32[2]{0}', space=sflag, size = 0x8, scoped, tag = 'scoped memory for cogvideox_block.6']
    %15 = vsyncpa [#allocation3], 0
    %s16 = scalar_lea.sflag [#allocation3], 1
    %17 = vsyncpa %s16, 0
    loop: start=0, step=1, limit=4
    $region2: #{cogvideox_block.6} parent=1 // loop_pre_header
      _
    $region3: #{cogvideox_block.6} parent=1 // loop_header
      %s19 = sphi 0, %s23
      %p20 = scmp.ge.s32.totalorder %s19, 4
      %s26 = sphi 0, %s38
      %s27 = sphi 0, %s34
      %s28 = sphi 0, %s26
      %s29 = sphi 0, %s27
      %s30 = sphi 0, %s28
      %s31 = sphi 0, %s29
      %s43 = sphi 0, %s45
      %s46 = sphi 0, %s43
      %s47 = sphi 0, %s46
      %s63 = sphi 0, %s47
      %s69 = sphi 0, %s71
      %s72 = sphi 0, %s69
      %s73 = sphi 0, %s72
      %s89 = sphi 0, %s73
      %s95 = sphi 0, %s97
      %s98 = sphi 0, %s95
      %s99 = sphi 0, %s98
      %s115 = sphi 0, %s99
      %s121 = sphi 0, %s123
      %s124 = sphi 0, %s121
      %s125 = sphi 0, %s124
      %s141 = sphi 0, %s125
      %s145 = sphi 0, %s145
      %s147 = sphi 0, %s145
      %s148 = sphi 0, %s147
      %s162 = sphi 0, %s148
      %s166 = sphi 0, %s166
      %s168 = sphi 0, %s166
      %s169 = sphi 0, %s168
      %s183 = sphi 0, %s169
      %s187 = sphi 0, %s187
      %s189 = sphi 0, %s187
      %s190 = sphi 0, %s189
      %s204 = sphi 0, %s190
      %s208 = sphi 0, %s208
      %s210 = sphi 0, %s208
      %s211 = sphi 0, %s210
      %s225 = sphi 0, %s211
      %s229 = sphi 0, %s229
      %s231 = sphi 0, %s229
      %s232 = sphi 0, %s231
      %s246 = sphi 0, %s232
      %s250 = sphi 0, %s250
      %s252 = sphi 0, %s250
      %s253 = sphi 0, %s252
      %s267 = sphi 0, %s253
      %s275 = sphi 0, %s277
      %s278 = sphi 0, %s275
      %s279 = sphi 0, %s278
      %s295 = sphi 0, %s279
    $region4: #{cogvideox_block.6} parent=1 // loop_header_branch
      %22 = sbr.rel (%p20) target = $region8
    $region5: #{cogvideox_block.6} parent=1 // loop_body
      %s24 = ssub.s32 %s19, 1
      %s25 = ssub.s32 %s19, 2
      %s32 = sadd.s32 1, %s27
      %p33 = scmp.ge.s32.totalorder %s32, 1
      %s34 = scalar_select %p33, 0, %s32
      %s35 = sadd.s32 1, %s26
      %s36 = scalar_select %p33, %s35, %s26
      %p37 = scmp.ge.s32.totalorder %s36, 2
      %s38 = scalar_select %p37, 0, %s36
      %s39 = ssub.s32 %s26, %s38
      %s40 = ssub.s32 %s27, %s34
      %s41 = sor.u32 %s39, %s40
      %p42 = scmp.eq.s32.totalorder %s41, 0
      %s44 = sadd.s32 %s43, 1
      %s45 = scalar_select %p42, %s43, %s44
      %p48 = pneg %p42
      %p49 = scmp.eq.s32.totalorder %s19, 1
      %p50 = por %p48, %p49
      %p51 = scmp.ne.s32.totalorder %s43, %s46
      %p52 = scmp.eq.s32.totalorder %s19, 0
      %p53 = por %p51, %p52
      %p54 = scmp.ne.s32.totalorder %s43, %s46
      %p55 = scmp.eq.s32.totalorder %s24, 1
      %p56 = por %p54, %p55
      %p57 = scmp.ne.s32.totalorder %s46, %s47
      %p58 = scmp.eq.s32.totalorder %s24, 0
      %p59 = por %p57, %p58
      %p60 = scmp.ne.s32.totalorder %s46, %s47
      %p61 = scmp.eq.s32.totalorder %s25, 1
      %p62 = por %p60, %p61
      %p64 = scmp.ne.s32.totalorder %s47, %s63
      %p65 = scmp.eq.s32.totalorder %s25, 0
      %p66 = por %p64, %p65
      %s67 = ssub.s32 %s26, %s38
      %p68 = scmp.eq.s32.totalorder %s67, 0
      %s70 = sadd.s32 %s69, 1
      %s71 = scalar_select %p68, %s69, %s70
      %p74 = pneg %p68
      %p75 = scmp.eq.s32.totalorder %s19, 1
      %p76 = por %p74, %p75
      %p77 = scmp.ne.s32.totalorder %s69, %s72
      %p78 = scmp.eq.s32.totalorder %s19, 0
      %p79 = por %p77, %p78
      %p80 = scmp.ne.s32.totalorder %s69, %s72
      %p81 = scmp.eq.s32.totalorder %s24, 1
      %p82 = por %p80, %p81
      %p83 = scmp.ne.s32.totalorder %s72, %s73
      %p84 = scmp.eq.s32.totalorder %s24, 0
      %p85 = por %p83, %p84
      %p86 = scmp.ne.s32.totalorder %s72, %s73
      %p87 = scmp.eq.s32.totalorder %s25, 1
      %p88 = por %p86, %p87
      %p90 = scmp.ne.s32.totalorder %s73, %s89
      %p91 = scmp.eq.s32.totalorder %s25, 0
      %p92 = por %p90, %p91
      %s93 = ssub.s32 %s26, %s38
      %p94 = scmp.eq.s32.totalorder %s93, 0
      %s96 = sadd.s32 %s95, 1
      %s97 = scalar_select %p94, %s95, %s96
      %p100 = pneg %p94
      %p101 = scmp.eq.s32.totalorder %s19, 1
      %p102 = por %p100, %p101
      %p103 = scmp.ne.s32.totalorder %s95, %s98
      %p104 = scmp.eq.s32.totalorder %s19, 0
      %p105 = por %p103, %p104
      %p106 = scmp.ne.s32.totalorder %s95, %s98
      %p107 = scmp.eq.s32.totalorder %s24, 1
      %p108 = por %p106, %p107
      %p109 = scmp.ne.s32.totalorder %s98, %s99
      %p110 = scmp.eq.s32.totalorder %s24, 0
      %p111 = por %p109, %p110
      %p112 = scmp.ne.s32.totalorder %s98, %s99
      %p113 = scmp.eq.s32.totalorder %s25, 1
      %p114 = por %p112, %p113
      %p116 = scmp.ne.s32.totalorder %s99, %s115
      %p117 = scmp.eq.s32.totalorder %s25, 0
      %p118 = por %p116, %p117
      %s119 = ssub.s32 %s26, %s38
      %p120 = scmp.eq.s32.totalorder %s119, 0
      %s122 = sadd.s32 %s121, 1
      %s123 = scalar_select %p120, %s121, %s122
      %p126 = pneg %p120
      %p127 = scmp.eq.s32.totalorder %s19, 1
      %p128 = por %p126, %p127
      %p129 = scmp.ne.s32.totalorder %s121, %s124
      %p130 = scmp.eq.s32.totalorder %s19, 0
      %p131 = por %p129, %p130
      %p132 = scmp.ne.s32.totalorder %s121, %s124
      %p133 = scmp.eq.s32.totalorder %s24, 1
      %p134 = por %p132, %p133
      %p135 = scmp.ne.s32.totalorder %s124, %s125
      %p136 = scmp.eq.s32.totalorder %s24, 0
      %p137 = por %p135, %p136
      %p138 = scmp.ne.s32.totalorder %s124, %s125
      %p139 = scmp.eq.s32.totalorder %s25, 1
      %p140 = por %p138, %p139
      %p142 = scmp.ne.s32.totalorder %s125, %s141
      %p143 = scmp.eq.s32.totalorder %s25, 0
      %p144 = por %p142, %p143
      %s146 = sadd.s32 %s145, 1
      %p149 = scmp.eq.s32.totalorder %s19, 1
      %p150 = scmp.ne.s32.totalorder %s145, %s147
      %p151 = scmp.eq.s32.totalorder %s19, 0
      %p152 = por %p150, %p151
      %p153 = scmp.ne.s32.totalorder %s145, %s147
      %p154 = scmp.eq.s32.totalorder %s24, 1
      %p155 = por %p153, %p154
      %p156 = scmp.ne.s32.totalorder %s147, %s148
      %p157 = scmp.eq.s32.totalorder %s24, 0
      %p158 = por %p156, %p157
      %p159 = scmp.ne.s32.totalorder %s147, %s148
      %p160 = scmp.eq.s32.totalorder %s25, 1
      %p161 = por %p159, %p160
      %p163 = scmp.ne.s32.totalorder %s148, %s162
      %p164 = scmp.eq.s32.totalorder %s25, 0
      %p165 = por %p163, %p164
      %s167 = sadd.s32 %s166, 1
      %p170 = scmp.eq.s32.totalorder %s19, 1
      %p171 = scmp.ne.s32.totalorder %s166, %s168
      %p172 = scmp.eq.s32.totalorder %s19, 0
      %p173 = por %p171, %p172
      %p174 = scmp.ne.s32.totalorder %s166, %s168
      %p175 = scmp.eq.s32.totalorder %s24, 1
      %p176 = por %p174, %p175
      %p177 = scmp.ne.s32.totalorder %s168, %s169
      %p178 = scmp.eq.s32.totalorder %s24, 0
      %p179 = por %p177, %p178
      %p180 = scmp.ne.s32.totalorder %s168, %s169
      %p181 = scmp.eq.s32.totalorder %s25, 1
      %p182 = por %p180, %p181
      %p184 = scmp.ne.s32.totalorder %s169, %s183
      %p185 = scmp.eq.s32.totalorder %s25, 0
      %p186 = por %p184, %p185
      %s188 = sadd.s32 %s187, 1
      %p191 = scmp.eq.s32.totalorder %s19, 1
      %p192 = scmp.ne.s32.totalorder %s187, %s189
      %p193 = scmp.eq.s32.totalorder %s19, 0
      %p194 = por %p192, %p193
      %p195 = scmp.ne.s32.totalorder %s187, %s189
      %p196 = scmp.eq.s32.totalorder %s24, 1
      %p197 = por %p195, %p196
      %p198 = scmp.ne.s32.totalorder %s189, %s190
      %p199 = scmp.eq.s32.totalorder %s24, 0
      %p200 = por %p198, %p199
      %p201 = scmp.ne.s32.totalorder %s189, %s190
      %p202 = scmp.eq.s32.totalorder %s25, 1
      %p203 = por %p201, %p202
      %p205 = scmp.ne.s32.totalorder %s190, %s204
      %p206 = scmp.eq.s32.totalorder %s25, 0
      %p207 = por %p205, %p206
      %s209 = sadd.s32 %s208, 1
      %p212 = scmp.eq.s32.totalorder %s19, 1
      %p213 = scmp.ne.s32.totalorder %s208, %s210
      %p214 = scmp.eq.s32.totalorder %s19, 0
      %p215 = por %p213, %p214
      %p216 = scmp.ne.s32.totalorder %s208, %s210
      %p217 = scmp.eq.s32.totalorder %s24, 1
      %p218 = por %p216, %p217
      %p219 = scmp.ne.s32.totalorder %s210, %s211
      %p220 = scmp.eq.s32.totalorder %s24, 0
      %p221 = por %p219, %p220
      %p222 = scmp.ne.s32.totalorder %s210, %s211
      %p223 = scmp.eq.s32.totalorder %s25, 1
      %p224 = por %p222, %p223
      %p226 = scmp.ne.s32.totalorder %s211, %s225
      %p227 = scmp.eq.s32.totalorder %s25, 0
      %p228 = por %p226, %p227
      %s230 = sadd.s32 %s229, 1
      %p233 = scmp.eq.s32.totalorder %s19, 1
      %p234 = scmp.ne.s32.totalorder %s229, %s231
      %p235 = scmp.eq.s32.totalorder %s19, 0
      %p236 = por %p234, %p235
      %p237 = scmp.ne.s32.totalorder %s229, %s231
      %p238 = scmp.eq.s32.totalorder %s24, 1
      %p239 = por %p237, %p238
      %p240 = scmp.ne.s32.totalorder %s231, %s232
      %p241 = scmp.eq.s32.totalorder %s24, 0
      %p242 = por %p240, %p241
      %p243 = scmp.ne.s32.totalorder %s231, %s232
      %p244 = scmp.eq.s32.totalorder %s25, 1
      %p245 = por %p243, %p244
      %p247 = scmp.ne.s32.totalorder %s232, %s246
      %p248 = scmp.eq.s32.totalorder %s25, 0
      %p249 = por %p247, %p248
      %s251 = sadd.s32 %s250, 1
      %p254 = scmp.eq.s32.totalorder %s19, 1
      %p255 = scmp.ne.s32.totalorder %s250, %s252
      %p256 = scmp.eq.s32.totalorder %s19, 0
      %p257 = por %p255, %p256
      %p258 = scmp.ne.s32.totalorder %s250, %s252
      %p259 = scmp.eq.s32.totalorder %s24, 1
      %p260 = por %p258, %p259
      %p261 = scmp.ne.s32.totalorder %s252, %s253
      %p262 = scmp.eq.s32.totalorder %s24, 0
      %p263 = por %p261, %p262
      %p264 = scmp.ne.s32.totalorder %s252, %s253
      %p265 = scmp.eq.s32.totalorder %s25, 1
      %p266 = por %p264, %p265
      %p268 = scmp.ne.s32.totalorder %s253, %s267
      %p269 = scmp.eq.s32.totalorder %s25, 0
      %p270 = por %p268, %p269
      %s271 = ssub.s32 %s26, %s38
      %s272 = ssub.s32 %s27, %s34
      %s273 = sor.u32 %s271, %s272
      %p274 = scmp.eq.s32.totalorder %s273, 0
      %s276 = sadd.s32 %s275, 1
      %s277 = scalar_select %p274, %s275, %s276
      %p280 = pneg %p274
      %p281 = scmp.eq.s32.totalorder %s19, 1
      %p282 = por %p280, %p281
      %p283 = scmp.ne.s32.totalorder %s275, %s278
      %p284 = scmp.eq.s32.totalorder %s19, 0
      %p285 = por %p283, %p284
      %p286 = scmp.ne.s32.totalorder %s275, %s278
      %p287 = scmp.eq.s32.totalorder %s24, 1
      %p288 = por %p286, %p287
      %p289 = scmp.ne.s32.totalorder %s278, %s279
      %p290 = scmp.eq.s32.totalorder %s24, 0
      %p291 = por %p289, %p290
      %p292 = scmp.ne.s32.totalorder %s278, %s279
      %p293 = scmp.eq.s32.totalorder %s25, 1
      %p294 = por %p292, %p293
      %p296 = scmp.ne.s32.totalorder %s279, %s295
      %p297 = scmp.eq.s32.totalorder %s25, 0
      %p298 = por %p296, %p297
      %p299 = scmp.le.s32.totalorder 1, %s19
      %p300 = scmp.lt.s32.totalorder %s19, 3
      %p301 = pnand %p299, %p300
      %p302 = pneg %p301
      // Predicated region
      $region9: #{cogvideox_block.6} parent=5 // pred_check
        _
      $region10: #{cogvideox_block.6} parent=5 // pred_check_branch
        %304 = sbr.rel (%p301) target = $region12
      $region11: #{cogvideox_block.6} parent=5 // pred_region
        %s305 = ssub.s32 %s19, 1
        // Predicated region
        $region13: #{cogvideox_block.6} parent=11 // pred_check
          %p306 = pneg %p158
        $region14: #{cogvideox_block.6} parent=11 // pred_check_branch
          %308 = sbr.rel (%p306) target = $region16
        $region15: #{cogvideox_block.6} parent=11 // pred_region
          _
        $region16: #{cogvideox_block.6} parent=11 // pred_fallthru
          _
        // Predicated region
        $region17: #{cogvideox_block.6} parent=11 // pred_check
          %p309 = pneg %p179
        $region18: #{cogvideox_block.6} parent=11 // pred_check_branch
          %311 = sbr.rel (%p309) target = $region20
        $region19: #{cogvideox_block.6} parent=11 // pred_region
          _
        $region20: #{cogvideox_block.6} parent=11 // pred_fallthru
          _
        // Predicated region
        $region21: #{cogvideox_block.6} parent=11 // pred_check
          %p312 = pneg %p200
        $region22: #{cogvideox_block.6} parent=11 // pred_check_branch
          %314 = sbr.rel (%p312) target = $region24
        $region23: #{cogvideox_block.6} parent=11 // pred_region
          _
        $region24: #{cogvideox_block.6} parent=11 // pred_fallthru
          _
        // Predicated region
        $region25: #{cogvideox_block.6} parent=11 // pred_check
          %p315 = pneg %p221
        $region26: #{cogvideox_block.6} parent=11 // pred_check_branch
          %317 = sbr.rel (%p315) target = $region28
        $region27: #{cogvideox_block.6} parent=11 // pred_region
          _
        $region28: #{cogvideox_block.6} parent=11 // pred_fallthru
          _
        // Predicated region
        $region29: #{cogvideox_block.6} parent=11 // pred_check
          %p318 = pneg %p242
        $region30: #{cogvideox_block.6} parent=11 // pred_check_branch
          %320 = sbr.rel (%p318) target = $region32
        $region31: #{cogvideox_block.6} parent=11 // pred_region
          _
        $region32: #{cogvideox_block.6} parent=11 // pred_fallthru
          _
        // Predicated region
        $region33: #{cogvideox_block.6} parent=11 // pred_check
          %p321 = pneg %p263
        $region34: #{cogvideox_block.6} parent=11 // pred_check_branch
          %323 = sbr.rel (%p321) target = $region36
        $region35: #{cogvideox_block.6} parent=11 // pred_region
          _
        $region36: #{cogvideox_block.6} parent=11 // pred_fallthru
          _
      $region12: #{cogvideox_block.6} parent=5 // pred_fallthru
        _
      %p324 = scmp.lt.s32.totalorder %s19, 2
      // Predicated region
      $region37: #{cogvideox_block.6} parent=5 // pred_check
        %p325 = pneg %p324
      $region38: #{cogvideox_block.6} parent=5 // pred_check_branch
        %327 = sbr.rel (%p325) target = $region40
      $region39: #{cogvideox_block.6} parent=5 // pred_region
        // Predicated region
        $region41: #{cogvideox_block.6} parent=39 // pred_check
          %p328 = pneg %p53
        $region42: #{cogvideox_block.6} parent=39 // pred_check_branch
          %330 = sbr.rel (%p328) target = $region44
        $region43: #{cogvideox_block.6} parent=39 // pred_region
          %s331 = smul.u32 2, %s27
          %p332 = scmp.lt.s32.totalorder %s26, 1
          %s333 = scalar_select %p332, %s26, 1
          %p334 = scmp.lt.s32.totalorder %s331, 1
          %s335 = scalar_select %p334, %s331, 1
          %s336 = smul.addr %s333, 2
          %s337 = sadd.s32 %s335, %s336
          %s338 = smul.addr %s337, 8
          %s339 = scalar_lea.vmem %s0, %s338
          %s340 = smul.u32 2, %s27
        $region44: #{cogvideox_block.6} parent=39 // pred_fallthru
          _
        // Predicated region
        $region45: #{cogvideox_block.6} parent=39 // pred_check
          %p341 = pneg %p79
        $region46: #{cogvideox_block.6} parent=39 // pred_check_branch
          %343 = sbr.rel (%p341) target = $region48
        $region47: #{cogvideox_block.6} parent=39 // pred_region
          %p344 = scmp.lt.s32.totalorder %s26, 1
          %s345 = scalar_select %p344, %s26, 1
          %s346 = scalar_lea.vmem %s1, %s345
        $region48: #{cogvideox_block.6} parent=39 // pred_fallthru
          _
        // Predicated region
        $region49: #{cogvideox_block.6} parent=39 // pred_check
          %p347 = pneg %p105
        $region50: #{cogvideox_block.6} parent=39 // pred_check_branch
          %349 = sbr.rel (%p347) target = $region52
        $region51: #{cogvideox_block.6} parent=39 // pred_region
          %p350 = scmp.lt.s32.totalorder %s26, 1
          %s351 = scalar_select %p350, %s26, 1
          %s352 = scalar_lea.vmem %s2, %s351
        $region52: #{cogvideox_block.6} parent=39 // pred_fallthru
          _
        // Predicated region
        $region53: #{cogvideox_block.6} parent=39 // pred_check
          %p353 = pneg %p131
        $region54: #{cogvideox_block.6} parent=39 // pred_check_branch
          %355 = sbr.rel (%p353) target = $region56
        $region55: #{cogvideox_block.6} parent=39 // pred_region
          %p356 = scmp.lt.s32.totalorder %s26, 1
          %s357 = scalar_select %p356, %s26, 1
          %s358 = scalar_lea.vmem %s3, %s357
        $region56: #{cogvideox_block.6} parent=39 // pred_fallthru
          _
      $region40: #{cogvideox_block.6} parent=5 // pred_fallthru
        _
      %p359 = scmp.le.s32.totalorder 1, %s19
      %p360 = scmp.lt.s32.totalorder %s19, 3
      %p361 = pnand %p359, %p360
      %p362 = pneg %p361
      // Predicated region
      $region57: #{cogvideox_block.6} parent=5 // pred_check
        _
      $region58: #{cogvideox_block.6} parent=5 // pred_check_branch
        %364 = sbr.rel (%p361) target = $region60
      $region59: #{cogvideox_block.6} parent=5 // pred_region
        %s365 = ssub.s32 %s19, 1
        %s366 = smul.u32 2, %s29
        %p367 = scmp.lt.s32.totalorder %s28, 1
        %s368 = scalar_select %p367, %s28, 1
        %p369 = scmp.lt.s32.totalorder %s366, 1
        %s370 = scalar_select %p369, %s366, 1
        %s371 = smul.addr %s368, 2
        %s372 = sadd.s32 %s370, %s371
        %s373 = smul.addr %s372, 8
        %s374 = scalar_lea.vmem %s0, %s373
        %p375 = pneg %p59
        %p376 = pneg %p56
        %p377 = scmp.lt.s32.totalorder %s28, 1
        %s378 = scalar_select %p377, %s28, 1
        %s379 = scalar_lea.vmem %s1, %s378
        %p380 = pneg %p85
        %p381 = pneg %p82
        %p382 = scmp.lt.s32.totalorder %s28, 1
        %s383 = scalar_select %p382, %s28, 1
        %s384 = scalar_lea.vmem %s2, %s383
        %p385 = pneg %p111
        %p386 = pneg %p108
        %p387 = scmp.lt.s32.totalorder %s28, 1
        %s388 = scalar_select %p387, %s28, 1
        %s389 = scalar_lea.vmem %s3, %s388
        %p390 = pneg %p137
        %p391 = pneg %p134
        %p392 = pneg %p158
        %p393 = pneg %p155
        %p394 = pneg %p179
        %p395 = pneg %p176
        %p396 = pneg %p200
        %p397 = pneg %p197
        %p398 = pneg %p221
        %p399 = pneg %p218
        %p400 = pneg %p242
        %p401 = pneg %p239
        %p402 = pneg %p263
        %p403 = pneg %p260
        %p404 = pneg %p291
        %p405 = pneg %p288
        %s406 = sand.u32 %s278, 1
        %s407 = scalar_lea.sflag [#allocation3], %s406
        %s408 = sand.u32 %s278, 1
        %s409 = smul.addr %s408, 16
        %s410 = scalar_lea.vmem [#allocation2], %s409
        %s411 = smul.u32 2, %s29
        %p412 = scmp.lt.s32.totalorder %s28, 1
        %s413 = scalar_select %p412, %s28, 1
        %p414 = scmp.lt.s32.totalorder %s411, 1
        %s415 = scalar_select %p414, %s411, 1
        %s416 = smul.addr %s413, 2
        %s417 = sadd.s32 %s415, %s416
        %s418 = smul.addr %s417, 8
        %s419 = scalar_lea.vmem %s0, %s418
        %s420 = smul.u32 2, %s29
        %p421 = scmp.lt.s32.totalorder %s28, 1
        %s422 = scalar_select %p421, %s28, 1
        %s423 = scalar_lea.vmem %s1, %s422
        %p424 = scmp.lt.s32.totalorder %s28, 1
        %s425 = scalar_select %p424, %s28, 1
        %s426 = scalar_lea.vmem %s2, %s425
        %p427 = scmp.lt.s32.totalorder %s28, 1
        %s428 = scalar_select %p427, %s28, 1
        %s429 = scalar_lea.vmem %s3, %s428
        %s430 = smul.u32 2, %s29
        %v432 = vld [vmem:[%s419] sm:$0xff]
        %v433 = vld [vmem:[%s419 + $0x8] sm:$0xff]
        %v434 = vld [vmem:[%s4] sm:$0x1]
        %v435 = vld [vmem:[%s5] sm:$0x1]
        %vm436 = vcmask 261120
        %v437 = vsel %vm436, %v432, 0.0
        %438 = vadd.xlane.f32.xlu0 %v437
        %v439 = vpop.xlane.xlu0 %438
        %v440 = vsel %vm436, %v433, 0.0
        %441 = vadd.xlane.f32.xlu0 %v440
        %v442 = vpop.xlane.xlu0 %441
        %v443 = vrcp.pop 32.0
        %v444 = vmul.f32 32.0, %v443
        %v445 = vsub.f32 1.0, %v444
        %v446 = vmul.f32 %v443, %v445
        %v447 = vadd.f32 %v443, %v446
        %vm448 = vweird.f32 %v443
        %v449 = vsel %vm448, %v443, %v447
        %v450 = vmul.f32 %v439, %v449
        %v451 = vmul.f32 %v442, %v449
        %v452 = vsub.f32 %v432, %v450
        %v453 = vsub.f32 %v433, %v451
        %v454 = vmul.f32 %v452, %v452
        %v455 = vmul.f32 %v453, %v453
        %v456 = vsel %vm436, %v454, 0.0
        %457 = vadd.xlane.f32.xlu0 %v456
        %v458 = vpop.xlane.xlu0 %457
        %v459 = vsel %vm436, %v455, 0.0
        %460 = vadd.xlane.f32.xlu0 %v459
        %v461 = vpop.xlane.xlu0 %460
        %v462 = vmul.f32 %v458, %v449
        %v463 = vmul.f32 %v461, %v449
        %v464 = vadd.f32 %v462, 1e-05
        %v465 = vadd.f32 %v463, 1e-05
        %v466 = vrsqrt.pop %v464
        %v467 = vmul.f32 %v466, %v464
        %v468 = vmul.f32 %v467, %v466
        %v469 = vmul.f32 0.5, %v468
        %v470 = vsub.f32 1.5, %v469
        %v471 = vmul.f32 %v466, %v470
        %vm472 = vweird.f32 %v464
        %vm473 = vweird.f32 %v466
        %vm474 = vmor %vm472, %vm473
        %v475 = vsel %vm474, %v466, %v471
        %v476 = vrsqrt.pop %v465
        %v477 = vmul.f32 %v476, %v465
        %v478 = vmul.f32 %v477, %v476
        %v479 = vmul.f32 0.5, %v478
        %v480 = vsub.f32 1.5, %v479
        %v481 = vmul.f32 %v476, %v480
        %vm482 = vweird.f32 %v465
        %vm483 = vweird.f32 %v476
        %vm484 = vmor %vm482, %vm483
        %v485 = vsel %vm484, %v476, %v481
        %v486 = vmul.f32 %v452, %v475
        %v487 = vmul.f32 %v453, %v485
        %v489 = vperm.slane %v434, 0
        %v491 = vmul.f32 %v486, %v489
        %v492 = vmul.f32 %v487, %v489
        %v494 = vperm.slane %v435, 0
        %v496 = vadd.f32 %v491, %v494
        %v497 = vadd.f32 %v492, %v494
        %v498 = vld [vmem:[%s426] sm:$0x1]
        %v499 = vadd.f32 %v498, 1.0
        %v501 = vperm.slane %v499, 0
        %v503 = vmul.f32 %v496, %v501
        %v504 = vmul.f32 %v497, %v501
        %v505 = vld [vmem:[%s423] sm:$0x1]
        %v507 = vperm.slane %v505, 0
        %v509 = vadd.f32 %v503, %v507
        %v510 = vadd.f32 %v504, %v507
        %v511 = vpack.c.bf16 %v510, %v509
        %v512 = vld [vmem:[%s6] sm:$0xf]
        %v513 = vld [vmem:[%s6 + $0x4] sm:$0xf]
        %v514 = vld [vmem:[%s6 + $0x8] sm:$0xf]
        %v515 = vld [vmem:[%s6 + $0xc] sm:$0xf]
        %v516 = vld [vmem:[%s7] sm:$0x1]
        %v518 = vperm.slane %v516, 0
        %v524 = vunpack.c.l.b16 %v512
        %v525 = vunpack.c.l.b16 %v513
        %v526 = vunpack.c.l.b16 %v514
        %v527 = vunpack.c.l.b16 %v515
        %v528 = vpack.c.b16 %v525, %v524
        %v529 = vpack.c.b16 %v527, %v526
        %v533 = vsel %vm436, %v511, 0
        %535 = vmatpush.bf16.msra.mxu0 0
        %536 = vmatpush.bf16.msra.mxu0 0
        %537 = vmatpush.bf16.msra.mxu0 0
        %538 = vmatpush.bf16.msra.mxu0 0
        %539 = vmatpush.bf16.msra.mxu0 0
        %540 = vmatpush.bf16.msra.mxu0 0
        %541 = vmatpush.bf16.msra.mxu0 %v529
        %542 = vmatpush.bf16.msra.mxu0 %v528
        %543 = vmatmul.bf16.gmra.mxu0 %v533
        %v544 = vpop.f32.mrf.mxu0
        %v545 = vadd.f32 %v518, %v544
        %v546 = vpop.f32.mrf.mxu0
        %v547 = vadd.f32 %v518, %v546
        %548 = vdwg.mxu0
        %v549 = vmul.f32 %v545, 0.5
        %v550 = vmul.f32 %v547, 0.5
        %v551 = vmul.f32 %v545, 0.044715
        %v552 = vmul.f32 %v547, 0.044715
        %v553 = vmul.f32 %v551, %v545
        %v554 = vmul.f32 %v552, %v547
        %v555 = vmul.f32 %v553, %v545
        %v556 = vmul.f32 %v554, %v547
        %v557 = vadd.f32 %v545, %v555
        %v558 = vadd.f32 %v547, %v556
        %v559 = vmul.f32 %v557, 0.7978846
        %v560 = vmul.f32 %v558, 0.7978846
        %v561 = vtanh.pop %v559
        %v562 = vtanh.pop %v560
        %v563 = vadd.f32 %v561, 1.0
        %v564 = vadd.f32 %v562, 1.0
        %v565 = vmul.f32 %v549, %v563
        %v566 = vmul.f32 %v550, %v564
        %v567 = vpack.c.bf16 %v566, %v565
        %v568 = vld [vmem:[%s8] sm:$0xf]
        %v569 = vld [vmem:[%s8 + $0x4] sm:$0xf]
        %v570 = vld [vmem:[%s8 + $0x8] sm:$0xf]
        %v571 = vld [vmem:[%s8 + $0xc] sm:$0xf]
        %v572 = vld [vmem:[%s8 + $0x10] sm:$0xf]
        %v573 = vld [vmem:[%s8 + $0x14] sm:$0xf]
        %v574 = vld [vmem:[%s8 + $0x18] sm:$0xf]
        %v575 = vld [vmem:[%s8 + $0x1c] sm:$0xf]
        %v576 = vld [vmem:[%s8 + $0x20] sm:$0xf]
        %v577 = vld [vmem:[%s8 + $0x24] sm:$0xf]
        %v578 = vld [vmem:[%s8 + $0x28] sm:$0xf]
        %v579 = vld [vmem:[%s8 + $0x2c] sm:$0xf]
        %v580 = vld [vmem:[%s8 + $0x30] sm:$0xf]
        %v581 = vld [vmem:[%s8 + $0x34] sm:$0xf]
        %v582 = vld [vmem:[%s8 + $0x38] sm:$0xf]
        %v583 = vld [vmem:[%s8 + $0x3c] sm:$0xf]
        %v584 = vld [vmem:[%s9] sm:$0x1]
        %v586 = vperm.slane %v584, 0
        %v604 = vunpack.c.l.b16 %v568
        %v605 = vunpack.c.l.b16 %v569
        %v606 = vunpack.c.l.b16 %v570
        %v607 = vunpack.c.l.b16 %v571
        %v608 = vunpack.c.l.b16 %v572
        %v609 = vunpack.c.l.b16 %v573
        %v610 = vunpack.c.l.b16 %v574
        %v611 = vunpack.c.l.b16 %v575
        %v612 = vunpack.c.l.b16 %v576
        %v613 = vunpack.c.l.b16 %v577
        %v614 = vunpack.c.l.b16 %v578
        %v615 = vunpack.c.l.b16 %v579
        %v616 = vunpack.c.l.b16 %v580
        %v617 = vunpack.c.l.b16 %v581
        %v618 = vunpack.c.l.b16 %v582
        %v619 = vunpack.c.l.b16 %v583
        %v620 = vpack.c.b16 %v605, %v604
        %v621 = vpack.c.b16 %v607, %v606
        %v622 = vpack.c.b16 %v609, %v608
        %v623 = vpack.c.b16 %v611, %v610
        %v624 = vpack.c.b16 %v613, %v612
        %v625 = vpack.c.b16 %v615, %v614
        %v626 = vpack.c.b16 %v617, %v616
        %v627 = vpack.c.b16 %v619, %v618
        %636 = vmatpush.bf16.msra.mxu0 %v627
        %637 = vmatpush.bf16.msra.mxu0 %v626
        %638 = vmatpush.bf16.msra.mxu0 %v625
        %639 = vmatpush.bf16.msra.mxu0 %v624
        %640 = vmatpush.bf16.msra.mxu0 %v623
        %641 = vmatpush.bf16.msra.mxu0 %v622
        %642 = vmatpush.bf16.msra.mxu0 %v621
        %643 = vmatpush.bf16.msra.mxu0 %v620
        %644 = vmatmul.bf16.gmra.mxu0 %v567
        %v645 = vpop.f32.mrf.mxu0
        %v646 = vadd.f32 %v586, %v645
        %v647 = vpop.f32.mrf.mxu0
        %v648 = vadd.f32 %v586, %v647
        %649 = vdwg.mxu0
        %v650 = vld [vmem:[%s429] sm:$0x1]
        %v652 = vperm.slane %v650, 0
        %v654 = vmul.f32 %v652, %v646
        %v655 = vmul.f32 %v652, %v648
        %v656 = vadd.f32 %v432, %v654
        %v657 = vadd.f32 %v433, %v655
        %658 = vst.msk [vmem:[%s410] sm:$0xff] %vm436, %v656
        %659 = vst.msk [vmem:[%s410 + $0x8] sm:$0xff] %vm436, %v657
        %s660 = sand.u32 %s278, 1
        %s661 = scalar_lea.sflag [#allocation3], %s660
        %s662 = sand.u32 %s278, 1
        %s663 = smul.addr %s662, 16
        %s664 = scalar_lea.vmem [#allocation2], %s663
        // Predicated region
        $region61: #{cogvideox_block.6} parent=59 // pred_check
          %p665 = pneg %p288
        $region62: #{cogvideox_block.6} parent=59 // pred_check_branch
          %667 = sbr.rel (%p665) target = $region64
        $region63: #{cogvideox_block.6} parent=59 // pred_region
          %s668 = smul.u32 2, %s29
          %670 = vsyncadd %s661, 0
          %s671 = smul.addr %s28, 2
          %s672 = sadd.s32 %s668, %s671
          %s673 = smul.addr %s672, 8
          %s674 = scalar_lea.hbm %s10, %s673
          %s675 = sshll.u32 %s664, 4
          %s676 = int_to_ptr.vmem [resolvable:$true] %s675
          %s677 = sshll.u32 %s674, 4
          %s678 = int_to_ptr.hbm [resolvable:$true] %s677
          %683 = dma.vmem_to_hbm [thread:$0]  %s676, 256, %s678, %s661, 128, 128, 8
        $region64: #{cogvideox_block.6} parent=59 // pred_fallthru
          _
      $region60: #{cogvideox_block.6} parent=5 // pred_fallthru
        _
      %p684 = scmp.le.s32.totalorder 2, %s19
      // Predicated region
      $region65: #{cogvideox_block.6} parent=5 // pred_check
        %p685 = pneg %p684
      $region66: #{cogvideox_block.6} parent=5 // pred_check_branch
        %687 = sbr.rel (%p685) target = $region68
      $region67: #{cogvideox_block.6} parent=5 // pred_region
        %s688 = ssub.s32 %s19, 2
        // Predicated region
        $region69: #{cogvideox_block.6} parent=67 // pred_check
          %p689 = pneg %p294
        $region70: #{cogvideox_block.6} parent=67 // pred_check_branch
          %691 = sbr.rel (%p689) target = $region72
        $region71: #{cogvideox_block.6} parent=67 // pred_region
          %s692 = sand.u32 %s279, 1
          %s693 = scalar_lea.sflag [#allocation3], %s692
          %s694 = sand.u32 %s279, 1
          %s695 = smul.addr %s694, 16
          %s696 = scalar_lea.vmem [#allocation2], %s695
          %698 = dma.done %s693, 256
        $region72: #{cogvideox_block.6} parent=67 // pred_fallthru
          _
      $region68: #{cogvideox_block.6} parent=5 // pred_fallthru
        _
    $region6: #{cogvideox_block.6} parent=1 // loop_footer
      %s23 = sadd.s32 1, %s19
    $region7: #{cogvideox_block.6} parent=1 // loop_footer_branch
      %18 = sbr.rel target = $region3
    $region8: #{cogvideox_block.6} parent=1 // loop_exit
      _
    %699 = vsyncpa [#allocation3], 1
    %s700 = scalar_lea.sflag [#allocation3], 1
    %701 = vsyncpa %s700, 1

// kernel: cogvideox_block.5
$region0: #{cogvideox_block.5}
  #allocation0 [shape = 'u32[]', space=smem, size = 0x4, offset = 0x4, fixed_abs, tag = 'smem constant byte address 0x4 - core index']
  #allocation1 [shape = 'u32[72,128]{1,0:T(1,128)}', space=vmem, size = 0x9000, scoped, tag = 'internal scratch']
  %s0 = inlined_call_operand.vmem [shape: f32[2,16,32], index: 0, kind: input, shape index: {}]
  %s1 = inlined_call_operand.vmem [shape: f32[2,8,32], index: 1, kind: input, shape index: {}]
  %s2 = inlined_call_operand.vmem [shape: f32[2,1,32], index: 2, kind: input, shape index: {}]
  %s3 = inlined_call_operand.vmem [shape: f32[2,1,32], index: 3, kind: input, shape index: {}]
  %s4 = inlined_call_operand.vmem [shape: f32[2,1,32], index: 4, kind: input, shape index: {}]
  %s5 = inlined_call_operand.vmem [shape: f32[2,1,32], index: 5, kind: input, shape index: {}]
  %s6 = inlined_call_operand.vmem [shape: f32[2,1,32], index: 6, kind: input, shape index: {}]
  %s7 = inlined_call_operand.vmem [shape: f32[2,1,32], index: 7, kind: input, shape index: {}]
  %s8 = inlined_call_operand.vmem [shape: f32[1,32], index: 8, kind: input, shape index: {}]
  %s9 = inlined_call_operand.vmem [shape: f32[1,32], index: 9, kind: input, shape index: {}]
  %s10 = inlined_call_operand.vmem [shape: bf16[32,96], index: 10, kind: input, shape index: {}]
  %s11 = inlined_call_operand.vmem [shape: bf16[32,32], index: 11, kind: input, shape index: {}]
  %s12 = inlined_call_operand.vmem [shape: f32[1,32], index: 12, kind: input, shape index: {}]
  %s13 = inlined_call_operand.vmem [shape: f32[1,32], index: 13, kind: input, shape index: {}]
  %s14 = inlined_call_operand.vmem [shape: f32[1,32], index: 14, kind: input, shape index: {}]
  %s15 = inlined_call_operand.vmem [shape: f32[1,32], index: 15, kind: input, shape index: {}]
  %s16 = inlined_call_operand.hbm [shape: f32[1,32], index: 16, kind: input, shape index: {}]
  %s17 = inlined_call_operand.vmem [shape: f32[32,4], index: 17, kind: input, shape index: {}]
  %s18 = inlined_call_operand.vmem [shape: f32[4,32], index: 18, kind: input, shape index: {}]
  %s19 = inlined_call_operand.vmem [shape: f32[2,16,32], index: 19, kind: output, shape index: {0}]
  %s20 = inlined_call_operand.vmem [shape: f32[2,8,32], index: 20, kind: output, shape index: {1}]
  %21 = xla_tuple %s19, %s20
  %s22 = sld [smem:[#allocation0]]
  $region121: #{cogvideox_block.5} parent=0
    _
  %s24 = ssub.s32 1, %s22
  %s25 = scalar_select 0, %s24, %s22
  $region1: #{cogvideox_block.5} parent=0
    #allocation2 [shape = 'u8[512]{0}', space=vmem, size = 0x400, scoped, tag = 'input window, operand 16, single buffered']
    #allocation3 [shape = 's32[2]{0}', space=sflag, size = 0x8, scoped, tag = 'scoped memory for cogvideox_block.5']
    %26 = vsyncpa [#allocation3], 0
    loop: start=0, step=1, limit=4
    $region2: #{cogvideox_block.5} parent=1 // loop_pre_header
      _
    $region3: #{cogvideox_block.5} parent=1 // loop_header
      %s28 = sphi 0, %s32
      %p29 = scmp.ge.s32.totalorder %s28, 4
      %s38 = sphi 0, %s40
      %s41 = sphi 0, %s38
      %s42 = sphi 0, %s41
      %s58 = sphi 0, %s42
      %s64 = sphi 0, %s66
      %s67 = sphi 0, %s64
      %s68 = sphi 0, %s67
      %s84 = sphi 0, %s68
      %s90 = sphi 0, %s92
      %s93 = sphi 0, %s90
      %s94 = sphi 0, %s93
      %s110 = sphi 0, %s94
      %s116 = sphi 0, %s118
      %s119 = sphi 0, %s116
      %s120 = sphi 0, %s119
      %s136 = sphi 0, %s120
      %s142 = sphi 0, %s144
      %s145 = sphi 0, %s142
      %s146 = sphi 0, %s145
      %s162 = sphi 0, %s146
      %s168 = sphi 0, %s170
      %s171 = sphi 0, %s168
      %s172 = sphi 0, %s171
      %s188 = sphi 0, %s172
      %s194 = sphi 0, %s196
      %s197 = sphi 0, %s194
      %s198 = sphi 0, %s197
      %s214 = sphi 0, %s198
      %s220 = sphi 0, %s222
      %s223 = sphi 0, %s220
      %s224 = sphi 0, %s223
      %s240 = sphi 0, %s224
      %s244 = sphi 0, %s244
      %s246 = sphi 0, %s244
      %s247 = sphi 0, %s246
      %s261 = sphi 0, %s247
      %s265 = sphi 0, %s265
      %s267 = sphi 0, %s265
      %s268 = sphi 0, %s267
      %s282 = sphi 0, %s268
      %s286 = sphi 0, %s286
      %s288 = sphi 0, %s286
      %s289 = sphi 0, %s288
      %s303 = sphi 0, %s289
      %s307 = sphi 0, %s307
      %s309 = sphi 0, %s307
      %s310 = sphi 0, %s309
      %s324 = sphi 0, %s310
      %s328 = sphi 0, %s328
      %s330 = sphi 0, %s328
      %s331 = sphi 0, %s330
      %s345 = sphi 0, %s331
      %s349 = sphi 0, %s349
      %s351 = sphi 0, %s349
      %s352 = sphi 0, %s351
      %s366 = sphi 0, %s352
      %s370 = sphi 0, %s370
      %s372 = sphi 0, %s370
      %s373 = sphi 0, %s372
      %s387 = sphi 0, %s373
      %s391 = sphi 0, %s391
      %s393 = sphi 0, %s391
      %s394 = sphi 0, %s393
      %s408 = sphi 0, %s394
      %s412 = sphi 0, %s412
      %s414 = sphi 0, %s412
      %s415 = sphi 0, %s414
      %s429 = sphi 0, %s415
      %s433 = sphi 0, %s433
      %s435 = sphi 0, %s433
      %s436 = sphi 0, %s435
      %s450 = sphi 0, %s436
      %s454 = sphi 0, %s454
      %s456 = sphi 0, %s454
      %s457 = sphi 0, %s456
      %s471 = sphi 0, %s457
      %s477 = sphi 0, %s479
      %s480 = sphi 0, %s477
      %s481 = sphi 0, %s480
      %s497 = sphi 0, %s481
      %s503 = sphi 0, %s505
      %s506 = sphi 0, %s503
      %s507 = sphi 0, %s506
      %s523 = sphi 0, %s507
    $region4: #{cogvideox_block.5} parent=1 // loop_header_branch
      %31 = sbr.rel (%p29) target = $region8
    $region5: #{cogvideox_block.5} parent=1 // loop_body
      %s33 = ssub.s32 %s28, 1
      %s34 = ssub.s32 %s28, 2
      %s35 = sadd.s32 %s28, 1
      %s36 = ssub.s32 %s28, %s35
      %p37 = scmp.eq.s32.totalorder %s36, 0
      %s39 = sadd.s32 %s38, 1
      %s40 = scalar_select %p37, %s38, %s39
      %p43 = pneg %p37
      %p44 = scmp.eq.s32.totalorder %s28, 1
      %p45 = por %p43, %p44
      %p46 = scmp.ne.s32.totalorder %s38, %s41
      %p47 = scmp.eq.s32.totalorder %s28, 0
      %p48 = por %p46, %p47
      %p49 = scmp.ne.s32.totalorder %s38, %s41
      %p50 = scmp.eq.s32.totalorder %s33, 1
      %p51 = por %p49, %p50
      %p52 = scmp.ne.s32.totalorder %s41, %s42
      %p53 = scmp.eq.s32.totalorder %s33, 0
      %p54 = por %p52, %p53
      %p55 = scmp.ne.s32.totalorder %s41, %s42
      %p56 = scmp.eq.s32.totalorder %s34, 1
      %p57 = por %p55, %p56
      %p59 = scmp.ne.s32.totalorder %s42, %s58
      %p60 = scmp.eq.s32.totalorder %s34, 0
      %p61 = por %p59, %p60
      %s62 = ssub.s32 %s28, %s35
      %p63 = scmp.eq.s32.totalorder %s62, 0
      %s65 = sadd.s32 %s64, 1
      %s66 = scalar_select %p63, %s64, %s65
      %p69 = pneg %p63
      %p70 = scmp.eq.s32.totalorder %s28, 1
      %p71 = por %p69, %p70
      %p72 = scmp.ne.s32.totalorder %s64, %s67
      %p73 = scmp.eq.s32.totalorder %s28, 0
      %p74 = por %p72, %p73
      %p75 = scmp.ne.s32.totalorder %s64, %s67
      %p76 = scmp.eq.s32.totalorder %s33, 1
      %p77 = por %p75, %p76
      %p78 = scmp.ne.s32.totalorder %s67, %s68
      %p79 = scmp.eq.s32.totalorder %s33, 0
      %p80 = por %p78, %p79
      %p81 = scmp.ne.s32.totalorder %s67, %s68
      %p82 = scmp.eq.s32.totalorder %s34, 1
      %p83 = por %p81, %p82
      %p85 = scmp.ne.s32.totalorder %s68, %s84
      %p86 = scmp.eq.s32.totalorder %s34, 0
      %p87 = por %p85, %p86
      %s88 = ssub.s32 %s28, %s35
      %p89 = scmp.eq.s32.totalorder %s88, 0
      %s91 = sadd.s32 %s90, 1
      %s92 = scalar_select %p89, %s90, %s91
      %p95 = pneg %p89
      %p96 = scmp.eq.s32.totalorder %s28, 1
      %p97 = por %p95, %p96
      %p98 = scmp.ne.s32.totalorder %s90, %s93
      %p99 = scmp.eq.s32.totalorder %s28, 0
      %p100 = por %p98, %p99
      %p101 = scmp.ne.s32.totalorder %s90, %s93
      %p102 = scmp.eq.s32.totalorder %s33, 1
      %p103 = por %p101, %p102
      %p104 = scmp.ne.s32.totalorder %s93, %s94
      %p105 = scmp.eq.s32.totalorder %s33, 0
      %p106 = por %p104, %p105
      %p107 = scmp.ne.s32.totalorder %s93, %s94
      %p108 = scmp.eq.s32.totalorder %s34, 1
      %p109 = por %p107, %p108
      %p111 = scmp.ne.s32.totalorder %s94, %s110
      %p112 = scmp.eq.s32.totalorder %s34, 0
      %p113 = por %p111, %p112
      %s114 = ssub.s32 %s28, %s35
      %p115 = scmp.eq.s32.totalorder %s114, 0
      %s117 = sadd.s32 %s116, 1
      %s118 = scalar_select %p115, %s116, %s117
      %p121 = pneg %p115
      %p122 = scmp.eq.s32.totalorder %s28, 1
      %p123 = por %p121, %p122
      %p124 = scmp.ne.s32.totalorder %s116, %s119
      %p125 = scmp.eq.s32.totalorder %s28, 0
      %p126 = por %p124, %p125
      %p127 = scmp.ne.s32.totalorder %s116, %s119
      %p128 = scmp.eq.s32.totalorder %s33, 1
      %p129 = por %p127, %p128
      %p130 = scmp.ne.s32.totalorder %s119, %s120
      %p131 = scmp.eq.s32.totalorder %s33, 0
      %p132 = por %p130, %p131
      %p133 = scmp.ne.s32.totalorder %s119, %s120
      %p134 = scmp.eq.s32.totalorder %s34, 1
      %p135 = por %p133, %p134
      %p137 = scmp.ne.s32.totalorder %s120, %s136
      %p138 = scmp.eq.s32.totalorder %s34, 0
      %p139 = por %p137, %p138
      %s140 = ssub.s32 %s28, %s35
      %p141 = scmp.eq.s32.totalorder %s140, 0
      %s143 = sadd.s32 %s142, 1
      %s144 = scalar_select %p141, %s142, %s143
      %p147 = pneg %p141
      %p148 = scmp.eq.s32.totalorder %s28, 1
      %p149 = por %p147, %p148
      %p150 = scmp.ne.s32.totalorder %s142, %s145
      %p151 = scmp.eq.s32.totalorder %s28, 0
      %p152 = por %p150, %p151
      %p153 = scmp.ne.s32.totalorder %s142, %s145
      %p154 = scmp.eq.s32.totalorder %s33, 1
      %p155 = por %p153, %p154
      %p156 = scmp.ne.s32.totalorder %s145, %s146
      %p157 = scmp.eq.s32.totalorder %s33, 0
      %p158 = por %p156, %p157
      %p159 = scmp.ne.s32.totalorder %s145, %s146
      %p160 = scmp.eq.s32.totalorder %s34, 1
      %p161 = por %p159, %p160
      %p163 = scmp.ne.s32.totalorder %s146, %s162
      %p164 = scmp.eq.s32.totalorder %s34, 0
      %p165 = por %p163, %p164
      %s166 = ssub.s32 %s28, %s35
      %p167 = scmp.eq.s32.totalorder %s166, 0
      %s169 = sadd.s32 %s168, 1
      %s170 = scalar_select %p167, %s168, %s169
      %p173 = pneg %p167
      %p174 = scmp.eq.s32.totalorder %s28, 1
      %p175 = por %p173, %p174
      %p176 = scmp.ne.s32.totalorder %s168, %s171
      %p177 = scmp.eq.s32.totalorder %s28, 0
      %p178 = por %p176, %p177
      %p179 = scmp.ne.s32.totalorder %s168, %s171
      %p180 = scmp.eq.s32.totalorder %s33, 1
      %p181 = por %p179, %p180
      %p182 = scmp.ne.s32.totalorder %s171, %s172
      %p183 = scmp.eq.s32.totalorder %s33, 0
      %p184 = por %p182, %p183
      %p185 = scmp.ne.s32.totalorder %s171, %s172
      %p186 = scmp.eq.s32.totalorder %s34, 1
      %p187 = por %p185, %p186
      %p189 = scmp.ne.s32.totalorder %s172, %s188
      %p190 = scmp.eq.s32.totalorder %s34, 0
      %p191 = por %p189, %p190
      %s192 = ssub.s32 %s28, %s35
      %p193 = scmp.eq.s32.totalorder %s192, 0
      %s195 = sadd.s32 %s194, 1
      %s196 = scalar_select %p193, %s194, %s195
      %p199 = pneg %p193
      %p200 = scmp.eq.s32.totalorder %s28, 1
      %p201 = por %p199, %p200
      %p202 = scmp.ne.s32.totalorder %s194, %s197
      %p203 = scmp.eq.s32.totalorder %s28, 0
      %p204 = por %p202, %p203
      %p205 = scmp.ne.s32.totalorder %s194, %s197
      %p206 = scmp.eq.s32.totalorder %s33, 1
      %p207 = por %p205, %p206
      %p208 = scmp.ne.s32.totalorder %s197, %s198
      %p209 = scmp.eq.s32.totalorder %s33, 0
      %p210 = por %p208, %p209
      %p211 = scmp.ne.s32.totalorder %s197, %s198
      %p212 = scmp.eq.s32.totalorder %s34, 1
      %p213 = por %p211, %p212
      %p215 = scmp.ne.s32.totalorder %s198, %s214
      %p216 = scmp.eq.s32.totalorder %s34, 0
      %p217 = por %p215, %p216
      %s218 = ssub.s32 %s28, %s35
      %p219 = scmp.eq.s32.totalorder %s218, 0
      %s221 = sadd.s32 %s220, 1
      %s222 = scalar_select %p219, %s220, %s221
      %p225 = pneg %p219
      %p226 = scmp.eq.s32.totalorder %s28, 1
      %p227 = por %p225, %p226
      %p228 = scmp.ne.s32.totalorder %s220, %s223
      %p229 = scmp.eq.s32.totalorder %s28, 0
      %p230 = por %p228, %p229
      %p231 = scmp.ne.s32.totalorder %s220, %s223
      %p232 = scmp.eq.s32.totalorder %s33, 1
      %p233 = por %p231, %p232
      %p234 = scmp.ne.s32.totalorder %s223, %s224
      %p235 = scmp.eq.s32.totalorder %s33, 0
      %p236 = por %p234, %p235
      %p237 = scmp.ne.s32.totalorder %s223, %s224
      %p238 = scmp.eq.s32.totalorder %s34, 1
      %p239 = por %p237, %p238
      %p241 = scmp.ne.s32.totalorder %s224, %s240
      %p242 = scmp.eq.s32.totalorder %s34, 0
      %p243 = por %p241, %p242
      %s245 = sadd.s32 %s244, 1
      %p248 = scmp.eq.s32.totalorder %s28, 1
      %p249 = scmp.ne.s32.totalorder %s244, %s246
      %p250 = scmp.eq.s32.totalorder %s28, 0
      %p251 = por %p249, %p250
      %p252 = scmp.ne.s32.totalorder %s244, %s246
      %p253 = scmp.eq.s32.totalorder %s33, 1
      %p254 = por %p252, %p253
      %p255 = scmp.ne.s32.totalorder %s246, %s247
      %p256 = scmp.eq.s32.totalorder %s33, 0
      %p257 = por %p255, %p256
      %p258 = scmp.ne.s32.totalorder %s246, %s247
      %p259 = scmp.eq.s32.totalorder %s34, 1
      %p260 = por %p258, %p259
      %p262 = scmp.ne.s32.totalorder %s247, %s261
      %p263 = scmp.eq.s32.totalorder %s34, 0
      %p264 = por %p262, %p263
      %s266 = sadd.s32 %s265, 1
      %p269 = scmp.eq.s32.totalorder %s28, 1
      %p270 = scmp.ne.s32.totalorder %s265, %s267
      %p271 = scmp.eq.s32.totalorder %s28, 0
      %p272 = por %p270, %p271
      %p273 = scmp.ne.s32.totalorder %s265, %s267
      %p274 = scmp.eq.s32.totalorder %s33, 1
      %p275 = por %p273, %p274
      %p276 = scmp.ne.s32.totalorder %s267, %s268
      %p277 = scmp.eq.s32.totalorder %s33, 0
      %p278 = por %p276, %p277
      %p279 = scmp.ne.s32.totalorder %s267, %s268
      %p280 = scmp.eq.s32.totalorder %s34, 1
      %p281 = por %p279, %p280
      %p283 = scmp.ne.s32.totalorder %s268, %s282
      %p284 = scmp.eq.s32.totalorder %s34, 0
      %p285 = por %p283, %p284
      %s287 = sadd.s32 %s286, 1
      %p290 = scmp.eq.s32.totalorder %s28, 1
      %p291 = scmp.ne.s32.totalorder %s286, %s288
      %p292 = scmp.eq.s32.totalorder %s28, 0
      %p293 = por %p291, %p292
      %p294 = scmp.ne.s32.totalorder %s286, %s288
      %p295 = scmp.eq.s32.totalorder %s33, 1
      %p296 = por %p294, %p295
      %p297 = scmp.ne.s32.totalorder %s288, %s289
      %p298 = scmp.eq.s32.totalorder %s33, 0
      %p299 = por %p297, %p298
      %p300 = scmp.ne.s32.totalorder %s288, %s289
      %p301 = scmp.eq.s32.totalorder %s34, 1
      %p302 = por %p300, %p301
      %p304 = scmp.ne.s32.totalorder %s289, %s303
      %p305 = scmp.eq.s32.totalorder %s34, 0
      %p306 = por %p304, %p305
      %s308 = sadd.s32 %s307, 1
      %p311 = scmp.eq.s32.totalorder %s28, 1
      %p312 = scmp.ne.s32.totalorder %s307, %s309
      %p313 = scmp.eq.s32.totalorder %s28, 0
      %p314 = por %p312, %p313
      %p315 = scmp.ne.s32.totalorder %s307, %s309
      %p316 = scmp.eq.s32.totalorder %s33, 1
      %p317 = por %p315, %p316
      %p318 = scmp.ne.s32.totalorder %s309, %s310
      %p319 = scmp.eq.s32.totalorder %s33, 0
      %p320 = por %p318, %p319
      %p321 = scmp.ne.s32.totalorder %s309, %s310
      %p322 = scmp.eq.s32.totalorder %s34, 1
      %p323 = por %p321, %p322
      %p325 = scmp.ne.s32.totalorder %s310, %s324
      %p326 = scmp.eq.s32.totalorder %s34, 0
      %p327 = por %p325, %p326
      %s329 = sadd.s32 %s328, 1
      %p332 = scmp.eq.s32.totalorder %s28, 1
      %p333 = scmp.ne.s32.totalorder %s328, %s330
      %p334 = scmp.eq.s32.totalorder %s28, 0
      %p335 = por %p333, %p334
      %p336 = scmp.ne.s32.totalorder %s328, %s330
      %p337 = scmp.eq.s32.totalorder %s33, 1
      %p338 = por %p336, %p337
      %p339 = scmp.ne.s32.totalorder %s330, %s331
      %p340 = scmp.eq.s32.totalorder %s33, 0
      %p341 = por %p339, %p340
      %p342 = scmp.ne.s32.totalorder %s330, %s331
      %p343 = scmp.eq.s32.totalorder %s34, 1
      %p344 = por %p342, %p343
      %p346 = scmp.ne.s32.totalorder %s331, %s345
      %p347 = scmp.eq.s32.totalorder %s34, 0
      %p348 = por %p346, %p347
      %s350 = sadd.s32 %s349, 1
      %p353 = scmp.eq.s32.totalorder %s28, 1
      %p354 = scmp.ne.s32.totalorder %s349, %s351
      %p355 = scmp.eq.s32.totalorder %s28, 0
      %p356 = por %p354, %p355
      %p357 = scmp.ne.s32.totalorder %s349, %s351
      %p358 = scmp.eq.s32.totalorder %s33, 1
      %p359 = por %p357, %p358
      %p360 = scmp.ne.s32.totalorder %s351, %s352
      %p361 = scmp.eq.s32.totalorder %s33, 0
      %p362 = por %p360, %p361
      %p363 = scmp.ne.s32.totalorder %s351, %s352
      %p364 = scmp.eq.s32.totalorder %s34, 1
      %p365 = por %p363, %p364
      %p367 = scmp.ne.s32.totalorder %s352, %s366
      %p368 = scmp.eq.s32.totalorder %s34, 0
      %p369 = por %p367, %p368
      %s371 = sadd.s32 %s370, 1
      %p374 = scmp.eq.s32.totalorder %s28, 1
      %p375 = scmp.ne.s32.totalorder %s370, %s372
      %p376 = scmp.eq.s32.totalorder %s28, 0
      %p377 = por %p375, %p376
      %p378 = scmp.ne.s32.totalorder %s370, %s372
      %p379 = scmp.eq.s32.totalorder %s33, 1
      %p380 = por %p378, %p379
      %p381 = scmp.ne.s32.totalorder %s372, %s373
      %p382 = scmp.eq.s32.totalorder %s33, 0
      %p383 = por %p381, %p382
      %p384 = scmp.ne.s32.totalorder %s372, %s373
      %p385 = scmp.eq.s32.totalorder %s34, 1
      %p386 = por %p384, %p385
      %p388 = scmp.ne.s32.totalorder %s373, %s387
      %p389 = scmp.eq.s32.totalorder %s34, 0
      %p390 = por %p388, %p389
      %s392 = sadd.s32 %s391, 1
      %p395 = scmp.eq.s32.totalorder %s28, 1
      %p396 = scmp.ne.s32.totalorder %s391, %s393
      %p397 = scmp.eq.s32.totalorder %s28, 0
      %p398 = por %p396, %p397
      %p399 = scmp.ne.s32.totalorder %s391, %s393
      %p400 = scmp.eq.s32.totalorder %s33, 1
      %p401 = por %p399, %p400
      %p402 = scmp.ne.s32.totalorder %s393, %s394
      %p403 = scmp.eq.s32.totalorder %s33, 0
      %p404 = por %p402, %p403
      %p405 = scmp.ne.s32.totalorder %s393, %s394
      %p406 = scmp.eq.s32.totalorder %s34, 1
      %p407 = por %p405, %p406
      %p409 = scmp.ne.s32.totalorder %s394, %s408
      %p410 = scmp.eq.s32.totalorder %s34, 0
      %p411 = por %p409, %p410
      %s413 = sadd.s32 %s412, 1
      %p416 = scmp.eq.s32.totalorder %s28, 1
      %p417 = scmp.ne.s32.totalorder %s412, %s414
      %p418 = scmp.eq.s32.totalorder %s28, 0
      %p419 = por %p417, %p418
      %p420 = scmp.ne.s32.totalorder %s412, %s414
      %p421 = scmp.eq.s32.totalorder %s33, 1
      %p422 = por %p420, %p421
      %p423 = scmp.ne.s32.totalorder %s414, %s415
      %p424 = scmp.eq.s32.totalorder %s33, 0
      %p425 = por %p423, %p424
      %p426 = scmp.ne.s32.totalorder %s414, %s415
      %p427 = scmp.eq.s32.totalorder %s34, 1
      %p428 = por %p426, %p427
      %p430 = scmp.ne.s32.totalorder %s415, %s429
      %p431 = scmp.eq.s32.totalorder %s34, 0
      %p432 = por %p430, %p431
      %s434 = sadd.s32 %s433, 1
      %p437 = scmp.eq.s32.totalorder %s28, 1
      %p438 = scmp.ne.s32.totalorder %s433, %s435
      %p439 = scmp.eq.s32.totalorder %s28, 0
      %p440 = por %p438, %p439
      %p441 = scmp.ne.s32.totalorder %s433, %s435
      %p442 = scmp.eq.s32.totalorder %s33, 1
      %p443 = por %p441, %p442
      %p444 = scmp.ne.s32.totalorder %s435, %s436
      %p445 = scmp.eq.s32.totalorder %s33, 0
      %p446 = por %p444, %p445
      %p447 = scmp.ne.s32.totalorder %s435, %s436
      %p448 = scmp.eq.s32.totalorder %s34, 1
      %p449 = por %p447, %p448
      %p451 = scmp.ne.s32.totalorder %s436, %s450
      %p452 = scmp.eq.s32.totalorder %s34, 0
      %p453 = por %p451, %p452
      %s455 = sadd.s32 %s454, 1
      %p458 = scmp.eq.s32.totalorder %s28, 1
      %p459 = scmp.ne.s32.totalorder %s454, %s456
      %p460 = scmp.eq.s32.totalorder %s28, 0
      %p461 = por %p459, %p460
      %p462 = scmp.ne.s32.totalorder %s454, %s456
      %p463 = scmp.eq.s32.totalorder %s33, 1
      %p464 = por %p462, %p463
      %p465 = scmp.ne.s32.totalorder %s456, %s457
      %p466 = scmp.eq.s32.totalorder %s33, 0
      %p467 = por %p465, %p466
      %p468 = scmp.ne.s32.totalorder %s456, %s457
      %p469 = scmp.eq.s32.totalorder %s34, 1
      %p470 = por %p468, %p469
      %p472 = scmp.ne.s32.totalorder %s457, %s471
      %p473 = scmp.eq.s32.totalorder %s34, 0
      %p474 = por %p472, %p473
      %s475 = ssub.s32 %s28, %s35
      %p476 = scmp.eq.s32.totalorder %s475, 0
      %s478 = sadd.s32 %s477, 1
      %s479 = scalar_select %p476, %s477, %s478
      %p482 = pneg %p476
      %p483 = scmp.eq.s32.totalorder %s28, 1
      %p484 = por %p482, %p483
      %p485 = scmp.ne.s32.totalorder %s477, %s480
      %p486 = scmp.eq.s32.totalorder %s28, 0
      %p487 = por %p485, %p486
      %p488 = scmp.ne.s32.totalorder %s477, %s480
      %p489 = scmp.eq.s32.totalorder %s33, 1
      %p490 = por %p488, %p489
      %p491 = scmp.ne.s32.totalorder %s480, %s481
      %p492 = scmp.eq.s32.totalorder %s33, 0
      %p493 = por %p491, %p492
      %p494 = scmp.ne.s32.totalorder %s480, %s481
      %p495 = scmp.eq.s32.totalorder %s34, 1
      %p496 = por %p494, %p495
      %p498 = scmp.ne.s32.totalorder %s481, %s497
      %p499 = scmp.eq.s32.totalorder %s34, 0
      %p500 = por %p498, %p499
      %s501 = ssub.s32 %s28, %s35
      %p502 = scmp.eq.s32.totalorder %s501, 0
      %s504 = sadd.s32 %s503, 1
      %s505 = scalar_select %p502, %s503, %s504
      %p508 = pneg %p502
      %p509 = scmp.eq.s32.totalorder %s28, 1
      %p510 = por %p508, %p509
      %p511 = scmp.ne.s32.totalorder %s503, %s506
      %p512 = scmp.eq.s32.totalorder %s28, 0
      %p513 = por %p511, %p512
      %p514 = scmp.ne.s32.totalorder %s503, %s506
      %p515 = scmp.eq.s32.totalorder %s33, 1
      %p516 = por %p514, %p515
      %p517 = scmp.ne.s32.totalorder %s506, %s507
      %p518 = scmp.eq.s32.totalorder %s33, 0
      %p519 = por %p517, %p518
      %p520 = scmp.ne.s32.totalorder %s506, %s507
      %p521 = scmp.eq.s32.totalorder %s34, 1
      %p522 = por %p520, %p521
      %p524 = scmp.ne.s32.totalorder %s507, %s523
      %p525 = scmp.eq.s32.totalorder %s34, 0
      %p526 = por %p524, %p525
      %p527 = scmp.le.s32.totalorder 1, %s28
      %p528 = scmp.lt.s32.totalorder %s28, 3
      %p529 = pnand %p527, %p528
      %p530 = pneg %p529
      // Predicated region
      $region9: #{cogvideox_block.5} parent=5 // pred_check
        _
      $region10: #{cogvideox_block.5} parent=5 // pred_check_branch
        %532 = sbr.rel (%p529) target = $region12
      $region11: #{cogvideox_block.5} parent=5 // pred_region
        %s533 = ssub.s32 %s28, 1
        // Predicated region
        $region13: #{cogvideox_block.5} parent=11 // pred_check
          %p534 = pneg %p257
        $region14: #{cogvideox_block.5} parent=11 // pred_check_branch
          %536 = sbr.rel (%p534) target = $region16
        $region15: #{cogvideox_block.5} parent=11 // pred_region
          _
        $region16: #{cogvideox_block.5} parent=11 // pred_fallthru
          _
        // Predicated region
        $region17: #{cogvideox_block.5} parent=11 // pred_check
          %p537 = pneg %p278
        $region18: #{cogvideox_block.5} parent=11 // pred_check_branch
          %539 = sbr.rel (%p537) target = $region20
        $region19: #{cogvideox_block.5} parent=11 // pred_region
          _
        $region20: #{cogvideox_block.5} parent=11 // pred_fallthru
          _
        // Predicated region
        $region21: #{cogvideox_block.5} parent=11 // pred_check
          %p540 = pneg %p299
        $region22: #{cogvideox_block.5} parent=11 // pred_check_branch
          %542 = sbr.rel (%p540) target = $region24
        $region23: #{cogvideox_block.5} parent=11 // pred_region
          _
        $region24: #{cogvideox_block.5} parent=11 // pred_fallthru
          _
        // Predicated region
        $region25: #{cogvideox_block.5} parent=11 // pred_check
          %p543 = pneg %p320
        $region26: #{cogvideox_block.5} parent=11 // pred_check_branch
          %545 = sbr.rel (%p543) target = $region28
        $region27: #{cogvideox_block.5} parent=11 // pred_region
          _
        $region28: #{cogvideox_block.5} parent=11 // pred_fallthru
          _
        // Predicated region
        $region29: #{cogvideox_block.5} parent=11 // pred_check
          %p546 = pneg %p341
        $region30: #{cogvideox_block.5} parent=11 // pred_check_branch
          %548 = sbr.rel (%p546) target = $region32
        $region31: #{cogvideox_block.5} parent=11 // pred_region
          _
        $region32: #{cogvideox_block.5} parent=11 // pred_fallthru
          _
        // Predicated region
        $region33: #{cogvideox_block.5} parent=11 // pred_check
          %p549 = pneg %p362
        $region34: #{cogvideox_block.5} parent=11 // pred_check_branch
          %551 = sbr.rel (%p549) target = $region36
        $region35: #{cogvideox_block.5} parent=11 // pred_region
          _
        $region36: #{cogvideox_block.5} parent=11 // pred_fallthru
          _
        // Predicated region
        $region37: #{cogvideox_block.5} parent=11 // pred_check
          %p552 = pneg %p383
        $region38: #{cogvideox_block.5} parent=11 // pred_check_branch
          %554 = sbr.rel (%p552) target = $region40
        $region39: #{cogvideox_block.5} parent=11 // pred_region
          _
        $region40: #{cogvideox_block.5} parent=11 // pred_fallthru
          _
        // Predicated region
        $region41: #{cogvideox_block.5} parent=11 // pred_check
          %p555 = pneg %p404
        $region42: #{cogvideox_block.5} parent=11 // pred_check_branch
          %557 = sbr.rel (%p555) target = $region44
        $region43: #{cogvideox_block.5} parent=11 // pred_region
          _
        $region44: #{cogvideox_block.5} parent=11 // pred_fallthru
          _
        // Predicated region
        $region45: #{cogvideox_block.5} parent=11 // pred_check
          %p558 = pneg %p425
        $region46: #{cogvideox_block.5} parent=11 // pred_check_branch
          %560 = sbr.rel (%p558) target = $region48
        $region47: #{cogvideox_block.5} parent=11 // pred_region
          %562 = vsyncadd [#allocation3], 0
          %s564 = sshll.u32 %s16, 4
          %s565 = int_to_ptr.hbm [resolvable:$true] %s564
          %s566 = sshll.u32 [#allocation2], 4
          %s567 = int_to_ptr.vmem [resolvable:$true] %s566
          %569 = dma.hbm_to_vmem [thread:$0]  %s565, 16, %s567, [#allocation3]
        $region48: #{cogvideox_block.5} parent=11 // pred_fallthru
          _
        // Predicated region
        $region49: #{cogvideox_block.5} parent=11 // pred_check
          %p570 = pneg %p446
        $region50: #{cogvideox_block.5} parent=11 // pred_check_branch
          %572 = sbr.rel (%p570) target = $region52
        $region51: #{cogvideox_block.5} parent=11 // pred_region
          _
        $region52: #{cogvideox_block.5} parent=11 // pred_fallthru
          _
        // Predicated region
        $region53: #{cogvideox_block.5} parent=11 // pred_check
          %p573 = pneg %p467
        $region54: #{cogvideox_block.5} parent=11 // pred_check_branch
          %575 = sbr.rel (%p573) target = $region56
        $region55: #{cogvideox_block.5} parent=11 // pred_region
          _
        $region56: #{cogvideox_block.5} parent=11 // pred_fallthru
          _
      $region12: #{cogvideox_block.5} parent=5 // pred_fallthru
        _
      %p576 = scmp.lt.s32.totalorder %s28, 2
      // Predicated region
      $region57: #{cogvideox_block.5} parent=5 // pred_check
        %p577 = pneg %p576
      $region58: #{cogvideox_block.5} parent=5 // pred_check_branch
        %579 = sbr.rel (%p577) target = $region60
      $region59: #{cogvideox_block.5} parent=5 // pred_region
        // Predicated region
        $region61: #{cogvideox_block.5} parent=59 // pred_check
          %p580 = pneg %p48
        $region62: #{cogvideox_block.5} parent=59 // pred_check_branch
          %582 = sbr.rel (%p580) target = $region64
        $region63: #{cogvideox_block.5} parent=59 // pred_region
          %p583 = scmp.lt.s32.totalorder %s28, 1
          %s584 = scalar_select %p583, %s28, 1
          %s585 = smul.addr %s584, 2
          %s586 = smul.addr %s585, 8
          %s587 = scalar_lea.vmem %s0, %s586
        $region64: #{cogvideox_block.5} parent=59 // pred_fallthru
          _
        // Predicated region
        $region65: #{cogvideox_block.5} parent=59 // pred_check
          %p588 = pneg %p74
        $region66: #{cogvideox_block.5} parent=59 // pred_check_branch
          %590 = sbr.rel (%p588) target = $region68
        $region67: #{cogvideox_block.5} parent=59 // pred_region
          %p591 = scmp.lt.s32.totalorder %s28, 1
          %s592 = scalar_select %p591, %s28, 1
          %s593 = smul.addr %s592, 8
          %s594 = scalar_lea.vmem %s1, %s593
        $region68: #{cogvideox_block.5} parent=59 // pred_fallthru
          _
        // Predicated region
        $region69: #{cogvideox_block.5} parent=59 // pred_check
          %p595 = pneg %p100
        $region70: #{cogvideox_block.5} parent=59 // pred_check_branch
          %597 = sbr.rel (%p595) target = $region72
        $region71: #{cogvideox_block.5} parent=59 // pred_region
          %p598 = scmp.lt.s32.totalorder %s28, 1
          %s599 = scalar_select %p598, %s28, 1
          %s600 = scalar_lea.vmem %s2, %s599
        $region72: #{cogvideox_block.5} parent=59 // pred_fallthru
          _
        // Predicated region
        $region73: #{cogvideox_block.5} parent=59 // pred_check
          %p601 = pneg %p126
        $region74: #{cogvideox_block.5} parent=59 // pred_check_branch
          %603 = sbr.rel (%p601) target = $region76
        $region75: #{cogvideox_block.5} parent=59 // pred_region
          %p604 = scmp.lt.s32.totalorder %s28, 1
          %s605 = scalar_select %p604, %s28, 1
          %s606 = scalar_lea.vmem %s3, %s605
        $region76: #{cogvideox_block.5} parent=59 // pred_fallthru
          _
        // Predicated region
        $region77: #{cogvideox_block.5} parent=59 // pred_check
          %p607 = pneg %p152
        $region78: #{cogvideox_block.5} parent=59 // pred_check_branch
          %609 = sbr.rel (%p607) target = $region80
        $region79: #{cogvideox_block.5} parent=59 // pred_region
          %p610 = scmp.lt.s32.totalorder %s28, 1
          %s611 = scalar_select %p610, %s28, 1
          %s612 = scalar_lea.vmem %s4, %s611
        $region80: #{cogvideox_block.5} parent=59 // pred_fallthru
          _
        // Predicated region
        $region81: #{cogvideox_block.5} parent=59 // pred_check
          %p613 = pneg %p178
        $region82: #{cogvideox_block.5} parent=59 // pred_check_branch
          %615 = sbr.rel (%p613) target = $region84
        $region83: #{cogvideox_block.5} parent=59 // pred_region
          %p616 = scmp.lt.s32.totalorder %s28, 1
          %s617 = scalar_select %p616, %s28, 1
          %s618 = scalar_lea.vmem %s5, %s617
        $region84: #{cogvideox_block.5} parent=59 // pred_fallthru
          _
        // Predicated region
        $region85: #{cogvideox_block.5} parent=59 // pred_check
          %p619 = pneg %p204
        $region86: #{cogvideox_block.5} parent=59 // pred_check_branch
          %621 = sbr.rel (%p619) target = $region88
        $region87: #{cogvideox_block.5} parent=59 // pred_region
          %p622 = scmp.lt.s32.totalorder %s28, 1
          %s623 = scalar_select %p622, %s28, 1
          %s624 = scalar_lea.vmem %s6, %s623
        $region88: #{cogvideox_block.5} parent=59 // pred_fallthru
          _
        // Predicated region
        $region89: #{cogvideox_block.5} parent=59 // pred_check
          %p625 = pneg %p230
        $region90: #{cogvideox_block.5} parent=59 // pred_check_branch
          %627 = sbr.rel (%p625) target = $region92
        $region91: #{cogvideox_block.5} parent=59 // pred_region
          %p628 = scmp.lt.s32.totalorder %s28, 1
          %s629 = scalar_select %p628, %s28, 1
          %s630 = scalar_lea.vmem %s7, %s629
        $region92: #{cogvideox_block.5} parent=59 // pred_fallthru
          _
      $region60: #{cogvideox_block.5} parent=5 // pred_fallthru
        _
      %p631 = scmp.le.s32.totalorder 1, %s28
      %p632 = scmp.lt.s32.totalorder %s28, 3
      %p633 = pnand %p631, %p632
      %p634 = pneg %p633
      // Predicated region
      $region93: #{cogvideox_block.5} parent=5 // pred_check
        _
      $region94: #{cogvideox_block.5} parent=5 // pred_check_branch
        %636 = sbr.rel (%p633) target = $region96
      $region95: #{cogvideox_block.5} parent=5 // pred_region
        %s637 = ssub.s32 %s28, 1
        // Predicated region
        $region97: #{cogvideox_block.5} parent=95 // pred_check
          %p638 = pneg %p425
        $region98: #{cogvideox_block.5} parent=95 // pred_check_branch
          %640 = sbr.rel (%p638) target = $region100
        $region99: #{cogvideox_block.5} parent=95 // pred_region
          %642 = dma.done [#allocation3], 16
        $region100: #{cogvideox_block.5} parent=95 // pred_fallthru
          _
        %p643 = scmp.lt.s32.totalorder %s33, 1
        %s644 = scalar_select %p643, %s33, 1
        %s645 = smul.addr %s644, 2
        %s646 = smul.addr %s645, 8
        %s647 = scalar_lea.vmem %s0, %s646
        %p648 = pneg %p54
        %p649 = pneg %p51
        %p650 = scmp.lt.s32.totalorder %s33, 1
        %s651 = scalar_select %p650, %s33, 1
        %s652 = smul.addr %s651, 8
        %s653 = scalar_lea.vmem %s1, %s652
        %p654 = pneg %p80
        %p655 = pneg %p77
        %p656 = scmp.lt.s32.totalorder %s33, 1
        %s657 = scalar_select %p656, %s33, 1
        %s658 = scalar_lea.vmem %s2, %s657
        %p659 = pneg %p106
        %p660 = pneg %p103
        %p661 = scmp.lt.s32.totalorder %s33, 1
        %s662 = scalar_select %p661, %s33, 1
        %s663 = scalar_lea.vmem %s3, %s662
        %p664 = pneg %p132
        %p665 = pneg %p129
        %p666 = scmp.lt.s32.totalorder %s33, 1
        %s667 = scalar_select %p666, %s33, 1
        %s668 = scalar_lea.vmem %s4, %s667
        %p669 = pneg %p158
        %p670 = pneg %p155
        %p671 = scmp.lt.s32.totalorder %s33, 1
        %s672 = scalar_select %p671, %s33, 1
        %s673 = scalar_lea.vmem %s5, %s672
        %p674 = pneg %p184
        %p675 = pneg %p181
        %p676 = scmp.lt.s32.totalorder %s33, 1
        %s677 = scalar_select %p676, %s33, 1
        %s678 = scalar_lea.vmem %s6, %s677
        %p679 = pneg %p210
        %p680 = pneg %p207
        %p681 = scmp.lt.s32.totalorder %s33, 1
        %s682 = scalar_select %p681, %s33, 1
        %s683 = scalar_lea.vmem %s7, %s682
        %p684 = pneg %p236
        %p685 = pneg %p233
        %p686 = pneg %p257
        %p687 = pneg %p254
        %p688 = pneg %p278
        %p689 = pneg %p275
        %p690 = pneg %p299
        %p691 = pneg %p296
        %p692 = pneg %p320
        %p693 = pneg %p317
        %p694 = pneg %p341
        %p695 = pneg %p338
        %p696 = pneg %p362
        %p697 = pneg %p359
        %p698 = pneg %p383
        %p699 = pneg %p380
        %p700 = pneg %p404
        %p701 = pneg %p401
        %p702 = pneg %p425
        %p703 = pneg %p422
        %p704 = pneg %p446
        %p705 = pneg %p443
        %p706 = pneg %p467
        %p707 = pneg %p464
        %p708 = pneg %p493
        %p709 = pneg %p490
        %p710 = scmp.lt.s32.totalorder %s33, 1
        %s711 = scalar_select %p710, %s33, 1
        %s712 = smul.addr %s711, 2
        %s713 = smul.addr %s712, 8
        %s714 = scalar_lea.vmem %s19, %s713
        %p715 = pneg %p519
        %p716 = pneg %p516
        %p717 = scmp.lt.s32.totalorder %s33, 1
        %s718 = scalar_select %p717, %s33, 1
        %s719 = smul.addr %s718, 8
        %s720 = scalar_lea.vmem %s20, %s719
        %p721 = scmp.lt.s32.totalorder %s33, 1
        %s722 = scalar_select %p721, %s33, 1
        %s723 = smul.addr %s722, 2
        %s724 = smul.addr %s723, 8
        %s725 = scalar_lea.vmem %s0, %s724
        %p726 = scmp.lt.s32.totalorder %s33, 1
        %s727 = scalar_select %p726, %s33, 1
        %s728 = smul.addr %s727, 8
        %s729 = scalar_lea.vmem %s1, %s728
        %p730 = scmp.lt.s32.totalorder %s33, 1
        %s731 = scalar_select %p730, %s33, 1
        %s732 = scalar_lea.vmem %s2, %s731
        %p733 = scmp.lt.s32.totalorder %s33, 1
        %s734 = scalar_select %p733, %s33, 1
        %s735 = scalar_lea.vmem %s3, %s734
        %p736 = scmp.lt.s32.totalorder %s33, 1
        %s737 = scalar_select %p736, %s33, 1
        %s738 = scalar_lea.vmem %s4, %s737
        %p739 = scmp.lt.s32.totalorder %s33, 1
        %s740 = scalar_select %p739, %s33, 1
        %s741 = scalar_lea.vmem %s5, %s740
        %p742 = scmp.lt.s32.totalorder %s33, 1
        %s743 = scalar_select %p742, %s33, 1
        %s744 = scalar_lea.vmem %s6, %s743
        %p745 = scmp.lt.s32.totalorder %s33, 1
        %s746 = scalar_select %p745, %s33, 1
        %s747 = scalar_lea.vmem %s7, %s746
        %p748 = scmp.lt.s32.totalorder %s33, 1
        %s749 = scalar_select %p748, %s33, 1
        %s750 = smul.addr %s749, 2
        %s751 = smul.addr %s750, 8
        %s752 = scalar_lea.vmem %s19, %s751
        %p753 = scmp.lt.s32.totalorder %s33, 1
        %s754 = scalar_select %p753, %s33, 1
        %s755 = smul.addr %s754, 8
        %s756 = scalar_lea.vmem %s20, %s755
        %v758 = vld [vmem:[%s725] sm:$0xff]
        %v759 = vld [vmem:[%s725 + $0x8] sm:$0xff]
        %v760 = vld [vmem:[%s729] sm:$0xff]
        %v761 = vld [vmem:[%s8] sm:$0x1]
        %v762 = vld [vmem:[%s9] sm:$0x1]
        %vm763 = vcmask 261120
        %v764 = vsel %vm763, %v758, 0.0
        %765 = vadd.xlane.f32.xlu0 %v764
        %v766 = vpop.xlane.xlu0 %765
        %v767 = vsel %vm763, %v759, 0.0
        %768 = vadd.xlane.f32.xlu0 %v767
        %v769 = vpop.xlane.xlu0 %768
        %v770 = vrcp.pop 32.0
        %v771 = vmul.f32 32.0, %v770
        %v772 = vsub.f32 1.0, %v771
        %v773 = vmul.f32 %v770, %v772
        %v774 = vadd.f32 %v770, %v773
        %vm775 = vweird.f32 %v770
        %v776 = vsel %vm775, %v770, %v774
        %v777 = vmul.f32 %v766, %v776
        %v778 = vmul.f32 %v769, %v776
        %v779 = vsub.f32 %v758, %v777
        %v780 = vsub.f32 %v759, %v778
        %v781 = vmul.f32 %v779, %v779
        %v782 = vmul.f32 %v780, %v780
        %v783 = vsel %vm763, %v781, 0.0
        %784 = vadd.xlane.f32.xlu0 %v783
        %v785 = vpop.xlane.xlu0 %784
        %v786 = vsel %vm763, %v782, 0.0
        %787 = vadd.xlane.f32.xlu0 %v786
        %v788 = vpop.xlane.xlu0 %787
        %v789 = vmul.f32 %v785, %v776
        %v790 = vmul.f32 %v788, %v776
        %v791 = vadd.f32 %v789, 1e-05
        %v792 = vadd.f32 %v790, 1e-05
        %v793 = vrsqrt.pop %v791
        %v794 = vmul.f32 %v793, %v791
        %v795 = vmul.f32 %v794, %v793
        %v796 = vmul.f32 0.5, %v795
        %v797 = vsub.f32 1.5, %v796
        %v798 = vmul.f32 %v793, %v797
        %vm799 = vweird.f32 %v791
        %vm800 = vweird.f32 %v793
        %vm801 = vmor %vm799, %vm800
        %v802 = vsel %vm801, %v793, %v798
        %v803 = vrsqrt.pop %v792
        %v804 = vmul.f32 %v803, %v792
        %v805 = vmul.f32 %v804, %v803
        %v806 = vmul.f32 0.5, %v805
        %v807 = vsub.f32 1.5, %v806
        %v808 = vmul.f32 %v803, %v807
        %vm809 = vweird.f32 %v792
        %vm810 = vweird.f32 %v803
        %vm811 = vmor %vm809, %vm810
        %v812 = vsel %vm811, %v803, %v808
        %v813 = vmul.f32 %v779, %v802
        %v814 = vmul.f32 %v780, %v812
        %v816 = vperm.slane %v761, 0
        %v818 = vmul.f32 %v813, %v816
        %v819 = vmul.f32 %v814, %v816
        %v821 = vperm.slane %v762, 0
        %v823 = vadd.f32 %v818, %v821
        %v824 = vadd.f32 %v819, %v821
        %v825 = vld [vmem:[%s735] sm:$0x1]
        %v826 = vadd.f32 %v825, 1.0
        %v828 = vperm.slane %v826, 0
        %v830 = vmul.f32 %v823, %v828
        %v831 = vmul.f32 %v824, %v828
        %v832 = vld [vmem:[%s732] sm:$0x1]
        %v834 = vperm.slane %v832, 0
        %v836 = vadd.f32 %v830, %v834
        %v837 = vadd.f32 %v831, %v834
        %v838 = vsel %vm763, %v760, 0.0
        %839 = vadd.xlane.f32.xlu0 %v838
        %v840 = vpop.xlane.xlu0 %839
        %v841 = vmul.f32 %v840, %v776
        %v842 = vsub.f32 %v760, %v841
        %v843 = vmul.f32 %v842, %v842
        %v844 = vsel %vm763, %v843, 0.0
        %845 = vadd.xlane.f32.xlu0 %v844
        %v846 = vpop.xlane.xlu0 %845
        %v847 = vmul.f32 %v846, %v776
        %v848 = vadd.f32 %v847, 1e-05
        %v849 = vrsqrt.pop %v848
        %v850 = vmul.f32 %v849, %v848
        %v851 = vmul.f32 %v850, %v849
        %v852 = vmul.f32 0.5, %v851
        %v853 = vsub.f32 1.5, %v852
        %v854 = vmul.f32 %v849, %v853
        %vm855 = vweird.f32 %v848
        %vm856 = vweird.f32 %v849
        %vm857 = vmor %vm855, %vm856
        %v858 = vsel %vm857, %v849, %v854
        %v859 = vmul.f32 %v842, %v858
        %v860 = vmul.f32 %v859, %v816
        %v861 = vadd.f32 %v860, %v821
        %v862 = vld [vmem:[%s744] sm:$0x1]
        %v863 = vadd.f32 %v862, 1.0
        %v865 = vperm.slane %v863, 0
        %v867 = vmul.f32 %v861, %v865
        %v868 = vld [vmem:[%s741] sm:$0x1]
        %v870 = vperm.slane %v868, 0
        %v872 = vadd.f32 %v867, %v870
        %v873 = vpack.c.bf16 %v836, %v872
        %v874 = vpack.c.bf16 %v837, %v837
        %v875 = vld [vmem:[%s10] sm:$0xf]
        %v876 = vld [vmem:[%s10 + $0x4] sm:$0xf]
        %v877 = vld [vmem:[%s10 + $0x8] sm:$0xf]
        %v878 = vld [vmem:[%s10 + $0xc] sm:$0xf]
        %v883 = vunpack.c.l.b16 %v875
        %v884 = vunpack.c.l.b16 %v876
        %v885 = vunpack.c.l.b16 %v877
        %v886 = vunpack.c.l.b16 %v878
        %v887 = vpack.c.b16 %v884, %v883
        %v888 = vpack.c.b16 %v886, %v885
        %v892 = vsel %vm763, %v873, 0
        %v895 = vsel %vm763, %v874, 0
        %897 = vmatpush.bf16.msra.mxu0 0
        %898 = vmatpush.bf16.msra.mxu0 0
        %899 = vmatpush.bf16.msra.mxu0 0
        %900 = vmatpush.bf16.msra.mxu0 0
        %901 = vmatpush.bf16.msra.mxu0 0
        %902 = vmatpush.bf16.msra.mxu0 0
        %903 = vmatpush.bf16.msra.mxu0 %v888
        %904 = vmatpush.bf16.msra.mxu0 %v887
        %905 = vmatmul.bf16.gmra.mxu0 %v892
        %v906 = vpop.f32.mrf.mxu0
        %v907 = vadd.f32 0.0, %v906
        %v908 = vpop.f32.mrf.mxu0
        %v909 = vadd.f32 0.0, %v908
        %910 = vmatmul.bf16.gmra.mxu0 %v895
        %v911 = vpop.f32.mrf.mxu0
        %v912 = vadd.f32 0.0, %v911
        %v913 = vpop.f32.mrf.mxu0
        %914 = vdwg.mxu0
        %v915 = vld [vmem:[%s17] sm:$0xff]
        %v916 = vld [vmem:[%s17 + $0x8] sm:$0xff]
        %v917 = vld [vmem:[%s17 + $0x10] sm:$0xff]
        %v918 = vld [vmem:[%s17 + $0x18] sm:$0xff]
        %v919 = vld [vmem:[%s18] sm:$0xf]
        %v920 = vld [vmem:[%s13] sm:$0x1]
        %v921 = vld [vmem:[%s14] sm:$0x1]
        %v923 = vsel %vm763, %v907, 0
        %v926 = vsel %vm763, %v909, 0
        %v929 = vsel %vm763, %v912, 0
        %931 = vmatpush.msra.mxu0 0.0
        %932 = vmatpush.msra.mxu0 0.0
        %933 = vmatpush.msra.mxu0 0.0
        %934 = vmatpush.msra.mxu0 0.0
        %935 = vmatpush.msra.mxu0 0.0
        %936 = vmatpush.msra.mxu0 0.0
        %937 = vmatpush.msra.mxu0 0.0
        %938 = vmatpush.msra.mxu0 0.0
        %939 = vmatpush.msra.mxu0 0.0
        %940 = vmatpush.msra.mxu0 0.0
        %941 = vmatpush.msra.mxu0 0.0
        %942 = vmatpush.msra.mxu0 0.0
        %943 = vmatpush.msra.mxu0 %v918
        %944 = vmatpush.msra.mxu0 %v917
        %945 = vmatpush.msra.mxu0 %v916
        %946 = vmatpush.msra.mxu0 %v915
        %947 = vmatmul.f32.gmra.mxu0 %v923
        %v948 = vpop.f32.mrf.mxu0
        %v949 = vadd.f32 0.0, %v948
        %950 = vmatmul.f32.gmra.mxu0 %v926
        %v951 = vpop.f32.mrf.mxu0
        %v952 = vadd.f32 0.0, %v951
        %953 = vmatmul.f32.gmra.mxu0 %v929
        %v954 = vpop.f32.mrf.mxu0
        %v955 = vadd.f32 0.0, %v954
        %956 = vdwg.mxu0
        %v957 = vmul.f32 %v949, 0.125
        %v958 = vmul.f32 %v952, 0.125
        %v959 = vmul.f32 %v955, 0.125
        %v960 = vmul.f32 %v907, %v907
        %v961 = vmul.f32 %v909, %v909
        %v962 = vmul.f32 %v912, %v912
        %v964 = vsel %vm763, %v960, 0
        %v967 = vsel %vm763, %v961, 0
        %v970 = vsel %vm763, %v962, 0
        %972 = vmatpush.msra.mxu0 0.0
        %973 = vmatpush.msra.mxu0 0.0
        %974 = vmatpush.msra.mxu0 0.0
        %975 = vmatpush.msra.mxu0 0.0
        %976 = vmatpush.msra.mxu0 0.0
        %977 = vmatpush.msra.mxu0 0.0
        %978 = vmatpush.msra.mxu0 0.0
        %979 = vmatpush.msra.mxu0 0.0
        %980 = vmatpush.msra.mxu0 0.0
        %981 = vmatpush.msra.mxu0 0.0
        %982 = vmatpush.msra.mxu0 0.0
        %983 = vmatpush.msra.mxu0 0.0
        %984 = vmatpush.msra.mxu0 %v918
        %985 = vmatpush.msra.mxu0 %v917
        %986 = vmatpush.msra.mxu0 %v916
        %987 = vmatpush.msra.mxu0 %v915
        %988 = vmatmul.f32.gmra.mxu0 %v964
        %v989 = vpop.f32.mrf.mxu0
        %v990 = vadd.f32 0.0, %v989
        %991 = vmatmul.f32.gmra.mxu0 %v967
        %v992 = vpop.f32.mrf.mxu0
        %v993 = vadd.f32 0.0, %v992
        %994 = vmatmul.f32.gmra.mxu0 %v970
        %v995 = vpop.f32.mrf.mxu0
        %v996 = vadd.f32 0.0, %v995
        %997 = vdwg.mxu0
        %v998 = vmul.f32 %v990, 0.125
        %v999 = vmul.f32 %v993, 0.125
        %v1000 = vmul.f32 %v996, 0.125
        %vm1001 = vcmask 31744
        %v1003 = vsel %vm1001, %v957, 0
        %v1006 = vsel %vm1001, %v958, 0
        %v1009 = vsel %vm1001, %v959, 0
        %vm1011 = vcmask 1043456
        %v1013 = vsel %vm1011, %v919, 0
        %1015 = vmatpush.msra.mxu0 0.0
        %1016 = vmatpush.msra.mxu0 0.0
        %1017 = vmatpush.msra.mxu0 0.0
        %1018 = vmatpush.msra.mxu0 0.0
        %1019 = vmatpush.msra.mxu0 0.0
        %1020 = vmatpush.msra.mxu0 0.0
        %1021 = vmatpush.msra.mxu0 0.0
        %1022 = vmatpush.msra.mxu0 0.0
        %1023 = vmatpush.msra.mxu0 0.0
        %1024 = vmatpush.msra.mxu0 0.0
        %1025 = vmatpush.msra.mxu0 0.0
        %1026 = vmatpush.msra.mxu0 0.0
        %1027 = vmatpush.msra.mxu0 0.0
        %1028 = vmatpush.msra.mxu0 0.0
        %1029 = vmatpush.msra.mxu0 0.0
        %1030 = vmatpush.msra.mxu0 %v1013
        %1031 = vmatmul.f32.gmra.mxu0 %v1003
        %v1032 = vpop.f32.mrf.mxu0
        %v1033 = vadd.f32 0.0, %v1032
        %1034 = vmatmul.f32.gmra.mxu0 %v1006
        %v1035 = vpop.f32.mrf.mxu0
        %v1036 = vadd.f32 0.0, %v1035
        %1037 = vmatmul.f32.gmra.mxu0 %v1009
        %v1038 = vpop.f32.mrf.mxu0
        %v1039 = vadd.f32 0.0, %v1038
        %1040 = vdwg.mxu0
        %v1042 = vsel %vm1001, %v998, 0
        %v1045 = vsel %vm1001, %v999, 0
        %v1048 = vsel %vm1001, %v1000, 0
        %1050 = vmatpush.msra.mxu0 0.0
        %1051 = vmatpush.msra.mxu0 0.0
        %1052 = vmatpush.msra.mxu0 0.0
        %1053 = vmatpush.msra.mxu0 0.0
        %1054 = vmatpush.msra.mxu0 0.0
        %1055 = vmatpush.msra.mxu0 0.0
        %1056 = vmatpush.msra.mxu0 0.0
        %1057 = vmatpush.msra.mxu0 0.0
        %1058 = vmatpush.msra.mxu0 0.0
        %1059 = vmatpush.msra.mxu0 0.0
        %1060 = vmatpush.msra.mxu0 0.0
        %1061 = vmatpush.msra.mxu0 0.0
        %1062 = vmatpush.msra.mxu0 0.0
        %1063 = vmatpush.msra.mxu0 0.0
        %1064 = vmatpush.msra.mxu0 0.0
        %1065 = vmatpush.msra.mxu0 %v1013
        %1066 = vmatmul.f32.gmra.mxu0 %v1042
        %v1067 = vpop.f32.mrf.mxu0
        %v1068 = vadd.f32 0.0, %v1067
        %1069 = vmatmul.f32.gmra.mxu0 %v1045
        %v1070 = vpop.f32.mrf.mxu0
        %v1071 = vadd.f32 0.0, %v1070
        %1072 = vmatmul.f32.gmra.mxu0 %v1048
        %v1073 = vpop.f32.mrf.mxu0
        %v1074 = vadd.f32 0.0, %v1073
        %1075 = vdwg.mxu0
        %v1076 = vmul.f32 %v1033, %v1033
        %v1077 = vmul.f32 %v1036, %v1036
        %v1078 = vmul.f32 %v1039, %v1039
        %v1079 = vsub.f32 %v1068, %v1076
        %v1080 = vsub.f32 %v1071, %v1077
        %v1081 = vsub.f32 %v1074, %v1078
        %v1082 = vsub.f32 %v907, %v1033
        %v1083 = vsub.f32 %v909, %v1036
        %v1084 = vsub.f32 %v912, %v1039
        %v1085 = vadd.f32 %v1079, 1e-06
        %v1086 = vadd.f32 %v1080, 1e-06
        %v1087 = vadd.f32 %v1081, 1e-06
        %v1088 = vrsqrt.pop %v1085
        %v1089 = vmul.f32 %v1088, %v1085
        %v1090 = vmul.f32 %v1089, %v1088
        %v1091 = vmul.f32 0.5, %v1090
        %v1092 = vsub.f32 1.5, %v1091
        %v1093 = vmul.f32 %v1088, %v1092
        %vm1094 = vweird.f32 %v1085
        %vm1095 = vweird.f32 %v1088
        %vm1096 = vmor %vm1094, %vm1095
        %v1097 = vsel %vm1096, %v1088, %v1093
        %v1098 = vrsqrt.pop %v1086
        %v1099 = vmul.f32 %v1098, %v1086
        %v1100 = vmul.f32 %v1099, %v1098
        %v1101 = vmul.f32 0.5, %v1100
        %v1102 = vsub.f32 1.5, %v1101
        %v1103 = vmul.f32 %v1098, %v1102
        %vm1104 = vweird.f32 %v1086
        %vm1105 = vweird.f32 %v1098
        %vm1106 = vmor %vm1104, %vm1105
        %v1107 = vsel %vm1106, %v1098, %v1103
        %v1108 = vrsqrt.pop %v1087
        %v1109 = vmul.f32 %v1108, %v1087
        %v1110 = vmul.f32 %v1109, %v1108
        %v1111 = vmul.f32 0.5, %v1110
        %v1112 = vsub.f32 1.5, %v1111
        %v1113 = vmul.f32 %v1108, %v1112
        %vm1114 = vweird.f32 %v1087
        %vm1115 = vweird.f32 %v1108
        %vm1116 = vmor %vm1114, %vm1115
        %v1117 = vsel %vm1116, %v1108, %v1113
        %v1118 = vmul.f32 %v1082, %v1097
        %v1119 = vmul.f32 %v1083, %v1107
        %v1120 = vmul.f32 %v1084, %v1117
        %v1122 = vperm.slane %v920, 0
        %v1124 = vmul.f32 %v1118, %v1122
        %v1125 = vmul.f32 %v1119, %v1122
        %v1126 = vmul.f32 %v1120, %v1122
        %v1128 = vperm.slane %v921, 0
        %v1130 = vadd.f32 %v1124, %v1128
        %v1131 = vadd.f32 %v1125, %v1128
        %v1132 = vadd.f32 %v1126, %v1128
        %v1133 = vld [vmem:[%s15] sm:$0x1]
        %v1134 = vld [vmem:[#allocation2] sm:$0x1]
        %1135 = vrot.lane.b32.xlu0 %v907, 96
        %v1136 = vpop.permute.xlu0 %1135
        %1137 = vrot.lane.b32.xlu0 %v909, 96
        %v1138 = vpop.permute.xlu0 %1137
        %1139 = vrot.lane.b32.xlu0 %v912, 96
        %v1140 = vpop.permute.xlu0 %1139
        %v1141 = vsel %vm763, %v1136, 0
        %v1143 = vsel %vm763, %v1138, 0
        %v1145 = vsel %vm763, %v1140, 0
        %1147 = vmatpush.msra.mxu0 0.0
        %1148 = vmatpush.msra.mxu0 0.0
        %1149 = vmatpush.msra.mxu0 0.0
        %1150 = vmatpush.msra.mxu0 0.0
        %1151 = vmatpush.msra.mxu0 0.0
        %1152 = vmatpush.msra.mxu0 0.0
        %1153 = vmatpush.msra.mxu0 0.0
        %1154 = vmatpush.msra.mxu0 0.0
        %1155 = vmatpush.msra.mxu0 0.0
        %1156 = vmatpush.msra.mxu0 0.0
        %1157 = vmatpush.msra.mxu0 0.0
        %1158 = vmatpush.msra.mxu0 0.0
        %1159 = vmatpush.msra.mxu0 %v918
        %1160 = vmatpush.msra.mxu0 %v917
        %1161 = vmatpush.msra.mxu0 %v916
        %1162 = vmatpush.msra.mxu0 %v915
        %1163 = vmatmul.f32.gmra.mxu0 %v1141
        %v1164 = vpop.f32.mrf.mxu0
        %v1165 = vadd.f32 0.0, %v1164
        %1166 = vmatmul.f32.gmra.mxu0 %v1143
        %v1167 = vpop.f32.mrf.mxu0
        %v1168 = vadd.f32 0.0, %v1167
        %1169 = vmatmul.f32.gmra.mxu0 %v1145
        %v1170 = vpop.f32.mrf.mxu0
        %v1171 = vadd.f32 0.0, %v1170
        %1172 = vdwg.mxu0
        %v1173 = vmul.f32 %v1165, 0.125
        %v1174 = vmul.f32 %v1168, 0.125
        %v1175 = vmul.f32 %v1171, 0.125
        %1176 = vrot.lane.b32.xlu0 %v960, 96
        %v1177 = vpop.permute.xlu0 %1176
        %1178 = vrot.lane.b32.xlu0 %v961, 96
        %v1179 = vpop.permute.xlu0 %1178
        %1180 = vrot.lane.b32.xlu0 %v962, 96
        %v1181 = vpop.permute.xlu0 %1180
        %v1182 = vsel %vm763, %v1177, 0
        %v1184 = vsel %vm763, %v1179, 0
        %v1186 = vsel %vm763, %v1181, 0
        %1188 = vmatpush.msra.mxu0 0.0
        %1189 = vmatpush.msra.mxu0 0.0
        %1190 = vmatpush.msra.mxu0 0.0
        %1191 = vmatpush.msra.mxu0 0.0
        %1192 = vmatpush.msra.mxu0 0.0
        %1193 = vmatpush.msra.mxu0 0.0
        %1194 = vmatpush.msra.mxu0 0.0
        %1195 = vmatpush.msra.mxu0 0.0
        %1196 = vmatpush.msra.mxu0 0.0
        %1197 = vmatpush.msra.mxu0 0.0
        %1198 = vmatpush.msra.mxu0 0.0
        %1199 = vmatpush.msra.mxu0 0.0
        %1200 = vmatpush.msra.mxu0 %v918
        %1201 = vmatpush.msra.mxu0 %v917
        %1202 = vmatpush.msra.mxu0 %v916
        %1203 = vmatpush.msra.mxu0 %v915
        %1204 = vmatmul.f32.gmra.mxu0 %v1182
        %v1205 = vpop.f32.mrf.mxu0
        %v1206 = vadd.f32 0.0, %v1205
        %1207 = vmatmul.f32.gmra.mxu0 %v1184
        %v1208 = vpop.f32.mrf.mxu0
        %v1209 = vadd.f32 0.0, %v1208
        %1210 = vmatmul.f32.gmra.mxu0 %v1186
        %v1211 = vpop.f32.mrf.mxu0
        %v1212 = vadd.f32 0.0, %v1211
        %1213 = vdwg.mxu0
        %v1214 = vmul.f32 %v1206, 0.125
        %v1215 = vmul.f32 %v1209, 0.125
        %v1216 = vmul.f32 %v1212, 0.125
        %v1218 = vsel %vm1001, %v1173, 0
        %v1221 = vsel %vm1001, %v1174, 0
        %v1224 = vsel %vm1001, %v1175, 0
        %1226 = vmatpush.msra.mxu0 0.0
        %1227 = vmatpush.msra.mxu0 0.0
        %1228 = vmatpush.msra.mxu0 0.0
        %1229 = vmatpush.msra.mxu0 0.0
        %1230 = vmatpush.msra.mxu0 0.0
        %1231 = vmatpush.msra.mxu0 0.0
        %1232 = vmatpush.msra.mxu0 0.0
        %1233 = vmatpush.msra.mxu0 0.0
        %1234 = vmatpush.msra.mxu0 0.0
        %1235 = vmatpush.msra.mxu0 0.0
        %1236 = vmatpush.msra.mxu0 0.0
        %1237 = vmatpush.msra.mxu0 0.0
        %1238 = vmatpush.msra.mxu0 0.0
        %1239 = vmatpush.msra.mxu0 0.0
        %1240 = vmatpush.msra.mxu0 0.0
        %1241 = vmatpush.msra.mxu0 %v1013
        %1242 = vmatmul.f32.gmra.mxu0 %v1218
        %v1243 = vpop.f32.mrf.mxu0
        %v1244 = vadd.f32 0.0, %v1243
        %1245 = vmatmul.f32.gmra.mxu0 %v1221
        %v1246 = vpop.f32.mrf.mxu0
        %v1247 = vadd.f32 0.0, %v1246
        %1248 = vmatmul.f32.gmra.mxu0 %v1224
        %v1249 = vpop.f32.mrf.mxu0
        %v1250 = vadd.f32 0.0, %v1249
        %1251 = vdwg.mxu0
        %v1253 = vsel %vm1001, %v1214, 0
        %v1256 = vsel %vm1001, %v1215, 0
        %v1259 = vsel %vm1001, %v1216, 0
        %1261 = vmatpush.msra.mxu0 0.0
        %1262 = vmatpush.msra.mxu0 0.0
        %1263 = vmatpush.msra.mxu0 0.0
        %1264 = vmatpush.msra.mxu0 0.0
        %1265 = vmatpush.msra.mxu0 0.0
        %1266 = vmatpush.msra.mxu0 0.0
        %1267 = vmatpush.msra.mxu0 0.0
        %1268 = vmatpush.msra.mxu0 0.0
        %1269 = vmatpush.msra.mxu0 0.0
        %1270 = vmatpush.msra.mxu0 0.0
        %1271 = vmatpush.msra.mxu0 0.0
        %1272 = vmatpush.msra.mxu0 0.0
        %1273 = vmatpush.msra.mxu0 0.0
        %1274 = vmatpush.msra.mxu0 0.0
        %1275 = vmatpush.msra.mxu0 0.0
        %1276 = vmatpush.msra.mxu0 %v1013
        %1277 = vmatmul.f32.gmra.mxu0 %v1253
        %v1278 = vpop.f32.mrf.mxu0
        %v1279 = vadd.f32 0.0, %v1278
        %1280 = vmatmul.f32.gmra.mxu0 %v1256
        %v1281 = vpop.f32.mrf.mxu0
        %v1282 = vadd.f32 0.0, %v1281
        %1283 = vmatmul.f32.gmra.mxu0 %v1259
        %v1284 = vpop.f32.mrf.mxu0
        %v1285 = vadd.f32 0.0, %v1284
        %1286 = vdwg.mxu0
        %v1287 = vmul.f32 %v1244, %v1244
        %v1288 = vmul.f32 %v1247, %v1247
        %v1289 = vmul.f32 %v1250, %v1250
        %v1290 = vsub.f32 %v1279, %v1287
        %v1291 = vsub.f32 %v1282, %v1288
        %v1292 = vsub.f32 %v1285, %v1289
        %1296 = vrot.lane.b32.xlu0 %v1244, 32
        %v1297 = vpop.permute.xlu0 %1296
        %1298 = vrot.lane.b32.xlu0 %v1247, 32
        %v1299 = vpop.permute.xlu0 %1298
        %1300 = vrot.lane.b32.xlu0 %v1250, 32
        %v1301 = vpop.permute.xlu0 %1300
        %v1305 = vsub.f32 %v907, %v1297
        %v1306 = vsub.f32 %v909, %v1299
        %v1307 = vsub.f32 %v912, %v1301
        %v1308 = vadd.f32 %v1290, 1e-06
        %v1309 = vadd.f32 %v1291, 1e-06
        %v1310 = vadd.f32 %v1292, 1e-06
        %v1311 = vrsqrt.pop %v1308
        %v1312 = vmul.f32 %v1311, %v1308
        %v1313 = vmul.f32 %v1312, %v1311
        %v1314 = vmul.f32 0.5, %v1313
        %v1315 = vsub.f32 1.5, %v1314
        %v1316 = vmul.f32 %v1311, %v1315
        %vm1317 = vweird.f32 %v1308
        %vm1318 = vweird.f32 %v1311
        %vm1319 = vmor %vm1317, %vm1318
        %v1320 = vsel %vm1319, %v1311, %v1316
        %v1321 = vrsqrt.pop %v1309
        %v1322 = vmul.f32 %v1321, %v1309
        %v1323 = vmul.f32 %v1322, %v1321
        %v1324 = vmul.f32 0.5, %v1323
        %v1325 = vsub.f32 1.5, %v1324
        %v1326 = vmul.f32 %v1321, %v1325
        %vm1327 = vweird.f32 %v1309
        %vm1328 = vweird.f32 %v1321
        %vm1329 = vmor %vm1327, %vm1328
        %v1330 = vsel %vm1329, %v1321, %v1326
        %v1331 = vrsqrt.pop %v1310
        %v1332 = vmul.f32 %v1331, %v1310
        %v1333 = vmul.f32 %v1332, %v1331
        %v1334 = vmul.f32 0.5, %v1333
        %v1335 = vsub.f32 1.5, %v1334
        %v1336 = vmul.f32 %v1331, %v1335
        %vm1337 = vweird.f32 %v1310
        %vm1338 = vweird.f32 %v1331
        %vm1339 = vmor %vm1337, %vm1338
        %v1340 = vsel %vm1339, %v1331, %v1336
        %1344 = vrot.lane.b32.xlu0 %v1320, 32
        %v1345 = vpop.permute.xlu0 %1344
        %1346 = vrot.lane.b32.xlu0 %v1330, 32
        %v1347 = vpop.permute.xlu0 %1346
        %1348 = vrot.lane.b32.xlu0 %v1340, 32
        %v1349 = vpop.permute.xlu0 %1348
        %v1353 = vmul.f32 %v1305, %v1345
        %v1354 = vmul.f32 %v1306, %v1347
        %v1355 = vmul.f32 %v1307, %v1349
        %v1357 = vperm.slane %v1133, 0
        %1358 = vrot.lane.b32.xlu0 %v1357, 32
        %v1359 = vpop.permute.xlu0 %1358
        %v1361 = vmul.f32 %v1353, %v1359
        %v1362 = vmul.f32 %v1354, %v1359
        %v1363 = vmul.f32 %v1355, %v1359
        %v1365 = vperm.slane %v1134, 0
        %1366 = vrot.lane.b32.xlu0 %v1365, 32
        %v1367 = vpop.permute.xlu0 %1366
        %v1369 = vadd.f32 %v1361, %v1367
        %v1370 = vadd.f32 %v1362, %v1367
        %v1371 = vadd.f32 %v1363, %v1367
        %1375 = vrot.lane.b32.xlu0 %v1130, 120
        %v1376 = vpop.permute.xlu0 %1375
        %1377 = vrot.lane.b32.xlu0 %v1131, 120
        %v1378 = vpop.permute.xlu0 %1377
        %1379 = vrot.lane.b32.xlu0 %v1132, 120
        %v1380 = vpop.permute.xlu0 %1379
        %1384 = vrot.lane.b32.xlu0 %v1130, 112
        %v1385 = vpop.permute.xlu0 %1384
        %1386 = vrot.lane.b32.xlu0 %v1131, 112
        %v1387 = vpop.permute.xlu0 %1386
        %1388 = vrot.lane.b32.xlu0 %v1132, 112
        %v1389 = vpop.permute.xlu0 %1388
        %1393 = vrot.lane.b32.xlu0 %v1130, 104
        %v1394 = vpop.permute.xlu0 %1393
        %1395 = vrot.lane.b32.xlu0 %v1131, 104
        %v1396 = vpop.permute.xlu0 %1395
        %1397 = vrot.lane.b32.xlu0 %v1132, 104
        %v1398 = vpop.permute.xlu0 %1397
        %v1402 = vpack.c.bf16 %v1130, %v1130
        %v1403 = vpack.c.bf16 %v1131, %v1131
        %v1404 = vpack.c.bf16 %v1132, %v1132
        %v1405 = vpack.c.bf16 %v1376, %v1376
        %v1406 = vpack.c.bf16 %v1378, %v1378
        %v1407 = vpack.c.bf16 %v1380, %v1380
        %v1408 = vpack.c.bf16 %v1385, %v1385
        %v1409 = vpack.c.bf16 %v1387, %v1387
        %v1410 = vpack.c.bf16 %v1389, %v1389
        %v1411 = vpack.c.bf16 %v1394, %v1394
        %v1412 = vpack.c.bf16 %v1396, %v1396
        %v1413 = vpack.c.bf16 %v1398, %v1398
        %1417 = vrot.lane.b32.xlu0 %v1369, 120
        %v1418 = vpop.permute.xlu0 %1417
        %1419 = vrot.lane.b32.xlu0 %v1370, 120
        %v1420 = vpop.permute.xlu0 %1419
        %1421 = vrot.lane.b32.xlu0 %v1371, 120
        %v1422 = vpop.permute.xlu0 %1421
        %1426 = vrot.lane.b32.xlu0 %v1369, 112
        %v1427 = vpop.permute.xlu0 %1426
        %1428 = vrot.lane.b32.xlu0 %v1370, 112
        %v1429 = vpop.permute.xlu0 %1428
        %1430 = vrot.lane.b32.xlu0 %v1371, 112
        %v1431 = vpop.permute.xlu0 %1430
        %1435 = vrot.lane.b32.xlu0 %v1369, 104
        %v1436 = vpop.permute.xlu0 %1435
        %1437 = vrot.lane.b32.xlu0 %v1370, 104
        %v1438 = vpop.permute.xlu0 %1437
        %1439 = vrot.lane.b32.xlu0 %v1371, 104
        %v1440 = vpop.permute.xlu0 %1439
        %v1444 = vpack.c.bf16 %v1369, %v1369
        %v1445 = vpack.c.bf16 %v1370, %v1370
        %v1446 = vpack.c.bf16 %v1371, %v1371
        %v1447 = vpack.c.bf16 %v1418, %v1418
        %v1448 = vpack.c.bf16 %v1420, %v1420
        %v1449 = vpack.c.bf16 %v1422, %v1422
        %v1450 = vpack.c.bf16 %v1427, %v1427
        %v1451 = vpack.c.bf16 %v1429, %v1429
        %v1452 = vpack.c.bf16 %v1431, %v1431
        %v1453 = vpack.c.bf16 %v1436, %v1436
        %v1454 = vpack.c.bf16 %v1438, %v1438
        %v1455 = vpack.c.bf16 %v1440, %v1440
        %1456 = vrot.lane.b32.xlu0 %v907, 120
        %v1457 = vpop.permute.xlu0 %1456
        %1458 = vrot.lane.b32.xlu0 %v909, 120
        %v1459 = vpop.permute.xlu0 %1458
        %1460 = vrot.lane.b32.xlu0 %v912, 120
        %v1461 = vpop.permute.xlu0 %1460
        %1465 = vrot.lane.b32.xlu0 %v907, 112
        %v1466 = vpop.permute.xlu0 %1465
        %1467 = vrot.lane.b32.xlu0 %v909, 112
        %v1468 = vpop.permute.xlu0 %1467
        %1469 = vrot.lane.b32.xlu0 %v912, 112
        %v1470 = vpop.permute.xlu0 %1469
        %1474 = vrot.lane.b32.xlu0 %v907, 104
        %v1475 = vpop.permute.xlu0 %1474
        %1476 = vrot.lane.b32.xlu0 %v909, 104
        %v1477 = vpop.permute.xlu0 %1476
        %1478 = vrot.lane.b32.xlu0 %v912, 104
        %v1479 = vpop.permute.xlu0 %1478
        %v1483 = vpack.c.bf16 %v907, %v907
        %v1484 = vpack.c.bf16 %v909, %v909
        %v1485 = vpack.c.bf16 %v912, %v912
        %v1486 = vpack.c.bf16 %v1457, %v1457
        %v1487 = vpack.c.bf16 %v1459, %v1459
        %v1488 = vpack.c.bf16 %v1461, %v1461
        %v1489 = vpack.c.bf16 %v1466, %v1466
        %v1490 = vpack.c.bf16 %v1468, %v1468
        %v1491 = vpack.c.bf16 %v1470, %v1470
        %v1492 = vpack.c.bf16 %v1475, %v1475
        %v1493 = vpack.c.bf16 %v1477, %v1477
        %v1494 = vpack.c.bf16 %v1479, %v1479
        %v1498 = vunpack.c.l.b16 %v1402
        %v1499 = vunpack.c.l.b16 %v1403
        %v1500 = vunpack.c.l.b16 %v1404
        %v1501 = vpack.c.b16 %v1499, %v1498
        %v1502 = vpack.c.b16 %v1500, %v1500
        %v1506 = vunpack.c.l.b16 %v1444
        %v1507 = vunpack.c.l.b16 %v1445
        %v1508 = vunpack.c.l.b16 %v1446
        %v1509 = vpack.c.b16 %v1507, %v1506
        %v1510 = vpack.c.b16 %v1508, %v1508
        %1511 = vrot.lane.b32.xlu0 %v1509, 96
        %v1512 = vpop.permute.xlu0 %1511
        %1513 = vrot.lane.b32.xlu0 %v1510, 96
        %v1514 = vpop.permute.xlu0 %1513
        %vm1515 = vcmask 64512
        %v1517 = vsel %vm1515, %v1501, 0
        %v1520 = vsel %vm1515, %v1502, 0
        %v1523 = vsel %vm1515, %v1512, 0
        %v1526 = vsel %vm1515, %v1514, 0
        %1528 = vmatpush.bf16.xpose.msra.mxu0 0
        %1529 = vmatpush.bf16.xpose.msra.mxu0 0
        %1530 = vmatpush.bf16.xpose.msra.mxu0 0
        %1531 = vmatpush.bf16.xpose.msra.mxu0 0
        %1532 = vmatpush.bf16.xpose.msra.mxu0 0
        %1533 = vmatpush.bf16.xpose.msra.mxu0 0
        %1534 = vmatpush.bf16.xpose.msra.mxu0 %v1526
        %1535 = vmatpush.bf16.xpose.msra.mxu0 %v1523
        %1536 = vmatmul.bf16.gmra.mxu0 %v1517
        %v1537 = vpop.f32.mrf.mxu0
        %v1538 = vadd.f32 0.0, %v1537
        %v1539 = vpop.f32.mrf.mxu0
        %v1540 = vadd.f32 0.0, %v1539
        %1541 = vmatmul.bf16.gmra.mxu0 %v1520
        %v1542 = vpop.f32.mrf.mxu0
        %v1543 = vadd.f32 0.0, %v1542
        %v1544 = vpop.f32.mrf.mxu0
        %1545 = vdwg.mxu0
        %v1549 = vunpack.c.l.b16 %v1405
        %v1550 = vunpack.c.l.b16 %v1406
        %v1551 = vunpack.c.l.b16 %v1407
        %v1552 = vpack.c.b16 %v1550, %v1549
        %v1553 = vpack.c.b16 %v1551, %v1551
        %v1557 = vunpack.c.l.b16 %v1447
        %v1558 = vunpack.c.l.b16 %v1448
        %v1559 = vunpack.c.l.b16 %v1449
        %v1560 = vpack.c.b16 %v1558, %v1557
        %v1561 = vpack.c.b16 %v1559, %v1559
        %1562 = vrot.lane.b32.xlu0 %v1560, 96
        %v1563 = vpop.permute.xlu0 %1562
        %1564 = vrot.lane.b32.xlu0 %v1561, 96
        %v1565 = vpop.permute.xlu0 %1564
        %v1567 = vsel %vm1515, %v1552, 0
        %v1570 = vsel %vm1515, %v1553, 0
        %v1573 = vsel %vm1515, %v1563, 0
        %v1576 = vsel %vm1515, %v1565, 0
        %1578 = vmatpush.bf16.xpose.msra.mxu0 0
        %1579 = vmatpush.bf16.xpose.msra.mxu0 0
        %1580 = vmatpush.bf16.xpose.msra.mxu0 0
        %1581 = vmatpush.bf16.xpose.msra.mxu0 0
        %1582 = vmatpush.bf16.xpose.msra.mxu0 0
        %1583 = vmatpush.bf16.xpose.msra.mxu0 0
        %1584 = vmatpush.bf16.xpose.msra.mxu0 %v1576
        %1585 = vmatpush.bf16.xpose.msra.mxu0 %v1573
        %1586 = vmatmul.bf16.gmra.mxu0 %v1567
        %v1587 = vpop.f32.mrf.mxu0
        %v1588 = vadd.f32 0.0, %v1587
        %v1589 = vpop.f32.mrf.mxu0
        %v1590 = vadd.f32 0.0, %v1589
        %1591 = vmatmul.bf16.gmra.mxu0 %v1570
        %v1592 = vpop.f32.mrf.mxu0
        %v1593 = vadd.f32 0.0, %v1592
        %v1594 = vpop.f32.mrf.mxu0
        %1595 = vdwg.mxu0
        %v1599 = vunpack.c.l.b16 %v1408
        %v1600 = vunpack.c.l.b16 %v1409
        %v1601 = vunpack.c.l.b16 %v1410
        %v1602 = vpack.c.b16 %v1600, %v1599
        %v1603 = vpack.c.b16 %v1601, %v1601
        %v1607 = vunpack.c.l.b16 %v1450
        %v1608 = vunpack.c.l.b16 %v1451
        %v1609 = vunpack.c.l.b16 %v1452
        %v1610 = vpack.c.b16 %v1608, %v1607
        %v1611 = vpack.c.b16 %v1609, %v1609
        %1612 = vrot.lane.b32.xlu0 %v1610, 96
        %v1613 = vpop.permute.xlu0 %1612
        %1614 = vrot.lane.b32.xlu0 %v1611, 96
        %v1615 = vpop.permute.xlu0 %1614
        %v1617 = vsel %vm1515, %v1602, 0
        %v1620 = vsel %vm1515, %v1603, 0
        %v1623 = vsel %vm1515, %v1613, 0
        %v1626 = vsel %vm1515, %v1615, 0
        %1628 = vmatpush.bf16.xpose.msra.mxu0 0
        %1629 = vmatpush.bf16.xpose.msra.mxu0 0
        %1630 = vmatpush.bf16.xpose.msra.mxu0 0
        %1631 = vmatpush.bf16.xpose.msra.mxu0 0
        %1632 = vmatpush.bf16.xpose.msra.mxu0 0
        %1633 = vmatpush.bf16.xpose.msra.mxu0 0
        %1634 = vmatpush.bf16.xpose.msra.mxu0 %v1626
        %1635 = vmatpush.bf16.xpose.msra.mxu0 %v1623
        %1636 = vmatmul.bf16.gmra.mxu0 %v1617
        %v1637 = vpop.f32.mrf.mxu0
        %v1638 = vadd.f32 0.0, %v1637
        %v1639 = vpop.f32.mrf.mxu0
        %v1640 = vadd.f32 0.0, %v1639
        %1641 = vmatmul.bf16.gmra.mxu0 %v1620
        %v1642 = vpop.f32.mrf.mxu0
        %v1643 = vadd.f32 0.0, %v1642
        %v1644 = vpop.f32.mrf.mxu0
        %1645 = vdwg.mxu0
        %v1649 = vunpack.c.l.b16 %v1411
        %v1650 = vunpack.c.l.b16 %v1412
        %v1651 = vunpack.c.l.b16 %v1413
        %v1652 = vpack.c.b16 %v1650, %v1649
        %v1653 = vpack.c.b16 %v1651, %v1651
        %v1657 = vunpack.c.l.b16 %v1453
        %v1658 = vunpack.c.l.b16 %v1454
        %v1659 = vunpack.c.l.b16 %v1455
        %v1660 = vpack.c.b16 %v1658, %v1657
        %v1661 = vpack.c.b16 %v1659, %v1659
        %1662 = vrot.lane.b32.xlu0 %v1660, 96
        %v1663 = vpop.permute.xlu0 %1662
        %1664 = vrot.lane.b32.xlu0 %v1661, 96
        %v1665 = vpop.permute.xlu0 %1664
        %v1667 = vsel %vm1515, %v1652, 0
        %v1670 = vsel %vm1515, %v1653, 0
        %v1673 = vsel %vm1515, %v1663, 0
        %v1676 = vsel %vm1515, %v1665, 0
        %1678 = vmatpush.bf16.xpose.msra.mxu0 0
        %1679 = vmatpush.bf16.xpose.msra.mxu0 0
        %1680 = vmatpush.bf16.xpose.msra.mxu0 0
        %1681 = vmatpush.bf16.xpose.msra.mxu0 0
        %1682 = vmatpush.bf16.xpose.msra.mxu0 0
        %1683 = vmatpush.bf16.xpose.msra.mxu0 0
        %1684 = vmatpush.bf16.xpose.msra.mxu0 %v1676
        %1685 = vmatpush.bf16.xpose.msra.mxu0 %v1673
        %1686 = vmatmul.bf16.gmra.mxu0 %v1667
        %v1687 = vpop.f32.mrf.mxu0
        %v1688 = vadd.f32 0.0, %v1687
        %v1689 = vpop.f32.mrf.mxu0
        %v1690 = vadd.f32 0.0, %v1689
        %1691 = vmatmul.bf16.gmra.mxu0 %v1670
        %v1692 = vpop.f32.mrf.mxu0
        %v1693 = vadd.f32 0.0, %v1692
        %v1694 = vpop.f32.mrf.mxu0
        %1695 = vdwg.mxu0
        %v1696 = vmul.f32 %v1538, 0.35355338
        %v1697 = vmul.f32 %v1540, 0.35355338
        %v1698 = vmul.f32 %v1543, 0.35355338
        %v1699 = vmul.f32 %v1588, 0.35355338
        %v1700 = vmul.f32 %v1590, 0.35355338
        %v1701 = vmul.f32 %v1593, 0.35355338
        %v1702 = vmul.f32 %v1638, 0.35355338
        %v1703 = vmul.f32 %v1640, 0.35355338
        %v1704 = vmul.f32 %v1643, 0.35355338
        %v1705 = vmul.f32 %v1688, 0.35355338
        %v1706 = vmul.f32 %v1690, 0.35355338
        %v1707 = vmul.f32 %v1693, 0.35355338
        %vm1708 = vcmask 195584
        %v1709 = vsel %vm1708, %v1696, -inf
        %1710 = vmax.xlane.f32.xlu0 %v1709
        %v1711 = vpop.xlane.xlu0 %1710
        %v1712 = vsel %vm1708, %v1697, -inf
        %1713 = vmax.xlane.f32.xlu0 %v1712
        %v1714 = vpop.xlane.xlu0 %1713
        %v1715 = vsel %vm1708, %v1698, -inf
        %1716 = vmax.xlane.f32.xlu0 %v1715
        %v1717 = vpop.xlane.xlu0 %1716
        %v1718 = vsel %vm1708, %v1699, -inf
        %1719 = vmax.xlane.f32.xlu0 %v1718
        %v1720 = vpop.xlane.xlu0 %1719
        %v1721 = vsel %vm1708, %v1700, -inf
        %1722 = vmax.xlane.f32.xlu0 %v1721
        %v1723 = vpop.xlane.xlu0 %1722
        %v1724 = vsel %vm1708, %v1701, -inf
        %1725 = vmax.xlane.f32.xlu0 %v1724
        %v1726 = vpop.xlane.xlu0 %1725
        %v1727 = vsel %vm1708, %v1702, -inf
        %1728 = vmax.xlane.f32.xlu0 %v1727
        %v1729 = vpop.xlane.xlu0 %1728
        %v1730 = vsel %vm1708, %v1703, -inf
        %1731 = vmax.xlane.f32.xlu0 %v1730
        %v1732 = vpop.xlane.xlu0 %1731
        %v1733 = vsel %vm1708, %v1704, -inf
        %1734 = vmax.xlane.f32.xlu0 %v1733
        %v1735 = vpop.xlane.xlu0 %1734
        %v1736 = vsel %vm1708, %v1705, -inf
        %1737 = vmax.xlane.f32.xlu0 %v1736
        %v1738 = vpop.xlane.xlu0 %1737
        %v1739 = vsel %vm1708, %v1706, -inf
        %1740 = vmax.xlane.f32.xlu0 %v1739
        %v1741 = vpop.xlane.xlu0 %1740
        %v1742 = vsel %vm1708, %v1707, -inf
        %1743 = vmax.xlane.f32.xlu0 %v1742
        %v1744 = vpop.xlane.xlu0 %1743
        %v1745 = vsub.f32 %v1696, %v1711
        %v1746 = vsub.f32 %v1697, %v1714
        %v1747 = vsub.f32 %v1698, %v1717
        %v1748 = vsub.f32 %v1699, %v1720
        %v1749 = vsub.f32 %v1700, %v1723
        %v1750 = vsub.f32 %v1701, %v1726
        %v1751 = vsub.f32 %v1702, %v1729
        %v1752 = vsub.f32 %v1703, %v1732
        %v1753 = vsub.f32 %v1704, %v1735
        %v1754 = vsub.f32 %v1705, %v1738
        %v1755 = vsub.f32 %v1706, %v1741
        %v1756 = vsub.f32 %v1707, %v1744
        %v1757 = vmul.f32 %v1745, 1.442695
        %v1758 = vpow.pop %v1757
        %v1759 = vmul.f32 %v1746, 1.442695
        %v1760 = vpow.pop %v1759
        %v1761 = vmul.f32 %v1747, 1.442695
        %v1762 = vpow.pop %v1761
        %v1763 = vmul.f32 %v1748, 1.442695
        %v1764 = vpow.pop %v1763
        %v1765 = vmul.f32 %v1749, 1.442695
        %v1766 = vpow.pop %v1765
        %v1767 = vmul.f32 %v1750, 1.442695
        %v1768 = vpow.pop %v1767
        %v1769 = vmul.f32 %v1751, 1.442695
        %v1770 = vpow.pop %v1769
        %v1771 = vmul.f32 %v1752, 1.442695
        %v1772 = vpow.pop %v1771
        %v1773 = vmul.f32 %v1753, 1.442695
        %v1774 = vpow.pop %v1773
        %v1775 = vmul.f32 %v1754, 1.442695
        %v1776 = vpow.pop %v1775
        %v1777 = vmul.f32 %v1755, 1.442695
        %v1778 = vpow.pop %v1777
        %v1779 = vmul.f32 %v1756, 1.442695
        %v1780 = vpow.pop %v1779
        %v1781 = vsel %vm1708, %v1758, 0.0
        %1782 = vadd.xlane.f32.xlu0 %v1781
        %v1783 = vpop.xlane.xlu0 %1782
        %v1784 = vsel %vm1708, %v1760, 0.0
        %1785 = vadd.xlane.f32.xlu0 %v1784
        %v1786 = vpop.xlane.xlu0 %1785
        %v1787 = vsel %vm1708, %v1762, 0.0
        %1788 = vadd.xlane.f32.xlu0 %v1787
        %v1789 = vpop.xlane.xlu0 %1788
        %v1790 = vsel %vm1708, %v1764, 0.0
        %1791 = vadd.xlane.f32.xlu0 %v1790
        %v1792 = vpop.xlane.xlu0 %1791
        %v1793 = vsel %vm1708, %v1766, 0.0
        %1794 = vadd.xlane.f32.xlu0 %v1793
        %v1795 = vpop.xlane.xlu0 %1794
        %v1796 = vsel %vm1708, %v1768, 0.0
        %1797 = vadd.xlane.f32.xlu0 %v1796
        %v1798 = vpop.xlane.xlu0 %1797
        %v1799 = vsel %vm1708, %v1770, 0.0
        %1800 = vadd.xlane.f32.xlu0 %v1799
        %v1801 = vpop.xlane.xlu0 %1800
        %v1802 = vsel %vm1708, %v1772, 0.0
        %1803 = vadd.xlane.f32.xlu0 %v1802
        %v1804 = vpop.xlane.xlu0 %1803
        %v1805 = vsel %vm1708, %v1774, 0.0
        %1806 = vadd.xlane.f32.xlu0 %v1805
        %v1807 = vpop.xlane.xlu0 %1806
        %v1808 = vsel %vm1708, %v1776, 0.0
        %1809 = vadd.xlane.f32.xlu0 %v1808
        %v1810 = vpop.xlane.xlu0 %1809
        %v1811 = vsel %vm1708, %v1778, 0.0
        %1812 = vadd.xlane.f32.xlu0 %v1811
        %v1813 = vpop.xlane.xlu0 %1812
        %v1814 = vsel %vm1708, %v1780, 0.0
        %1815 = vadd.xlane.f32.xlu0 %v1814
        %v1816 = vpop.xlane.xlu0 %1815
        %v1817 = vrcp.pop %v1783
        %v1818 = vrcp.pop %v1786
        %v1819 = vrcp.pop %v1789
        %v1820 = vrcp.pop %v1792
        %v1821 = vrcp.pop %v1795
        %v1822 = vrcp.pop %v1798
        %v1823 = vrcp.pop %v1801
        %v1824 = vrcp.pop %v1804
        %v1825 = vrcp.pop %v1807
        %v1826 = vrcp.pop %v1810
        %v1827 = vrcp.pop %v1813
        %v1828 = vrcp.pop %v1816
        %v1829 = vmul.f32 %v1758, %v1817
        %v1830 = vmul.f32 %v1760, %v1818
        %v1831 = vmul.f32 %v1762, %v1819
        %v1832 = vmul.f32 %v1764, %v1820
        %v1833 = vmul.f32 %v1766, %v1821
        %v1834 = vmul.f32 %v1768, %v1822
        %v1835 = vmul.f32 %v1770, %v1823
        %v1836 = vmul.f32 %v1772, %v1824
        %v1837 = vmul.f32 %v1774, %v1825
        %v1838 = vmul.f32 %v1776, %v1826
        %v1839 = vmul.f32 %v1778, %v1827
        %v1840 = vmul.f32 %v1780, %v1828
        %v1841 = vpack.c.bf16 %v1829, %v1829
        %v1842 = vpack.c.bf16 %v1830, %v1830
        %v1843 = vpack.c.bf16 %v1831, %v1831
        %v1844 = vpack.c.bf16 %v1832, %v1832
        %v1845 = vpack.c.bf16 %v1833, %v1833
        %v1846 = vpack.c.bf16 %v1834, %v1834
        %v1847 = vpack.c.bf16 %v1835, %v1835
        %v1848 = vpack.c.bf16 %v1836, %v1836
        %v1849 = vpack.c.bf16 %v1837, %v1837
        %v1850 = vpack.c.bf16 %v1838, %v1838
        %v1851 = vpack.c.bf16 %v1839, %v1839
        %v1852 = vpack.c.bf16 %v1840, %v1840
        %v1856 = vunpack.c.l.b16 %v1841
        %v1857 = vunpack.c.l.b16 %v1842
        %v1858 = vunpack.c.l.b16 %v1843
        %v1859 = vpack.c.b16 %v1857, %v1856
        %v1860 = vpack.c.b16 %v1858, %v1858
        %v1864 = vunpack.c.l.b16 %v1483
        %v1865 = vunpack.c.l.b16 %v1484
        %v1866 = vunpack.c.l.b16 %v1485
        %v1867 = vpack.c.b16 %v1865, %v1864
        %v1868 = vpack.c.b16 %v1866, %v1866
        %1869 = vrot.lane.b32.xlu0 %v1867, 64
        %v1870 = vpop.permute.xlu0 %1869
        %1871 = vrot.lane.b32.xlu0 %v1868, 64
        %v1872 = vpop.permute.xlu0 %1871
        %v1875 = vsel %vm1708, %v1859, 0
        %v1878 = vsel %vm1708, %v1860, 0
        %v1881 = vsel %vm1011, %v1872, 0
        %1883 = vmatpush.bf16.msra.mxu0 0
        %1884 = vmatpush.bf16.msra.mxu0 0
        %1885 = vmatpush.bf16.msra.mxu0 0
        %1886 = vmatpush.bf16.msra.mxu0 0
        %1887 = vmatpush.bf16.msra.mxu0 0
        %1888 = vmatpush.bf16.msra.mxu0 0
        %1889 = vmatpush.bf16.msra.mxu0 %v1881
        %1890 = vmatpush.bf16.msra.mxu0 %v1870
        %1891 = vmatmul.bf16.gmra.mxu0 %v1875
        %v1892 = vpop.f32.mrf.mxu0
        %v1893 = vadd.f32 0.0, %v1892
        %v1894 = vpop.f32.mrf.mxu0
        %v1895 = vadd.f32 0.0, %v1894
        %1896 = vmatmul.bf16.gmra.mxu0 %v1878
        %v1897 = vpop.f32.mrf.mxu0
        %v1898 = vadd.f32 0.0, %v1897
        %v1899 = vpop.f32.mrf.mxu0
        %1900 = vdwg.mxu0
        %v1904 = vunpack.c.l.b16 %v1844
        %v1905 = vunpack.c.l.b16 %v1845
        %v1906 = vunpack.c.l.b16 %v1846
        %v1907 = vpack.c.b16 %v1905, %v1904
        %v1908 = vpack.c.b16 %v1906, %v1906
        %v1912 = vunpack.c.l.b16 %v1486
        %v1913 = vunpack.c.l.b16 %v1487
        %v1914 = vunpack.c.l.b16 %v1488
        %v1915 = vpack.c.b16 %v1913, %v1912
        %v1916 = vpack.c.b16 %v1914, %v1914
        %1917 = vrot.lane.b32.xlu0 %v1915, 64
        %v1918 = vpop.permute.xlu0 %1917
        %1919 = vrot.lane.b32.xlu0 %v1916, 64
        %v1920 = vpop.permute.xlu0 %1919
        %v1923 = vsel %vm1708, %v1907, 0
        %v1926 = vsel %vm1708, %v1908, 0
        %v1929 = vsel %vm1011, %v1920, 0
        %1931 = vmatpush.bf16.msra.mxu0 0
        %1932 = vmatpush.bf16.msra.mxu0 0
        %1933 = vmatpush.bf16.msra.mxu0 0
        %1934 = vmatpush.bf16.msra.mxu0 0
        %1935 = vmatpush.bf16.msra.mxu0 0
        %1936 = vmatpush.bf16.msra.mxu0 0
        %1937 = vmatpush.bf16.msra.mxu0 %v1929
        %1938 = vmatpush.bf16.msra.mxu0 %v1918
        %1939 = vmatmul.bf16.gmra.mxu0 %v1923
        %v1940 = vpop.f32.mrf.mxu0
        %v1941 = vadd.f32 0.0, %v1940
        %v1942 = vpop.f32.mrf.mxu0
        %v1943 = vadd.f32 0.0, %v1942
        %1944 = vmatmul.bf16.gmra.mxu0 %v1926
        %v1945 = vpop.f32.mrf.mxu0
        %v1946 = vadd.f32 0.0, %v1945
        %v1947 = vpop.f32.mrf.mxu0
        %1948 = vdwg.mxu0
        %v1952 = vunpack.c.l.b16 %v1847
        %v1953 = vunpack.c.l.b16 %v1848
        %v1954 = vunpack.c.l.b16 %v1849
        %v1955 = vpack.c.b16 %v1953, %v1952
        %v1956 = vpack.c.b16 %v1954, %v1954
        %v1960 = vunpack.c.l.b16 %v1489
        %v1961 = vunpack.c.l.b16 %v1490
        %v1962 = vunpack.c.l.b16 %v1491
        %v1963 = vpack.c.b16 %v1961, %v1960
        %v1964 = vpack.c.b16 %v1962, %v1962
        %1965 = vrot.lane.b32.xlu0 %v1963, 64
        %v1966 = vpop.permute.xlu0 %1965
        %1967 = vrot.lane.b32.xlu0 %v1964, 64
        %v1968 = vpop.permute.xlu0 %1967
        %v1971 = vsel %vm1708, %v1955, 0
        %v1974 = vsel %vm1708, %v1956, 0
        %v1977 = vsel %vm1011, %v1968, 0
        %1979 = vmatpush.bf16.msra.mxu0 0
        %1980 = vmatpush.bf16.msra.mxu0 0
        %1981 = vmatpush.bf16.msra.mxu0 0
        %1982 = vmatpush.bf16.msra.mxu0 0
        %1983 = vmatpush.bf16.msra.mxu0 0
        %1984 = vmatpush.bf16.msra.mxu0 0
        %1985 = vmatpush.bf16.msra.mxu0 %v1977
        %1986 = vmatpush.bf16.msra.mxu0 %v1966
        %1987 = vmatmul.bf16.gmra.mxu0 %v1971
        %v1988 = vpop.f32.mrf.mxu0
        %v1989 = vadd.f32 0.0, %v1988
        %v1990 = vpop.f32.mrf.mxu0
        %v1991 = vadd.f32 0.0, %v1990
        %1992 = vmatmul.bf16.gmra.mxu0 %v1974
        %v1993 = vpop.f32.mrf.mxu0
        %v1994 = vadd.f32 0.0, %v1993
        %v1995 = vpop.f32.mrf.mxu0
        %1996 = vdwg.mxu0
        %v2000 = vunpack.c.l.b16 %v1850
        %v2001 = vunpack.c.l.b16 %v1851
        %v2002 = vunpack.c.l.b16 %v1852
        %v2003 = vpack.c.b16 %v2001, %v2000
        %v2004 = vpack.c.b16 %v2002, %v2002
        %v2008 = vunpack.c.l.b16 %v1492
        %v2009 = vunpack.c.l.b16 %v1493
        %v2010 = vunpack.c.l.b16 %v1494
        %v2011 = vpack.c.b16 %v2009, %v2008
        %v2012 = vpack.c.b16 %v2010, %v2010
        %2013 = vrot.lane.b32.xlu0 %v2011, 64
        %v2014 = vpop.permute.xlu0 %2013
        %2015 = vrot.lane.b32.xlu0 %v2012, 64
        %v2016 = vpop.permute.xlu0 %2015
        %v2019 = vsel %vm1708, %v2003, 0
        %v2022 = vsel %vm1708, %v2004, 0
        %v2025 = vsel %vm1011, %v2016, 0
        %2027 = vmatpush.bf16.msra.mxu0 0
        %2028 = vmatpush.bf16.msra.mxu0 0
        %2029 = vmatpush.bf16.msra.mxu0 0
        %2030 = vmatpush.bf16.msra.mxu0 0
        %2031 = vmatpush.bf16.msra.mxu0 0
        %2032 = vmatpush.bf16.msra.mxu0 0
        %2033 = vmatpush.bf16.msra.mxu0 %v2025
        %2034 = vmatpush.bf16.msra.mxu0 %v2014
        %2035 = vmatmul.bf16.gmra.mxu0 %v2019
        %v2036 = vpop.f32.mrf.mxu0
        %v2037 = vadd.f32 0.0, %v2036
        %v2038 = vpop.f32.mrf.mxu0
        %v2039 = vadd.f32 0.0, %v2038
        %2040 = vmatmul.bf16.gmra.mxu0 %v2022
        %v2041 = vpop.f32.mrf.mxu0
        %v2042 = vadd.f32 0.0, %v2041
        %v2043 = vpop.f32.mrf.mxu0
        %2044 = vdwg.mxu0
        %2048 = vrot.lane.b32.xlu0 %v1941, 8
        %v2049 = vpop.permute.xlu0 %2048
        %2050 = vrot.lane.b32.xlu0 %v1943, 8
        %v2051 = vpop.permute.xlu0 %2050
        %2052 = vrot.lane.b32.xlu0 %v1946, 8
        %v2053 = vpop.permute.xlu0 %2052
        %2060 = vrot.lane.b32.xlu0 %v1989, 16
        %v2061 = vpop.permute.xlu0 %2060
        %2062 = vrot.lane.b32.xlu0 %v1991, 16
        %v2063 = vpop.permute.xlu0 %2062
        %2064 = vrot.lane.b32.xlu0 %v1994, 16
        %v2065 = vpop.permute.xlu0 %2064
        %2072 = vrot.lane.b32.xlu0 %v2037, 24
        %v2073 = vpop.permute.xlu0 %2072
        %2074 = vrot.lane.b32.xlu0 %v2039, 24
        %v2075 = vpop.permute.xlu0 %2074
        %2076 = vrot.lane.b32.xlu0 %v2042, 24
        %v2077 = vpop.permute.xlu0 %2076
        %v2081 = vsel %vm1515, %v1893, %v2049
        %v2082 = vsel %vm1515, %v1895, %v2051
        %v2083 = vsel %vm1515, %v1898, %v2053
        %vm2084 = vcmask 130048
        %v2085 = vsel %vm2084, %v2081, %v2061
        %v2086 = vsel %vm2084, %v2082, %v2063
        %v2087 = vsel %vm2084, %v2083, %v2065
        %v2088 = vsel %vm1708, %v2085, %v2073
        %v2089 = vsel %vm1708, %v2086, %v2075
        %v2090 = vsel %vm1708, %v2087, %v2077
        %v2091 = vpack.c.bf16 %v2089, %v2088
        %v2092 = vpack.c.bf16 %v2090, %v2090
        %v2093 = vld [vmem:[%s11] sm:$0xf]
        %v2094 = vld [vmem:[%s11 + $0x4] sm:$0xf]
        %v2095 = vld [vmem:[%s11 + $0x8] sm:$0xf]
        %v2096 = vld [vmem:[%s11 + $0xc] sm:$0xf]
        %v2097 = vld [vmem:[%s12] sm:$0x1]
        %v2099 = vperm.slane %v2097, 0
        %v2105 = vunpack.c.l.b16 %v2093
        %v2106 = vunpack.c.l.b16 %v2094
        %v2107 = vunpack.c.l.b16 %v2095
        %v2108 = vunpack.c.l.b16 %v2096
        %v2109 = vpack.c.b16 %v2106, %v2105
        %v2110 = vpack.c.b16 %v2108, %v2107
        %v2114 = vsel %vm763, %v2091, 0
        %v2117 = vsel %vm763, %v2092, 0
        %2119 = vmatpush.bf16.msra.mxu0 0
        %2120 = vmatpush.bf16.msra.mxu0 0
        %2121 = vmatpush.bf16.msra.mxu0 0
        %2122 = vmatpush.bf16.msra.mxu0 0
        %2123 = vmatpush.bf16.msra.mxu0 0
        %2124 = vmatpush.bf16.msra.mxu0 0
        %2125 = vmatpush.bf16.msra.mxu0 %v2110
        %2126 = vmatpush.bf16.msra.mxu0 %v2109
        %2127 = vmatmul.bf16.gmra.mxu0 %v2114
        %v2128 = vpop.f32.mrf.mxu0
        %v2129 = vadd.f32 %v2099, %v2128
        %v2130 = vpop.f32.mrf.mxu0
        %v2131 = vadd.f32 %v2099, %v2130
        %2132 = vmatmul.bf16.gmra.mxu0 %v2117
        %v2133 = vpop.f32.mrf.mxu0
        %v2134 = vadd.f32 %v2099, %v2133
        %v2135 = vpop.f32.mrf.mxu0
        %2136 = vdwg.mxu0
        %v2137 = vld [vmem:[%s747] sm:$0x1]
        %v2139 = vperm.slane %v2137, 0
        %v2141 = vmul.f32 %v2139, %v2129
        %v2142 = vadd.f32 %v760, %v2141
        %2143 = vst.msk [vmem:[%s756] sm:$0xff] %vm763, %v2142
        %v2144 = vld [vmem:[%s738] sm:$0x1]
        %v2146 = vperm.slane %v2144, 0
        %v2148 = vmul.f32 %v2146, %v2131
        %v2149 = vmul.f32 %v2146, %v2134
        %v2150 = vadd.f32 %v758, %v2148
        %v2151 = vadd.f32 %v759, %v2149
        %2152 = vst.msk [vmem:[%s752] sm:$0xff] %vm763, %v2150
        %2153 = vst.msk [vmem:[%s752 + $0x8] sm:$0xff] %vm763, %v2151
        %p2154 = scmp.lt.s32.totalorder %s33, 1
        %s2155 = scalar_select %p2154, %s33, 1
        %s2156 = smul.addr %s2155, 2
        %s2157 = smul.addr %s2156, 8
        %s2158 = scalar_lea.vmem %s19, %s2157
        %p2159 = scmp.lt.s32.totalorder %s33, 1
        %s2160 = scalar_select %p2159, %s33, 1
        %s2161 = smul.addr %s2160, 8
        %s2162 = scalar_lea.vmem %s20, %s2161
        // Predicated region
        $region101: #{cogvideox_block.5} parent=95 // pred_check
          %p2163 = pneg %p490
        $region102: #{cogvideox_block.5} parent=95 // pred_check_branch
          %2165 = sbr.rel (%p2163) target = $region104
        $region103: #{cogvideox_block.5} parent=95 // pred_region
          _
        $region104: #{cogvideox_block.5} parent=95 // pred_fallthru
          _
        // Predicated region
        $region105: #{cogvideox_block.5} parent=95 // pred_check
          %p2166 = pneg %p516
        $region106: #{cogvideox_block.5} parent=95 // pred_check_branch
          %2168 = sbr.rel (%p2166) target = $region108
        $region107: #{cogvideox_block.5} parent=95 // pred_region
          _
        $region108: #{cogvideox_block.5} parent=95 // pred_fallthru
          _
      $region96: #{cogvideox_block.5} parent=5 // pred_fallthru
        _
      %p2169 = scmp.le.s32.totalorder 2, %s28
      // Predicated region
      $region109: #{cogvideox_block.5} parent=5 // pred_check
        %p2170 = pneg %p2169
      $region110: #{cogvideox_block.5} parent=5 // pred_check_branch
        %2172 = sbr.rel (%p2170) target = $region112
      $region111: #{cogvideox_block.5} parent=5 // pred_region
        %s2173 = ssub.s32 %s28, 2
        // Predicated region
        $region113: #{cogvideox_block.5} parent=111 // pred_check
          %p2174 = pneg %p496
        $region114: #{cogvideox_block.5} parent=111 // pred_check_branch
          %2176 = sbr.rel (%p2174) target = $region116
        $region115: #{cogvideox_block.5} parent=111 // pred_region
          %p2177 = scmp.lt.s32.totalorder %s34, 1
          %s2178 = scalar_select %p2177, %s34, 1
          %s2179 = smul.addr %s2178, 2
          %s2180 = smul.addr %s2179, 8
          %s2181 = scalar_lea.vmem %s19, %s2180
        $region116: #{cogvideox_block.5} parent=111 // pred_fallthru
          _
        // Predicated region
        $region117: #{cogvideox_block.5} parent=111 // pred_check
          %p2182 = pneg %p522
        $region118: #{cogvideox_block.5} parent=111 // pred_check_branch
          %2184 = sbr.rel (%p2182) target = $region120
        $region119: #{cogvideox_block.5} parent=111 // pred_region
          %p2185 = scmp.lt.s32.totalorder %s34, 1
          %s2186 = scalar_select %p2185, %s34, 1
          %s2187 = smul.addr %s2186, 8
          %s2188 = scalar_lea.vmem %s20, %s2187
        $region120: #{cogvideox_block.5} parent=111 // pred_fallthru
          _
      $region112: #{cogvideox_block.5} parent=5 // pred_fallthru
        _
    $region6: #{cogvideox_block.5} parent=1 // loop_footer
      %s32 = sadd.s32 1, %s28
    $region7: #{cogvideox_block.5} parent=1 // loop_footer_branch
      %27 = sbr.rel target = $region3
    $region8: #{cogvideox_block.5} parent=1 // loop_exit
      _
    %2189 = vsyncpa [#allocation3], 1
    %s2190 = scalar_lea.sflag [#allocation3], 1
    %2191 = vsyncpa %s2190, 1

</llo_original>
